<compile_context>
chip_gen: v6e
topology: v6e:2x2x1
jax: 0.10.0
libtpu: 0.0.40
codegen_flags: <defaults>
</compile_context>

<pallas_src>
import math

import jax
import jax.numpy as jnp
from jax import lax
from jax.experimental import pallas as pl
from jax.experimental.pallas import tpu as pltpu


def _ball_lstm_kernel(x_ref,                        # (1, Ts*B, Din) chunk, (t,b)-major rows
                      wih0_ref, whh0_ref, b0_ref,   # (Din,4H), (H,4H), (1,4H)
                      wih1_ref, whh1_ref, b1_ref,   # (H,4H),   (H,4H), (1,4H)
                      wfc_ref, bfc_ref,             # (H,Opad), (1,Opad)
                      out_ref,                      # (1, Ts*B, Opad) chunk
                      state_ref,                    # (4, B, H) carried h0,c0,h1,c1
                      pre0_ref,                     # (Ts*B, 4H) hoisted layer-0 input proj
                      h1buf_ref):                   # (Ts*B, H) h1 per step
    rows = pre0_ref.shape[0]
    H = whh0_ref.shape[0]
    B = state_ref.shape[1]
    Ts = rows // B

    # Initialize the carried LSTM state at the start of each batch block's sequence.
    @pl.when(pl.program_id(1) == 0)
    def _():
        state_ref[...] = jnp.zeros_like(state_ref)

    whh0 = whh0_ref[...]
    wih1 = wih1_ref[...]
    whh1 = whh1_ref[...]
    b1 = b1_ref[...]

    # ---- prologue: single fused, time-parallel layer-0 input projection -------
    pre0_ref[...] = (jnp.dot(x_ref[0], wih0_ref[...],
                             preferred_element_type=jnp.float32) + b0_ref[...])

    def gates(pre):
        # PyTorch gate order along the fused 4H lane axis: i, f, g, o.
        # One full-width sigmoid + one full-width tanh (2 EUP pushes) instead of
        # four narrow activations; gate blocks are free static lane slices.
        sg = jax.nn.sigmoid(pre)
        th = jnp.tanh(pre)
        return sg[:, 0:H], sg[:, H:2 * H], th[:, 2 * H:3 * H], sg[:, 3 * H:4 * H]

    # ---- serial recurrence -----------------------------------------------------
    def step(t, carry):
        h0, c0, h1, c1 = carry
        row = t * B
        if B % 8 == 0:
            row = pl.multiple_of(row, 8)
        # Independent of all layer-0 work: issue this MXU push first so it
        # overlaps the layer-0 gate nonlinearities.
        hh1 = jnp.dot(h1, whh1, preferred_element_type=jnp.float32)
        # layer 0 (input projection + both biases precomputed in the prologue)
        pre0 = pre0_ref[pl.ds(row, B)] + jnp.dot(
            h0, whh0, preferred_element_type=jnp.float32)
        i0, f0, g0, o0 = gates(pre0)
        c0 = f0 * c0 + i0 * g0
        h0 = o0 * jnp.tanh(c0)
        # layer 1
        # TODO(synk): on v6e/v7x, fuse h0_prev@whh0 + h1_prev@whh1 into a single
        # (B,2H)x(2H,8H) block-diagonal MXU push (fills the 256-wide MXU) once an
        # unaligned minor-dim lane-concat of [h0|h1] is guaranteed to lower.
        pre1 = jnp.dot(h0, wih1, preferred_element_type=jnp.float32) + hh1 + b1
        i1, f1, g1, o1 = gates(pre1)
        c1 = f1 * c1 + i1 * g1
        h1 = o1 * jnp.tanh(c1)
        # TODO(synk): optional micro-opt: lane-pack a few consecutive h1's and
        # store lane-dense every few steps instead of one narrow store per step.
        h1buf_ref[pl.ds(row, B)] = h1
        return (h0, c0, h1, c1)

    # Full unroll for short chunks; partial for long ones, smaller for big B so
    # live pre-activations ((B,4H) = B/8 vregs each) do not spill.
    unroll = True if Ts <= 16 else (8 if B < 64 else 4)
    carry0 = (state_ref[0], state_ref[1], state_ref[2], state_ref[3])
    h0, c0, h1, c1 = lax.fori_loop(0, Ts, step, carry0, unroll=unroll)
    state_ref[0] = h0
    state_ref[1] = c0
    state_ref[2] = h1
    state_ref[3] = c1

    # ---- epilogue: single fused FC head over the whole chunk, lane-dense store
    out_ref[0] = (jnp.dot(h1buf_ref[...], wfc_ref[...],
                          preferred_element_type=jnp.float32)
                  + bfc_ref[...]).astype(out_ref.dtype)


def _whole_spec(shape):
    nd = len(shape)
    return pl.BlockSpec(shape, lambda bb, s: (0,) * nd)


def ball_trajectory_rnn_forward(x, params, *, seq_chunk=256, batch_block=None,
                                vmem_budget_bytes=12 << 20):
    """x: (B, S, Din) batch-first, float32. Returns (B, S, O)."""
    B, S, Din = x.shape
    H = params["w_hh_l0"].shape[1]
    O = params["w_fc"].shape[0]
    G = 4 * H
    Opad = ((O + 127) // 128) * 128     # lane-dense FC head / output store width
    f32 = jnp.float32

    # Batch blocking (leading "parallel" grid axis): lets v7x's two TensorCores
    # each run an independent slice of the batch.  Default: one block.
    if batch_block is None or batch_block <= 0 or B % batch_block != 0:
        Bb = B
    else:
        Bb = batch_block
    nb = B // Bb

    # Sequence chunking: the largest chunk that fits a conservative scoped-VMEM
    # budget (valid for v5e 16 MiB / v6e 32 MiB / v7x 32 MiB defaults), so the
    # per-grid-step overhead is amortized and the fused matmuls are MXU-sized.
    def chunk_bytes(ts):
        rows = ts * Bb
        return 4 * (2 * rows * Din + 2 * rows * Opad   # x / out double buffers
                    + rows * G + rows * H              # pre0 / h1 scratch
                    + 4 * Bb * H)                      # carried state

    Ts = max(1, min(seq_chunk, S))
    while Ts > 1 and chunk_bytes(Ts) > vmem_budget_bytes:
        Ts = (Ts + 1) // 2
    S_pad = -(-S // Ts) * Ts
    if S_pad // Ts > 1 and (Ts * Bb) % 8 != 0:
        # keep the (Ts*Bb, .) block second-minor dim sublane-aligned when tiled
        m = 8 // math.gcd(Bb, 8)
        Ts = -(-Ts // m) * m
        S_pad = -(-S // Ts) * Ts
    n_chunks = S_pad // Ts

    # Time-major, flattened (t, b) rows so the per-chunk input projection and FC
    # head are single dense matmuls (no in-kernel reshape).
    x_tm = jnp.transpose(x, (1, 0, 2)).astype(f32)            # (S, B, Din)
    if S_pad != S:
        # TODO(synk): tail padding runs extra timesteps through the carried
        # state; outputs are sliced so results are correct, but the final hidden
        # state (not returned by this module) would be wrong.
        x_tm = jnp.pad(x_tm, ((0, S_pad - S), (0, 0), (0, 0)))
    x_flat = (x_tm.reshape(S_pad, nb, Bb, Din)
              .transpose(1, 0, 2, 3)
              .reshape(nb, S_pad * Bb, Din))

    # Fused gate weights: (4H, In) -> (In, 4H); PyTorch gate order i,f,g,o is
    # kept along the last (lane) axis (4H = 128 for H=32: fully lane-dense).
    wih0 = params["w_ih_l0"].T.astype(f32)                    # (Din, 4H)
    whh0 = params["w_hh_l0"].T.astype(f32)                    # (H, 4H)
    b0 = (params["b_ih_l0"] + params["b_hh_l0"]).reshape(1, G).astype(f32)
    wih1 = params["w_ih_l1"].T.astype(f32)                    # (H, 4H)
    whh1 = params["w_hh_l1"].T.astype(f32)                    # (H, 4H)
    b1 = (params["b_ih_l1"] + params["b_hh_l1"]).reshape(1, G).astype(f32)
    wfc = jnp.pad(params["w_fc"].T.astype(f32), ((0, 0), (0, Opad - O)))   # (H, Opad)
    bfc = jnp.pad(params["b_fc"].reshape(1, O).astype(f32), ((0, 0), (0, Opad - O)))

    args = (x_flat, wih0, whh0, b0, wih1, whh1, b1, wfc, bfc)
    in_specs = [pl.BlockSpec((1, Ts * Bb, Din), lambda bb, s: (bb, s, 0))]
    in_specs += [_whole_spec(a.shape) for a in args[1:]]

    out_flat = pl.pallas_call(
        _ball_lstm_kernel,
        out_shape=jax.ShapeDtypeStruct((nb, S_pad * Bb, Opad), f32),
        grid=(nb, n_chunks),
        in_specs=in_specs,
        out_specs=pl.BlockSpec((1, Ts * Bb, Opad), lambda bb, s: (bb, s, 0)),
        scratch_shapes=[
            pltpu.VMEM((4, Bb, H), f32),        # carried h0, c0, h1, c1
            pltpu.VMEM((Ts * Bb, G), f32),      # hoisted layer-0 input projection
            pltpu.VMEM((Ts * Bb, H), f32),      # h1 per step, for the FC epilogue
        ],
        compiler_params=pltpu.CompilerParams(
            dimension_semantics=("parallel", "arbitrary")),   # state carried over s
    )(*args)

    out = (out_flat.reshape(nb, S_pad, Bb, Opad)
           .transpose(1, 0, 2, 3)
           .reshape(S_pad, B, Opad))[:S, :, :O]
    return jnp.transpose(out, (1, 0, 2))


def reference_forward(x, params):
    """Pure-JAX reference matching torch.nn.LSTM(batch_first=True) + Linear."""
    B, S, Din = x.shape
    H = params["w_hh_l0"].shape[1]

    def lstm_layer(seq, wih, whh, bih, bhh):
        def step(carry, xt):
            h, c = carry
            g = xt @ wih.T + h @ whh.T + bih + bhh
            i_g = jax.nn.sigmoid(g[:, :H])
            f_g = jax.nn.sigmoid(g[:, H:2 * H])
            g_g = jnp.tanh(g[:, 2 * H:3 * H])
            o_g = jax.nn.sigmoid(g[:, 3 * H:])
            c = f_g * c + i_g * g_g
            h = o_g * jnp.tanh(c)
            return (h, c), h

        init = (jnp.zeros((B, H), jnp.float32), jnp.zeros((B, H), jnp.float32))
        _, hs = lax.scan(step, init, jnp.transpose(seq, (1, 0, 2)))
        return jnp.transpose(hs, (1, 0, 2))

    h = lstm_layer(x, params["w_ih_l0"], params["w_hh_l0"],
                   params["b_ih_l0"], params["b_hh_l0"])
    h = lstm_layer(h, params["w_ih_l1"], params["w_hh_l1"],
                   params["b_ih_l1"], params["b_hh_l1"])
    return h @ params["w_fc"].T + params["b_fc"]


if __name__ == "__main__":
    # Small shapes consistent with the module: input_dim=4, output_dim=4,
    # num_layers=2; hidden shrunk to 32 so that 4H = 128 (one full lane vreg).
    B, S = 2, 8
    Din, H, O = 4, 32, 4

    key = jax.random.PRNGKey(0)
    keys = jax.random.split(key, 11)
    bound = 1.0 / float(jnp.sqrt(H))

    def u(k, shape):
        return jax.random.uniform(k, shape, jnp.float32, -bound, bound)

    params = {
        "w_ih_l0": u(keys[0], (4 * H, Din)),
        "w_hh_l0": u(keys[1], (4 * H, H)),
        "b_ih_l0": u(keys[2], (4 * H,)),
        "b_hh_l0": u(keys[3], (4 * H,)),
        "w_ih_l1": u(keys[4], (4 * H, H)),
        "w_hh_l1": u(keys[5], (4 * H, H)),
        "b_ih_l1": u(keys[6], (4 * H,)),
        "b_hh_l1": u(keys[7], (4 * H,)),
        "w_fc":    u(keys[8], (O, H)),
        "b_fc":    u(keys[9], (O,)),
    }
    x = jax.random.normal(keys[10], (B, S, Din), jnp.float32)

    ref = reference_forward(x, params)

    # Default: whole S=8 sequence in one grid step (grid=(1,1)).
    out = jax.block_until_ready(ball_trajectory_rnn_forward(x, params))
    assert out.shape == (B, S, O), out.shape
    assert jnp.allclose(out, ref, atol=1e-4, rtol=1e-4), \
        float(jnp.max(jnp.abs(out - ref)))

    # Chunked sequence (grid=(1,2)): exercises the carried-state path.
    out2 = jax.block_until_ready(
        ball_trajectory_rnn_forward(x, params, seq_chunk=4))
    assert jnp.allclose(out2, ref, atol=1e-4, rtol=1e-4), \
        float(jnp.max(jnp.abs(out2 - ref)))

    # Batch-blocked (grid=(2,1)): exercises the parallel batch axis (v7x megacore).
    out3 = jax.block_until_ready(
        ball_trajectory_rnn_forward(x, params, batch_block=1))
    assert jnp.allclose(out3, ref, atol=1e-4, rtol=1e-4), \
        float(jnp.max(jnp.abs(out3 - ref)))

    print("KERNEL_OK")
</pallas_src>

<mosaic_0001>
module attributes {stable_mosaic.version = 11 : i64} {
  func.func @_ball_lstm_kernel(%arg0: i32, %arg1: i32, %arg2: memref<1x16x4xf32, #tpu.memory_space<vmem>>, %arg3: memref<4x128xf32, #tpu.memory_space<vmem>>, %arg4: memref<32x128xf32, #tpu.memory_space<vmem>>, %arg5: memref<1x128xf32, #tpu.memory_space<vmem>>, %arg6: memref<32x128xf32, #tpu.memory_space<vmem>>, %arg7: memref<32x128xf32, #tpu.memory_space<vmem>>, %arg8: memref<1x128xf32, #tpu.memory_space<vmem>>, %arg9: memref<32x128xf32, #tpu.memory_space<vmem>>, %arg10: memref<1x128xf32, #tpu.memory_space<vmem>>, %arg11: memref<1x16x128xf32, #tpu.memory_space<vmem>>, %arg12: memref<4x2x32xf32, #tpu.memory_space<vmem>>, %arg13: memref<16x128xf32, #tpu.memory_space<vmem>>, %arg14: memref<16x32xf32, #tpu.memory_space<vmem>>) attributes {dimension_semantics = [#tpu.dimension_semantics<parallel>, #tpu.dimension_semantics<arbitrary>], iteration_bounds = array<i64: 1, 1>, scalar_prefetch = 0 : i64, scratch_operands = 3 : i64, tpu.core_type = #tpu.core_type<tc>, window_params = [{transform_indices = @transform_0, window_bounds = array<i64: 1, 16, 4>}, {pipeline_mode = #tpu.pipeline_mode<synchronous>, transform_indices = @transform_1, window_bounds = array<i64: 4, 128>}, {pipeline_mode = #tpu.pipeline_mode<synchronous>, transform_indices = @transform_2, window_bounds = array<i64: 32, 128>}, {pipeline_mode = #tpu.pipeline_mode<synchronous>, transform_indices = @transform_3, window_bounds = array<i64: 1, 128>}, {pipeline_mode = #tpu.pipeline_mode<synchronous>, transform_indices = @transform_4, window_bounds = array<i64: 32, 128>}, {pipeline_mode = #tpu.pipeline_mode<synchronous>, transform_indices = @transform_5, window_bounds = array<i64: 32, 128>}, {pipeline_mode = #tpu.pipeline_mode<synchronous>, transform_indices = @transform_6, window_bounds = array<i64: 1, 128>}, {pipeline_mode = #tpu.pipeline_mode<synchronous>, transform_indices = @transform_7, window_bounds = array<i64: 32, 128>}, {pipeline_mode = #tpu.pipeline_mode<synchronous>, transform_indices = @transform_8, window_bounds = array<i64: 1, 128>}, {transform_indices = @transform_9, window_bounds = array<i64: 1, 16, 128>}]} {
    %c0_i32 = arith.constant 0 : i32
    %0 = arith.cmpi eq, %arg1, %c0_i32 : i32
    %1 = arith.extui %0 : i1 to i32
    %c0_i32_0 = arith.constant 0 : i32
    %2 = arith.cmpi ne, %1, %c0_i32_0 : i32
    scf.if %2 {
      %cst_113 = arith.constant 0.000000e+00 : f32
      %380 = vector.broadcast %cst_113 : f32 to vector<4x2x32xf32>
      %c0_114 = arith.constant 0 : index
      %c0_115 = arith.constant 0 : index
      %c0_116 = arith.constant 0 : index
      %381 = vector.load %arg12[%c0_114, %c0_115, %c0_116] : memref<4x2x32xf32, #tpu.memory_space<vmem>>, vector<4x2x32xf32>
      tpu.vector_store %arg12[%c0_114, %c0_115, %c0_116], %380 {strides = array<i32>} : memref<4x2x32xf32, #tpu.memory_space<vmem>>, vector<4x2x32xf32>,
    } else {
    }
    %c0 = arith.constant 0 : index
    %c0_1 = arith.constant 0 : index
    %3 = vector.load %arg4[%c0, %c0_1] : memref<32x128xf32, #tpu.memory_space<vmem>>, vector<32x128xf32>
    %c0_2 = arith.constant 0 : index
    %c0_3 = arith.constant 0 : index
    %4 = vector.load %arg6[%c0_2, %c0_3] : memref<32x128xf32, #tpu.memory_space<vmem>>, vector<32x128xf32>
    %c0_4 = arith.constant 0 : index
    %c0_5 = arith.constant 0 : index
    %5 = vector.load %arg7[%c0_4, %c0_5] : memref<32x128xf32, #tpu.memory_space<vmem>>, vector<32x128xf32>
    %c0_6 = arith.constant 0 : index
    %c0_7 = arith.constant 0 : index
    %6 = vector.load %arg8[%c0_6, %c0_7] : memref<1x128xf32, #tpu.memory_space<vmem>>, vector<1x128xf32>
    %c0_8 = arith.constant 0 : index
    %c0_9 = arith.constant 0 : index
    %c0_10 = arith.constant 0 : index
    %7 = vector.load %arg2[%c0_8, %c0_9, %c0_10] : memref<1x16x4xf32, #tpu.memory_space<vmem>>, vector<1x16x4xf32>
    %8 = vector.shape_cast %7 : vector<1x16x4xf32> to vector<16x4xf32>
    %c0_11 = arith.constant 0 : index
    %c0_12 = arith.constant 0 : index
    %9 = vector.load %arg3[%c0_11, %c0_12] : memref<4x128xf32, #tpu.memory_space<vmem>>, vector<4x128xf32>
    %cst = arith.constant dense<0.000000e+00> : vector<16x128xf32>
    %10 = tpu.matmul %8, %9, %cst {dimension_numbers = #tpu.dot_dimension_numbers<[1], [0], [0], [1], [0, 0, 1, 1], [], []>} : vector<16x4xf32>, vector<4x128xf32>, vector<16x128xf32> -> vector<16x128xf32>
    %c0_13 = arith.constant 0 : index
    %c0_14 = arith.constant 0 : index
    %11 = vector.load %arg5[%c0_13, %c0_14] : memref<1x128xf32, #tpu.memory_space<vmem>>, vector<1x128xf32>
    %12 = vector.broadcast %11 : vector<1x128xf32> to vector<16x128xf32>
    %13 = arith.addf %10, %12 : vector<16x128xf32>
    %c0_15 = arith.constant 0 : index
    %c0_16 = arith.constant 0 : index
    %14 = vector.load %arg13[%c0_15, %c0_16] : memref<16x128xf32, #tpu.memory_space<vmem>>, vector<16x128xf32>
    tpu.vector_store %arg13[%c0_15, %c0_16], %13 {strides = array<i32>} : memref<16x128xf32, #tpu.memory_space<vmem>>, vector<16x128xf32>,
    %c0_17 = arith.constant 0 : index
    %c0_18 = arith.constant 0 : index
    %c0_19 = arith.constant 0 : index
    %15 = vector.load %arg12[%c0_17, %c0_18, %c0_19] : memref<4x2x32xf32, #tpu.memory_space<vmem>>, vector<1x2x32xf32>
    %16 = vector.shape_cast %15 : vector<1x2x32xf32> to vector<2x32xf32>
    %c1 = arith.constant 1 : index
    %c0_20 = arith.constant 0 : index
    %c0_21 = arith.constant 0 : index
    %17 = vector.load %arg12[%c1, %c0_20, %c0_21] : memref<4x2x32xf32, #tpu.memory_space<vmem>>, vector<1x2x32xf32>
    %18 = vector.shape_cast %17 : vector<1x2x32xf32> to vector<2x32xf32>
    %c2 = arith.constant 2 : index
    %c0_22 = arith.constant 0 : index
    %c0_23 = arith.constant 0 : index
    %19 = vector.load %arg12[%c2, %c0_22, %c0_23] : memref<4x2x32xf32, #tpu.memory_space<vmem>>, vector<1x2x32xf32>
    %20 = vector.shape_cast %19 : vector<1x2x32xf32> to vector<2x32xf32>
    %c3 = arith.constant 3 : index
    %c0_24 = arith.constant 0 : index
    %c0_25 = arith.constant 0 : index
    %21 = vector.load %arg12[%c3, %c0_24, %c0_25] : memref<4x2x32xf32, #tpu.memory_space<vmem>>, vector<1x2x32xf32>
    %22 = vector.shape_cast %21 : vector<1x2x32xf32> to vector<2x32xf32>
    %c0_i32_26 = arith.constant 0 : i32
    %c2_i32 = arith.constant 2 : i32
    %23 = arith.muli %c0_i32_26, %c2_i32 : i32
    %cst_27 = arith.constant dense<0.000000e+00> : vector<2x128xf32>
    %24 = tpu.matmul %20, %5, %cst_27 {dimension_numbers = #tpu.dot_dimension_numbers<[1], [0], [0], [1], [0, 0, 1, 1], [], []>} : vector<2x32xf32>, vector<32x128xf32>, vector<2x128xf32> -> vector<2x128xf32>
    %25 = arith.index_cast %23 : i32 to index
    %c0_28 = arith.constant 0 : index
    %26 = vector.load %arg13[%25, %c0_28] : memref<16x128xf32, #tpu.memory_space<vmem>>, vector<2x128xf32>
    %cst_29 = arith.constant dense<0.000000e+00> : vector<2x128xf32>
    %27 = tpu.matmul %16, %3, %cst_29 {dimension_numbers = #tpu.dot_dimension_numbers<[1], [0], [0], [1], [0, 0, 1, 1], [], []>} : vector<2x32xf32>, vector<32x128xf32>, vector<2x128xf32> -> vector<2x128xf32>
    %28 = arith.addf %26, %27 : vector<2x128xf32>
    %29 = arith.negf %28 : vector<2x128xf32>
    %30 = math.exp %29 : vector<2x128xf32>
    %cst_30 = arith.constant 1.000000e+00 : f32
    %31 = vector.broadcast %cst_30 : f32 to vector<2x128xf32>
    %32 = arith.addf %31, %30 : vector<2x128xf32>
    %33 = arith.divf %31, %32 : vector<2x128xf32>
    %34 = math.tanh %28 : vector<2x128xf32>
    %35 = vector.extract_strided_slice %33 {offsets = [0, 0], sizes = [2, 32], strides = [1, 1]} : vector<2x128xf32> to vector<2x32xf32>
    %36 = vector.extract_strided_slice %33 {offsets = [0, 32], sizes = [2, 32], strides = [1, 1]} : vector<2x128xf32> to vector<2x32xf32>
    %37 = vector.extract_strided_slice %34 {offsets = [0, 64], sizes = [2, 32], strides = [1, 1]} : vector<2x128xf32> to vector<2x32xf32>
    %38 = vector.extract_strided_slice %33 {offsets = [0, 96], sizes = [2, 32], strides = [1, 1]} : vector<2x128xf32> to vector<2x32xf32>
    %39 = arith.mulf %36, %18 : vector<2x32xf32>
    %40 = arith.mulf %35, %37 : vector<2x32xf32>
    %41 = arith.addf %39, %40 : vector<2x32xf32>
    %42 = math.tanh %41 : vector<2x32xf32>
    %43 = arith.mulf %38, %42 : vector<2x32xf32>
    %cst_31 = arith.constant dense<0.000000e+00> : vector<2x128xf32>
    %44 = tpu.matmul %43, %4, %cst_31 {dimension_numbers = #tpu.dot_dimension_numbers<[1], [0], [0], [1], [0, 0, 1, 1], [], []>} : vector<2x32xf32>, vector<32x128xf32>, vector<2x128xf32> -> vector<2x128xf32>
    %45 = arith.addf %44, %24 : vector<2x128xf32>
    %46 = vector.broadcast %6 : vector<1x128xf32> to vector<2x128xf32>
    %47 = arith.addf %45, %46 : vector<2x128xf32>
    %48 = arith.negf %47 : vector<2x128xf32>
    %49 = math.exp %48 : vector<2x128xf32>
    %cst_32 = arith.constant 1.000000e+00 : f32
    %50 = vector.broadcast %cst_32 : f32 to vector<2x128xf32>
    %51 = arith.addf %50, %49 : vector<2x128xf32>
    %52 = arith.divf %50, %51 : vector<2x128xf32>
    %53 = math.tanh %47 : vector<2x128xf32>
    %54 = vector.extract_strided_slice %52 {offsets = [0, 0], sizes = [2, 32], strides = [1, 1]} : vector<2x128xf32> to vector<2x32xf32>
    %55 = vector.extract_strided_slice %52 {offsets = [0, 32], sizes = [2, 32], strides = [1, 1]} : vector<2x128xf32> to vector<2x32xf32>
    %56 = vector.extract_strided_slice %53 {offsets = [0, 64], sizes = [2, 32], strides = [1, 1]} : vector<2x128xf32> to vector<2x32xf32>
    %57 = vector.extract_strided_slice %52 {offsets = [0, 96], sizes = [2, 32], strides = [1, 1]} : vector<2x128xf32> to vector<2x32xf32>
    %58 = arith.mulf %55, %22 : vector<2x32xf32>
    %59 = arith.mulf %54, %56 : vector<2x32xf32>
    %60 = arith.addf %58, %59 : vector<2x32xf32>
    %61 = math.tanh %60 : vector<2x32xf32>
    %62 = arith.mulf %57, %61 : vector<2x32xf32>
    %63 = arith.index_cast %23 : i32 to index
    %c0_33 = arith.constant 0 : index
    %64 = vector.load %arg14[%63, %c0_33] : memref<16x32xf32, #tpu.memory_space<vmem>>, vector<2x32xf32>
    tpu.vector_store %arg14[%63, %c0_33], %62 {strides = array<i32>} : memref<16x32xf32, #tpu.memory_space<vmem>>, vector<2x32xf32>,
    %c1_i32 = arith.constant 1 : i32
    %c2_i32_34 = arith.constant 2 : i32
    %65 = arith.muli %c1_i32, %c2_i32_34 : i32
    %cst_35 = arith.constant dense<0.000000e+00> : vector<2x128xf32>
    %66 = tpu.matmul %62, %5, %cst_35 {dimension_numbers = #tpu.dot_dimension_numbers<[1], [0], [0], [1], [0, 0, 1, 1], [], []>} : vector<2x32xf32>, vector<32x128xf32>, vector<2x128xf32> -> vector<2x128xf32>
    %67 = arith.index_cast %65 : i32 to index
    %c0_36 = arith.constant 0 : index
    %68 = vector.load %arg13[%67, %c0_36] : memref<16x128xf32, #tpu.memory_space<vmem>>, vector<2x128xf32>
    %cst_37 = arith.constant dense<0.000000e+00> : vector<2x128xf32>
    %69 = tpu.matmul %43, %3, %cst_37 {dimension_numbers = #tpu.dot_dimension_numbers<[1], [0], [0], [1], [0, 0, 1, 1], [], []>} : vector<2x32xf32>, vector<32x128xf32>, vector<2x128xf32> -> vector<2x128xf32>
    %70 = arith.addf %68, %69 : vector<2x128xf32>
    %71 = arith.negf %70 : vector<2x128xf32>
    %72 = math.exp %71 : vector<2x128xf32>
    %cst_38 = arith.constant 1.000000e+00 : f32
    %73 = vector.broadcast %cst_38 : f32 to vector<2x128xf32>
    %74 = arith.addf %73, %72 : vector<2x128xf32>
    %75 = arith.divf %73, %74 : vector<2x128xf32>
    %76 = math.tanh %70 : vector<2x128xf32>
    %77 = vector.extract_strided_slice %75 {offsets = [0, 0], sizes = [2, 32], strides = [1, 1]} : vector<2x128xf32> to vector<2x32xf32>
    %78 = vector.extract_strided_slice %75 {offsets = [0, 32], sizes = [2, 32], strides = [1, 1]} : vector<2x128xf32> to vector<2x32xf32>
    %79 = vector.extract_strided_slice %76 {offsets = [0, 64], sizes = [2, 32], strides = [1, 1]} : vector<2x128xf32> to vector<2x32xf32>
    %80 = vector.extract_strided_slice %75 {offsets = [0, 96], sizes = [2, 32], strides = [1, 1]} : vector<2x128xf32> to vector<2x32xf32>
    %81 = arith.mulf %78, %41 : vector<2x32xf32>
    %82 = arith.mulf %77, %79 : vector<2x32xf32>
    %83 = arith.addf %81, %82 : vector<2x32xf32>
    %84 = math.tanh %83 : vector<2x32xf32>
    %85 = arith.mulf %80, %84 : vector<2x32xf32>
    %cst_39 = arith.constant dense<0.000000e+00> : vector<2x128xf32>
    %86 = tpu.matmul %85, %4, %cst_39 {dimension_numbers = #tpu.dot_dimension_numbers<[1], [0], [0], [1], [0, 0, 1, 1], [], []>} : vector<2x32xf32>, vector<32x128xf32>, vector<2x128xf32> -> vector<2x128xf32>
    %87 = arith.addf %86, %66 : vector<2x128xf32>
    %88 = vector.broadcast %6 : vector<1x128xf32> to vector<2x128xf32>
    %89 = arith.addf %87, %88 : vector<2x128xf32>
    %90 = arith.negf %89 : vector<2x128xf32>
    %91 = math.exp %90 : vector<2x128xf32>
    %cst_40 = arith.constant 1.000000e+00 : f32
    %92 = vector.broadcast %cst_40 : f32 to vector<2x128xf32>
    %93 = arith.addf %92, %91 : vector<2x128xf32>
    %94 = arith.divf %92, %93 : vector<2x128xf32>
    %95 = math.tanh %89 : vector<2x128xf32>
    %96 = vector.extract_strided_slice %94 {offsets = [0, 0], sizes = [2, 32], strides = [1, 1]} : vector<2x128xf32> to vector<2x32xf32>
    %97 = vector.extract_strided_slice %94 {offsets = [0, 32], sizes = [2, 32], strides = [1, 1]} : vector<2x128xf32> to vector<2x32xf32>
    %98 = vector.extract_strided_slice %95 {offsets = [0, 64], sizes = [2, 32], strides = [1, 1]} : vector<2x128xf32> to vector<2x32xf32>
    %99 = vector.extract_strided_slice %94 {offsets = [0, 96], sizes = [2, 32], strides = [1, 1]} : vector<2x128xf32> to vector<2x32xf32>
    %100 = arith.mulf %97, %60 : vector<2x32xf32>
    %101 = arith.mulf %96, %98 : vector<2x32xf32>
    %102 = arith.addf %100, %101 : vector<2x32xf32>
    %103 = math.tanh %102 : vector<2x32xf32>
    %104 = arith.mulf %99, %103 : vector<2x32xf32>
    %105 = arith.index_cast %65 : i32 to index
    %c0_41 = arith.constant 0 : index
    %106 = vector.load %arg14[%105, %c0_41] : memref<16x32xf32, #tpu.memory_space<vmem>>, vector<2x32xf32>
    tpu.vector_store %arg14[%105, %c0_41], %104 {strides = array<i32>} : memref<16x32xf32, #tpu.memory_space<vmem>>, vector<2x32xf32>,
    %c2_i32_42 = arith.constant 2 : i32
    %c2_i32_43 = arith.constant 2 : i32
    %107 = arith.muli %c2_i32_42, %c2_i32_43 : i32
    %cst_44 = arith.constant dense<0.000000e+00> : vector<2x128xf32>
    %108 = tpu.matmul %104, %5, %cst_44 {dimension_numbers = #tpu.dot_dimension_numbers<[1], [0], [0], [1], [0, 0, 1, 1], [], []>} : vector<2x32xf32>, vector<32x128xf32>, vector<2x128xf32> -> vector<2x128xf32>
    %109 = arith.index_cast %107 : i32 to index
    %c0_45 = arith.constant 0 : index
    %110 = vector.load %arg13[%109, %c0_45] : memref<16x128xf32, #tpu.memory_space<vmem>>, vector<2x128xf32>
    %cst_46 = arith.constant dense<0.000000e+00> : vector<2x128xf32>
    %111 = tpu.matmul %85, %3, %cst_46 {dimension_numbers = #tpu.dot_dimension_numbers<[1], [0], [0], [1], [0, 0, 1, 1], [], []>} : vector<2x32xf32>, vector<32x128xf32>, vector<2x128xf32> -> vector<2x128xf32>
    %112 = arith.addf %110, %111 : vector<2x128xf32>
    %113 = arith.negf %112 : vector<2x128xf32>
    %114 = math.exp %113 : vector<2x128xf32>
    %cst_47 = arith.constant 1.000000e+00 : f32
    %115 = vector.broadcast %cst_47 : f32 to vector<2x128xf32>
    %116 = arith.addf %115, %114 : vector<2x128xf32>
    %117 = arith.divf %115, %116 : vector<2x128xf32>
    %118 = math.tanh %112 : vector<2x128xf32>
    %119 = vector.extract_strided_slice %117 {offsets = [0, 0], sizes = [2, 32], strides = [1, 1]} : vector<2x128xf32> to vector<2x32xf32>
    %120 = vector.extract_strided_slice %117 {offsets = [0, 32], sizes = [2, 32], strides = [1, 1]} : vector<2x128xf32> to vector<2x32xf32>
    %121 = vector.extract_strided_slice %118 {offsets = [0, 64], sizes = [2, 32], strides = [1, 1]} : vector<2x128xf32> to vector<2x32xf32>
    %122 = vector.extract_strided_slice %117 {offsets = [0, 96], sizes = [2, 32], strides = [1, 1]} : vector<2x128xf32> to vector<2x32xf32>
    %123 = arith.mulf %120, %83 : vector<2x32xf32>
    %124 = arith.mulf %119, %121 : vector<2x32xf32>
    %125 = arith.addf %123, %124 : vector<2x32xf32>
    %126 = math.tanh %125 : vector<2x32xf32>
    %127 = arith.mulf %122, %126 : vector<2x32xf32>
    %cst_48 = arith.constant dense<0.000000e+00> : vector<2x128xf32>
    %128 = tpu.matmul %127, %4, %cst_48 {dimension_numbers = #tpu.dot_dimension_numbers<[1], [0], [0], [1], [0, 0, 1, 1], [], []>} : vector<2x32xf32>, vector<32x128xf32>, vector<2x128xf32> -> vector<2x128xf32>
    %129 = arith.addf %128, %108 : vector<2x128xf32>
    %130 = vector.broadcast %6 : vector<1x128xf32> to vector<2x128xf32>
    %131 = arith.addf %129, %130 : vector<2x128xf32>
    %132 = arith.negf %131 : vector<2x128xf32>
    %133 = math.exp %132 : vector<2x128xf32>
    %cst_49 = arith.constant 1.000000e+00 : f32
    %134 = vector.broadcast %cst_49 : f32 to vector<2x128xf32>
    %135 = arith.addf %134, %133 : vector<2x128xf32>
    %136 = arith.divf %134, %135 : vector<2x128xf32>
    %137 = math.tanh %131 : vector<2x128xf32>
    %138 = vector.extract_strided_slice %136 {offsets = [0, 0], sizes = [2, 32], strides = [1, 1]} : vector<2x128xf32> to vector<2x32xf32>
    %139 = vector.extract_strided_slice %136 {offsets = [0, 32], sizes = [2, 32], strides = [1, 1]} : vector<2x128xf32> to vector<2x32xf32>
    %140 = vector.extract_strided_slice %137 {offsets = [0, 64], sizes = [2, 32], strides = [1, 1]} : vector<2x128xf32> to vector<2x32xf32>
    %141 = vector.extract_strided_slice %136 {offsets = [0, 96], sizes = [2, 32], strides = [1, 1]} : vector<2x128xf32> to vector<2x32xf32>
    %142 = arith.mulf %139, %102 : vector<2x32xf32>
    %143 = arith.mulf %138, %140 : vector<2x32xf32>
    %144 = arith.addf %142, %143 : vector<2x32xf32>
    %145 = math.tanh %144 : vector<2x32xf32>
    %146 = arith.mulf %141, %145 : vector<2x32xf32>
    %147 = arith.index_cast %107 : i32 to index
    %c0_50 = arith.constant 0 : index
    %148 = vector.load %arg14[%147, %c0_50] : memref<16x32xf32, #tpu.memory_space<vmem>>, vector<2x32xf32>
    tpu.vector_store %arg14[%147, %c0_50], %146 {strides = array<i32>} : memref<16x32xf32, #tpu.memory_space<vmem>>, vector<2x32xf32>,
    %c3_i32 = arith.constant 3 : i32
    %c2_i32_51 = arith.constant 2 : i32
    %149 = arith.muli %c3_i32, %c2_i32_51 : i32
    %cst_52 = arith.constant dense<0.000000e+00> : vector<2x128xf32>
    %150 = tpu.matmul %146, %5, %cst_52 {dimension_numbers = #tpu.dot_dimension_numbers<[1], [0], [0], [1], [0, 0, 1, 1], [], []>} : vector<2x32xf32>, vector<32x128xf32>, vector<2x128xf32> -> vector<2x128xf32>
    %151 = arith.index_cast %149 : i32 to index
    %c0_53 = arith.constant 0 : index
    %152 = vector.load %arg13[%151, %c0_53] : memref<16x128xf32, #tpu.memory_space<vmem>>, vector<2x128xf32>
    %cst_54 = arith.constant dense<0.000000e+00> : vector<2x128xf32>
    %153 = tpu.matmul %127, %3, %cst_54 {dimension_numbers = #tpu.dot_dimension_numbers<[1], [0], [0], [1], [0, 0, 1, 1], [], []>} : vector<2x32xf32>, vector<32x128xf32>, vector<2x128xf32> -> vector<2x128xf32>
    %154 = arith.addf %152, %153 : vector<2x128xf32>
    %155 = arith.negf %154 : vector<2x128xf32>
    %156 = math.exp %155 : vector<2x128xf32>
    %cst_55 = arith.constant 1.000000e+00 : f32
    %157 = vector.broadcast %cst_55 : f32 to vector<2x128xf32>
    %158 = arith.addf %157, %156 : vector<2x128xf32>
    %159 = arith.divf %157, %158 : vector<2x128xf32>
    %160 = math.tanh %154 : vector<2x128xf32>
    %161 = vector.extract_strided_slice %159 {offsets = [0, 0], sizes = [2, 32], strides = [1, 1]} : vector<2x128xf32> to vector<2x32xf32>
    %162 = vector.extract_strided_slice %159 {offsets = [0, 32], sizes = [2, 32], strides = [1, 1]} : vector<2x128xf32> to vector<2x32xf32>
    %163 = vector.extract_strided_slice %160 {offsets = [0, 64], sizes = [2, 32], strides = [1, 1]} : vector<2x128xf32> to vector<2x32xf32>
    %164 = vector.extract_strided_slice %159 {offsets = [0, 96], sizes = [2, 32], strides = [1, 1]} : vector<2x128xf32> to vector<2x32xf32>
    %165 = arith.mulf %162, %125 : vector<2x32xf32>
    %166 = arith.mulf %161, %163 : vector<2x32xf32>
    %167 = arith.addf %165, %166 : vector<2x32xf32>
    %168 = math.tanh %167 : vector<2x32xf32>
    %169 = arith.mulf %164, %168 : vector<2x32xf32>
    %cst_56 = arith.constant dense<0.000000e+00> : vector<2x128xf32>
    %170 = tpu.matmul %169, %4, %cst_56 {dimension_numbers = #tpu.dot_dimension_numbers<[1], [0], [0], [1], [0, 0, 1, 1], [], []>} : vector<2x32xf32>, vector<32x128xf32>, vector<2x128xf32> -> vector<2x128xf32>
    %171 = arith.addf %170, %150 : vector<2x128xf32>
    %172 = vector.broadcast %6 : vector<1x128xf32> to vector<2x128xf32>
    %173 = arith.addf %171, %172 : vector<2x128xf32>
    %174 = arith.negf %173 : vector<2x128xf32>
    %175 = math.exp %174 : vector<2x128xf32>
    %cst_57 = arith.constant 1.000000e+00 : f32
    %176 = vector.broadcast %cst_57 : f32 to vector<2x128xf32>
    %177 = arith.addf %176, %175 : vector<2x128xf32>
    %178 = arith.divf %176, %177 : vector<2x128xf32>
    %179 = math.tanh %173 : vector<2x128xf32>
    %180 = vector.extract_strided_slice %178 {offsets = [0, 0], sizes = [2, 32], strides = [1, 1]} : vector<2x128xf32> to vector<2x32xf32>
    %181 = vector.extract_strided_slice %178 {offsets = [0, 32], sizes = [2, 32], strides = [1, 1]} : vector<2x128xf32> to vector<2x32xf32>
    %182 = vector.extract_strided_slice %179 {offsets = [0, 64], sizes = [2, 32], strides = [1, 1]} : vector<2x128xf32> to vector<2x32xf32>
    %183 = vector.extract_strided_slice %178 {offsets = [0, 96], sizes = [2, 32], strides = [1, 1]} : vector<2x128xf32> to vector<2x32xf32>
    %184 = arith.mulf %181, %144 : vector<2x32xf32>
    %185 = arith.mulf %180, %182 : vector<2x32xf32>
    %186 = arith.addf %184, %185 : vector<2x32xf32>
    %187 = math.tanh %186 : vector<2x32xf32>
    %188 = arith.mulf %183, %187 : vector<2x32xf32>
    %189 = arith.index_cast %149 : i32 to index
    %c0_58 = arith.constant 0 : index
    %190 = vector.load %arg14[%189, %c0_58] : memref<16x32xf32, #tpu.memory_space<vmem>>, vector<2x32xf32>
    tpu.vector_store %arg14[%189, %c0_58], %188 {strides = array<i32>} : memref<16x32xf32, #tpu.memory_space<vmem>>, vector<2x32xf32>,
    %c4_i32 = arith.constant 4 : i32
    %c2_i32_59 = arith.constant 2 : i32
    %191 = arith.muli %c4_i32, %c2_i32_59 : i32
    %cst_60 = arith.constant dense<0.000000e+00> : vector<2x128xf32>
    %192 = tpu.matmul %188, %5, %cst_60 {dimension_numbers = #tpu.dot_dimension_numbers<[1], [0], [0], [1], [0, 0, 1, 1], [], []>} : vector<2x32xf32>, vector<32x128xf32>, vector<2x128xf32> -> vector<2x128xf32>
    %193 = arith.index_cast %191 : i32 to index
    %c0_61 = arith.constant 0 : index
    %194 = vector.load %arg13[%193, %c0_61] : memref<16x128xf32, #tpu.memory_space<vmem>>, vector<2x128xf32>
    %cst_62 = arith.constant dense<0.000000e+00> : vector<2x128xf32>
    %195 = tpu.matmul %169, %3, %cst_62 {dimension_numbers = #tpu.dot_dimension_numbers<[1], [0], [0], [1], [0, 0, 1, 1], [], []>} : vector<2x32xf32>, vector<32x128xf32>, vector<2x128xf32> -> vector<2x128xf32>
    %196 = arith.addf %194, %195 : vector<2x128xf32>
    %197 = arith.negf %196 : vector<2x128xf32>
    %198 = math.exp %197 : vector<2x128xf32>
    %cst_63 = arith.constant 1.000000e+00 : f32
    %199 = vector.broadcast %cst_63 : f32 to vector<2x128xf32>
    %200 = arith.addf %199, %198 : vector<2x128xf32>
    %201 = arith.divf %199, %200 : vector<2x128xf32>
    %202 = math.tanh %196 : vector<2x128xf32>
    %203 = vector.extract_strided_slice %201 {offsets = [0, 0], sizes = [2, 32], strides = [1, 1]} : vector<2x128xf32> to vector<2x32xf32>
    %204 = vector.extract_strided_slice %201 {offsets = [0, 32], sizes = [2, 32], strides = [1, 1]} : vector<2x128xf32> to vector<2x32xf32>
    %205 = vector.extract_strided_slice %202 {offsets = [0, 64], sizes = [2, 32], strides = [1, 1]} : vector<2x128xf32> to vector<2x32xf32>
    %206 = vector.extract_strided_slice %201 {offsets = [0, 96], sizes = [2, 32], strides = [1, 1]} : vector<2x128xf32> to vector<2x32xf32>
    %207 = arith.mulf %204, %167 : vector<2x32xf32>
    %208 = arith.mulf %203, %205 : vector<2x32xf32>
    %209 = arith.addf %207, %208 : vector<2x32xf32>
    %210 = math.tanh %209 : vector<2x32xf32>
    %211 = arith.mulf %206, %210 : vector<2x32xf32>
    %cst_64 = arith.constant dense<0.000000e+00> : vector<2x128xf32>
    %212 = tpu.matmul %211, %4, %cst_64 {dimension_numbers = #tpu.dot_dimension_numbers<[1], [0], [0], [1], [0, 0, 1, 1], [], []>} : vector<2x32xf32>, vector<32x128xf32>, vector<2x128xf32> -> vector<2x128xf32>
    %213 = arith.addf %212, %192 : vector<2x128xf32>
    %214 = vector.broadcast %6 : vector<1x128xf32> to vector<2x128xf32>
    %215 = arith.addf %213, %214 : vector<2x128xf32>
    %216 = arith.negf %215 : vector<2x128xf32>
    %217 = math.exp %216 : vector<2x128xf32>
    %cst_65 = arith.constant 1.000000e+00 : f32
    %218 = vector.broadcast %cst_65 : f32 to vector<2x128xf32>
    %219 = arith.addf %218, %217 : vector<2x128xf32>
    %220 = arith.divf %218, %219 : vector<2x128xf32>
    %221 = math.tanh %215 : vector<2x128xf32>
    %222 = vector.extract_strided_slice %220 {offsets = [0, 0], sizes = [2, 32], strides = [1, 1]} : vector<2x128xf32> to vector<2x32xf32>
    %223 = vector.extract_strided_slice %220 {offsets = [0, 32], sizes = [2, 32], strides = [1, 1]} : vector<2x128xf32> to vector<2x32xf32>
    %224 = vector.extract_strided_slice %221 {offsets = [0, 64], sizes = [2, 32], strides = [1, 1]} : vector<2x128xf32> to vector<2x32xf32>
    %225 = vector.extract_strided_slice %220 {offsets = [0, 96], sizes = [2, 32], strides = [1, 1]} : vector<2x128xf32> to vector<2x32xf32>
    %226 = arith.mulf %223, %186 : vector<2x32xf32>
    %227 = arith.mulf %222, %224 : vector<2x32xf32>
    %228 = arith.addf %226, %227 : vector<2x32xf32>
    %229 = math.tanh %228 : vector<2x32xf32>
    %230 = arith.mulf %225, %229 : vector<2x32xf32>
    %231 = arith.index_cast %191 : i32 to index
    %c0_66 = arith.constant 0 : index
    %232 = vector.load %arg14[%231, %c0_66] : memref<16x32xf32, #tpu.memory_space<vmem>>, vector<2x32xf32>
    tpu.vector_store %arg14[%231, %c0_66], %230 {strides = array<i32>} : memref<16x32xf32, #tpu.memory_space<vmem>>, vector<2x32xf32>,
    %c5_i32 = arith.constant 5 : i32
    %c2_i32_67 = arith.constant 2 : i32
    %233 = arith.muli %c5_i32, %c2_i32_67 : i32
    %cst_68 = arith.constant dense<0.000000e+00> : vector<2x128xf32>
    %234 = tpu.matmul %230, %5, %cst_68 {dimension_numbers = #tpu.dot_dimension_numbers<[1], [0], [0], [1], [0, 0, 1, 1], [], []>} : vector<2x32xf32>, vector<32x128xf32>, vector<2x128xf32> -> vector<2x128xf32>
    %235 = arith.index_cast %233 : i32 to index
    %c0_69 = arith.constant 0 : index
    %236 = vector.load %arg13[%235, %c0_69] : memref<16x128xf32, #tpu.memory_space<vmem>>, vector<2x128xf32>
    %cst_70 = arith.constant dense<0.000000e+00> : vector<2x128xf32>
    %237 = tpu.matmul %211, %3, %cst_70 {dimension_numbers = #tpu.dot_dimension_numbers<[1], [0], [0], [1], [0, 0, 1, 1], [], []>} : vector<2x32xf32>, vector<32x128xf32>, vector<2x128xf32> -> vector<2x128xf32>
    %238 = arith.addf %236, %237 : vector<2x128xf32>
    %239 = arith.negf %238 : vector<2x128xf32>
    %240 = math.exp %239 : vector<2x128xf32>
    %cst_71 = arith.constant 1.000000e+00 : f32
    %241 = vector.broadcast %cst_71 : f32 to vector<2x128xf32>
    %242 = arith.addf %241, %240 : vector<2x128xf32>
    %243 = arith.divf %241, %242 : vector<2x128xf32>
    %244 = math.tanh %238 : vector<2x128xf32>
    %245 = vector.extract_strided_slice %243 {offsets = [0, 0], sizes = [2, 32], strides = [1, 1]} : vector<2x128xf32> to vector<2x32xf32>
    %246 = vector.extract_strided_slice %243 {offsets = [0, 32], sizes = [2, 32], strides = [1, 1]} : vector<2x128xf32> to vector<2x32xf32>
    %247 = vector.extract_strided_slice %244 {offsets = [0, 64], sizes = [2, 32], strides = [1, 1]} : vector<2x128xf32> to vector<2x32xf32>
    %248 = vector.extract_strided_slice %243 {offsets = [0, 96], sizes = [2, 32], strides = [1, 1]} : vector<2x128xf32> to vector<2x32xf32>
    %249 = arith.mulf %246, %209 : vector<2x32xf32>
    %250 = arith.mulf %245, %247 : vector<2x32xf32>
    %251 = arith.addf %249, %250 : vector<2x32xf32>
    %252 = math.tanh %251 : vector<2x32xf32>
    %253 = arith.mulf %248, %252 : vector<2x32xf32>
    %cst_72 = arith.constant dense<0.000000e+00> : vector<2x128xf32>
    %254 = tpu.matmul %253, %4, %cst_72 {dimension_numbers = #tpu.dot_dimension_numbers<[1], [0], [0], [1], [0, 0, 1, 1], [], []>} : vector<2x32xf32>, vector<32x128xf32>, vector<2x128xf32> -> vector<2x128xf32>
    %255 = arith.addf %254, %234 : vector<2x128xf32>
    %256 = vector.broadcast %6 : vector<1x128xf32> to vector<2x128xf32>
    %257 = arith.addf %255, %256 : vector<2x128xf32>
    %258 = arith.negf %257 : vector<2x128xf32>
    %259 = math.exp %258 : vector<2x128xf32>
    %cst_73 = arith.constant 1.000000e+00 : f32
    %260 = vector.broadcast %cst_73 : f32 to vector<2x128xf32>
    %261 = arith.addf %260, %259 : vector<2x128xf32>
    %262 = arith.divf %260, %261 : vector<2x128xf32>
    %263 = math.tanh %257 : vector<2x128xf32>
    %264 = vector.extract_strided_slice %262 {offsets = [0, 0], sizes = [2, 32], strides = [1, 1]} : vector<2x128xf32> to vector<2x32xf32>
    %265 = vector.extract_strided_slice %262 {offsets = [0, 32], sizes = [2, 32], strides = [1, 1]} : vector<2x128xf32> to vector<2x32xf32>
    %266 = vector.extract_strided_slice %263 {offsets = [0, 64], sizes = [2, 32], strides = [1, 1]} : vector<2x128xf32> to vector<2x32xf32>
    %267 = vector.extract_strided_slice %262 {offsets = [0, 96], sizes = [2, 32], strides = [1, 1]} : vector<2x128xf32> to vector<2x32xf32>
    %268 = arith.mulf %265, %228 : vector<2x32xf32>
    %269 = arith.mulf %264, %266 : vector<2x32xf32>
    %270 = arith.addf %268, %269 : vector<2x32xf32>
    %271 = math.tanh %270 : vector<2x32xf32>
    %272 = arith.mulf %267, %271 : vector<2x32xf32>
    %273 = arith.index_cast %233 : i32 to index
    %c0_74 = arith.constant 0 : index
    %274 = vector.load %arg14[%273, %c0_74] : memref<16x32xf32, #tpu.memory_space<vmem>>, vector<2x32xf32>
    tpu.vector_store %arg14[%273, %c0_74], %272 {strides = array<i32>} : memref<16x32xf32, #tpu.memory_space<vmem>>, vector<2x32xf32>,
    %c6_i32 = arith.constant 6 : i32
    %c2_i32_75 = arith.constant 2 : i32
    %275 = arith.muli %c6_i32, %c2_i32_75 : i32
    %cst_76 = arith.constant dense<0.000000e+00> : vector<2x128xf32>
    %276 = tpu.matmul %272, %5, %cst_76 {dimension_numbers = #tpu.dot_dimension_numbers<[1], [0], [0], [1], [0, 0, 1, 1], [], []>} : vector<2x32xf32>, vector<32x128xf32>, vector<2x128xf32> -> vector<2x128xf32>
    %277 = arith.index_cast %275 : i32 to index
    %c0_77 = arith.constant 0 : index
    %278 = vector.load %arg13[%277, %c0_77] : memref<16x128xf32, #tpu.memory_space<vmem>>, vector<2x128xf32>
    %cst_78 = arith.constant dense<0.000000e+00> : vector<2x128xf32>
    %279 = tpu.matmul %253, %3, %cst_78 {dimension_numbers = #tpu.dot_dimension_numbers<[1], [0], [0], [1], [0, 0, 1, 1], [], []>} : vector<2x32xf32>, vector<32x128xf32>, vector<2x128xf32> -> vector<2x128xf32>
    %280 = arith.addf %278, %279 : vector<2x128xf32>
    %281 = arith.negf %280 : vector<2x128xf32>
    %282 = math.exp %281 : vector<2x128xf32>
    %cst_79 = arith.constant 1.000000e+00 : f32
    %283 = vector.broadcast %cst_79 : f32 to vector<2x128xf32>
    %284 = arith.addf %283, %282 : vector<2x128xf32>
    %285 = arith.divf %283, %284 : vector<2x128xf32>
    %286 = math.tanh %280 : vector<2x128xf32>
    %287 = vector.extract_strided_slice %285 {offsets = [0, 0], sizes = [2, 32], strides = [1, 1]} : vector<2x128xf32> to vector<2x32xf32>
    %288 = vector.extract_strided_slice %285 {offsets = [0, 32], sizes = [2, 32], strides = [1, 1]} : vector<2x128xf32> to vector<2x32xf32>
    %289 = vector.extract_strided_slice %286 {offsets = [0, 64], sizes = [2, 32], strides = [1, 1]} : vector<2x128xf32> to vector<2x32xf32>
    %290 = vector.extract_strided_slice %285 {offsets = [0, 96], sizes = [2, 32], strides = [1, 1]} : vector<2x128xf32> to vector<2x32xf32>
    %291 = arith.mulf %288, %251 : vector<2x32xf32>
    %292 = arith.mulf %287, %289 : vector<2x32xf32>
    %293 = arith.addf %291, %292 : vector<2x32xf32>
    %294 = math.tanh %293 : vector<2x32xf32>
    %295 = arith.mulf %290, %294 : vector<2x32xf32>
    %cst_80 = arith.constant dense<0.000000e+00> : vector<2x128xf32>
    %296 = tpu.matmul %295, %4, %cst_80 {dimension_numbers = #tpu.dot_dimension_numbers<[1], [0], [0], [1], [0, 0, 1, 1], [], []>} : vector<2x32xf32>, vector<32x128xf32>, vector<2x128xf32> -> vector<2x128xf32>
    %297 = arith.addf %296, %276 : vector<2x128xf32>
    %298 = vector.broadcast %6 : vector<1x128xf32> to vector<2x128xf32>
    %299 = arith.addf %297, %298 : vector<2x128xf32>
    %300 = arith.negf %299 : vector<2x128xf32>
    %301 = math.exp %300 : vector<2x128xf32>
    %cst_81 = arith.constant 1.000000e+00 : f32
    %302 = vector.broadcast %cst_81 : f32 to vector<2x128xf32>
    %303 = arith.addf %302, %301 : vector<2x128xf32>
    %304 = arith.divf %302, %303 : vector<2x128xf32>
    %305 = math.tanh %299 : vector<2x128xf32>
    %306 = vector.extract_strided_slice %304 {offsets = [0, 0], sizes = [2, 32], strides = [1, 1]} : vector<2x128xf32> to vector<2x32xf32>
    %307 = vector.extract_strided_slice %304 {offsets = [0, 32], sizes = [2, 32], strides = [1, 1]} : vector<2x128xf32> to vector<2x32xf32>
    %308 = vector.extract_strided_slice %305 {offsets = [0, 64], sizes = [2, 32], strides = [1, 1]} : vector<2x128xf32> to vector<2x32xf32>
    %309 = vector.extract_strided_slice %304 {offsets = [0, 96], sizes = [2, 32], strides = [1, 1]} : vector<2x128xf32> to vector<2x32xf32>
    %310 = arith.mulf %307, %270 : vector<2x32xf32>
    %311 = arith.mulf %306, %308 : vector<2x32xf32>
    %312 = arith.addf %310, %311 : vector<2x32xf32>
    %313 = math.tanh %312 : vector<2x32xf32>
    %314 = arith.mulf %309, %313 : vector<2x32xf32>
    %315 = arith.index_cast %275 : i32 to index
    %c0_82 = arith.constant 0 : index
    %316 = vector.load %arg14[%315, %c0_82] : memref<16x32xf32, #tpu.memory_space<vmem>>, vector<2x32xf32>
    tpu.vector_store %arg14[%315, %c0_82], %314 {strides = array<i32>} : memref<16x32xf32, #tpu.memory_space<vmem>>, vector<2x32xf32>,
    %c7_i32 = arith.constant 7 : i32
    %c2_i32_83 = arith.constant 2 : i32
    %317 = arith.muli %c7_i32, %c2_i32_83 : i32
    %cst_84 = arith.constant dense<0.000000e+00> : vector<2x128xf32>
    %318 = tpu.matmul %314, %5, %cst_84 {dimension_numbers = #tpu.dot_dimension_numbers<[1], [0], [0], [1], [0, 0, 1, 1], [], []>} : vector<2x32xf32>, vector<32x128xf32>, vector<2x128xf32> -> vector<2x128xf32>
    %319 = arith.index_cast %317 : i32 to index
    %c0_85 = arith.constant 0 : index
    %320 = vector.load %arg13[%319, %c0_85] : memref<16x128xf32, #tpu.memory_space<vmem>>, vector<2x128xf32>
    %cst_86 = arith.constant dense<0.000000e+00> : vector<2x128xf32>
    %321 = tpu.matmul %295, %3, %cst_86 {dimension_numbers = #tpu.dot_dimension_numbers<[1], [0], [0], [1], [0, 0, 1, 1], [], []>} : vector<2x32xf32>, vector<32x128xf32>, vector<2x128xf32> -> vector<2x128xf32>
    %322 = arith.addf %320, %321 : vector<2x128xf32>
    %323 = arith.negf %322 : vector<2x128xf32>
    %324 = math.exp %323 : vector<2x128xf32>
    %cst_87 = arith.constant 1.000000e+00 : f32
    %325 = vector.broadcast %cst_87 : f32 to vector<2x128xf32>
    %326 = arith.addf %325, %324 : vector<2x128xf32>
    %327 = arith.divf %325, %326 : vector<2x128xf32>
    %328 = math.tanh %322 : vector<2x128xf32>
    %329 = vector.extract_strided_slice %327 {offsets = [0, 0], sizes = [2, 32], strides = [1, 1]} : vector<2x128xf32> to vector<2x32xf32>
    %330 = vector.extract_strided_slice %327 {offsets = [0, 32], sizes = [2, 32], strides = [1, 1]} : vector<2x128xf32> to vector<2x32xf32>
    %331 = vector.extract_strided_slice %328 {offsets = [0, 64], sizes = [2, 32], strides = [1, 1]} : vector<2x128xf32> to vector<2x32xf32>
    %332 = vector.extract_strided_slice %327 {offsets = [0, 96], sizes = [2, 32], strides = [1, 1]} : vector<2x128xf32> to vector<2x32xf32>
    %333 = arith.mulf %330, %293 : vector<2x32xf32>
    %334 = arith.mulf %329, %331 : vector<2x32xf32>
    %335 = arith.addf %333, %334 : vector<2x32xf32>
    %336 = math.tanh %335 : vector<2x32xf32>
    %337 = arith.mulf %332, %336 : vector<2x32xf32>
    %cst_88 = arith.constant dense<0.000000e+00> : vector<2x128xf32>
    %338 = tpu.matmul %337, %4, %cst_88 {dimension_numbers = #tpu.dot_dimension_numbers<[1], [0], [0], [1], [0, 0, 1, 1], [], []>} : vector<2x32xf32>, vector<32x128xf32>, vector<2x128xf32> -> vector<2x128xf32>
    %339 = arith.addf %338, %318 : vector<2x128xf32>
    %340 = vector.broadcast %6 : vector<1x128xf32> to vector<2x128xf32>
    %341 = arith.addf %339, %340 : vector<2x128xf32>
    %342 = arith.negf %341 : vector<2x128xf32>
    %343 = math.exp %342 : vector<2x128xf32>
    %cst_89 = arith.constant 1.000000e+00 : f32
    %344 = vector.broadcast %cst_89 : f32 to vector<2x128xf32>
    %345 = arith.addf %344, %343 : vector<2x128xf32>
    %346 = arith.divf %344, %345 : vector<2x128xf32>
    %347 = math.tanh %341 : vector<2x128xf32>
    %348 = vector.extract_strided_slice %346 {offsets = [0, 0], sizes = [2, 32], strides = [1, 1]} : vector<2x128xf32> to vector<2x32xf32>
    %349 = vector.extract_strided_slice %346 {offsets = [0, 32], sizes = [2, 32], strides = [1, 1]} : vector<2x128xf32> to vector<2x32xf32>
    %350 = vector.extract_strided_slice %347 {offsets = [0, 64], sizes = [2, 32], strides = [1, 1]} : vector<2x128xf32> to vector<2x32xf32>
    %351 = vector.extract_strided_slice %346 {offsets = [0, 96], sizes = [2, 32], strides = [1, 1]} : vector<2x128xf32> to vector<2x32xf32>
    %352 = arith.mulf %349, %312 : vector<2x32xf32>
    %353 = arith.mulf %348, %350 : vector<2x32xf32>
    %354 = arith.addf %352, %353 : vector<2x32xf32>
    %355 = math.tanh %354 : vector<2x32xf32>
    %356 = arith.mulf %351, %355 : vector<2x32xf32>
    %357 = arith.index_cast %317 : i32 to index
    %c0_90 = arith.constant 0 : index
    %358 = vector.load %arg14[%357, %c0_90] : memref<16x32xf32, #tpu.memory_space<vmem>>, vector<2x32xf32>
    tpu.vector_store %arg14[%357, %c0_90], %356 {strides = array<i32>} : memref<16x32xf32, #tpu.memory_space<vmem>>, vector<2x32xf32>,
    %c8_i32 = arith.constant 8 : i32
    %c0_91 = arith.constant 0 : index
    %c0_92 = arith.constant 0 : index
    %c0_93 = arith.constant 0 : index
    %359 = vector.load %arg12[%c0_91, %c0_92, %c0_93] : memref<4x2x32xf32, #tpu.memory_space<vmem>>, vector<1x2x32xf32>
    %360 = vector.shape_cast %359 : vector<1x2x32xf32> to vector<2x32xf32>
    %361 = vector.shape_cast %337 : vector<2x32xf32> to vector<1x2x32xf32>
    tpu.vector_store %arg12[%c0_91, %c0_92, %c0_93], %361 {strides = array<i32>} : memref<4x2x32xf32, #tpu.memory_space<vmem>>, vector<1x2x32xf32>,
    %c1_94 = arith.constant 1 : index
    %c0_95 = arith.constant 0 : index
    %c0_96 = arith.constant 0 : index
    %362 = vector.load %arg12[%c1_94, %c0_95, %c0_96] : memref<4x2x32xf32, #tpu.memory_space<vmem>>, vector<1x2x32xf32>
    %363 = vector.shape_cast %362 : vector<1x2x32xf32> to vector<2x32xf32>
    %364 = vector.shape_cast %335 : vector<2x32xf32> to vector<1x2x32xf32>
    tpu.vector_store %arg12[%c1_94, %c0_95, %c0_96], %364 {strides = array<i32>} : memref<4x2x32xf32, #tpu.memory_space<vmem>>, vector<1x2x32xf32>,
    %c2_97 = arith.constant 2 : index
    %c0_98 = arith.constant 0 : index
    %c0_99 = arith.constant 0 : index
    %365 = vector.load %arg12[%c2_97, %c0_98, %c0_99] : memref<4x2x32xf32, #tpu.memory_space<vmem>>, vector<1x2x32xf32>
    %366 = vector.shape_cast %365 : vector<1x2x32xf32> to vector<2x32xf32>
    %367 = vector.shape_cast %356 : vector<2x32xf32> to vector<1x2x32xf32>
    tpu.vector_store %arg12[%c2_97, %c0_98, %c0_99], %367 {strides = array<i32>} : memref<4x2x32xf32, #tpu.memory_space<vmem>>, vector<1x2x32xf32>,
    %c3_100 = arith.constant 3 : index
    %c0_101 = arith.constant 0 : index
    %c0_102 = arith.constant 0 : index
    %368 = vector.load %arg12[%c3_100, %c0_101, %c0_102] : memref<4x2x32xf32, #tpu.memory_space<vmem>>, vector<1x2x32xf32>
    %369 = vector.shape_cast %368 : vector<1x2x32xf32> to vector<2x32xf32>
    %370 = vector.shape_cast %354 : vector<2x32xf32> to vector<1x2x32xf32>
    tpu.vector_store %arg12[%c3_100, %c0_101, %c0_102], %370 {strides = array<i32>} : memref<4x2x32xf32, #tpu.memory_space<vmem>>, vector<1x2x32xf32>,
    %c0_103 = arith.constant 0 : index
    %c0_104 = arith.constant 0 : index
    %371 = vector.load %arg14[%c0_103, %c0_104] : memref<16x32xf32, #tpu.memory_space<vmem>>, vector<16x32xf32>
    %c0_105 = arith.constant 0 : index
    %c0_106 = arith.constant 0 : index
    %372 = vector.load %arg9[%c0_105, %c0_106] : memref<32x128xf32, #tpu.memory_space<vmem>>, vector<32x128xf32>
    %cst_107 = arith.constant dense<0.000000e+00> : vector<16x128xf32>
    %373 = tpu.matmul %371, %372, %cst_107 {dimension_numbers = #tpu.dot_dimension_numbers<[1], [0], [0], [1], [0, 0, 1, 1], [], []>} : vector<16x32xf32>, vector<32x128xf32>, vector<16x128xf32> -> vector<16x128xf32>
    %c0_108 = arith.constant 0 : index
    %c0_109 = arith.constant 0 : index
    %374 = vector.load %arg10[%c0_108, %c0_109] : memref<1x128xf32, #tpu.memory_space<vmem>>, vector<1x128xf32>
    %375 = vector.broadcast %374 : vector<1x128xf32> to vector<16x128xf32>
    %376 = arith.addf %373, %375 : vector<16x128xf32>
    %c0_110 = arith.constant 0 : index
    %c0_111 = arith.constant 0 : index
    %c0_112 = arith.constant 0 : index
    %377 = vector.load %arg11[%c0_110, %c0_111, %c0_112] : memref<1x16x128xf32, #tpu.memory_space<vmem>>, vector<1x16x128xf32>
    %378 = vector.shape_cast %377 : vector<1x16x128xf32> to vector<16x128xf32>
    %379 = vector.shape_cast %376 : vector<16x128xf32> to vector<1x16x128xf32>
    tpu.vector_store %arg11[%c0_110, %c0_111, %c0_112], %379 {strides = array<i32>} : memref<1x16x128xf32, #tpu.memory_space<vmem>>, vector<1x16x128xf32>,
    return
  }
  func.func @transform_0(%arg0: i32, %arg1: i32) -> (i32, i32, i32) {
    %c0_i32 = arith.constant 0 : i32
    %c0_i32_0 = arith.constant 0 : i32
    return %arg0, %arg1, %c0_i32 : i32, i32, i32
  }
  func.func @transform_1(%arg0: i32, %arg1: i32) -> (i32, i32) {
    %c0_i32 = arith.constant 0 : i32
    %c0_i32_0 = arith.constant 0 : i32
    %c0_i32_1 = arith.constant 0 : i32
    return %c0_i32, %c0_i32_0 : i32, i32
  }
  func.func @transform_2(%arg0: i32, %arg1: i32) -> (i32, i32) {
    %c0_i32 = arith.constant 0 : i32
    %c0_i32_0 = arith.constant 0 : i32
    %c0_i32_1 = arith.constant 0 : i32
    return %c0_i32, %c0_i32_0 : i32, i32
  }
  func.func @transform_3(%arg0: i32, %arg1: i32) -> (i32, i32) {
    %c0_i32 = arith.constant 0 : i32
    %c0_i32_0 = arith.constant 0 : i32
    %c0_i32_1 = arith.constant 0 : i32
    return %c0_i32, %c0_i32_0 : i32, i32
  }
  func.func @transform_4(%arg0: i32, %arg1: i32) -> (i32, i32) {
    %c0_i32 = arith.constant 0 : i32
    %c0_i32_0 = arith.constant 0 : i32
    %c0_i32_1 = arith.constant 0 : i32
    return %c0_i32, %c0_i32_0 : i32, i32
  }
  func.func @transform_5(%arg0: i32, %arg1: i32) -> (i32, i32) {
    %c0_i32 = arith.constant 0 : i32
    %c0_i32_0 = arith.constant 0 : i32
    %c0_i32_1 = arith.constant 0 : i32
    return %c0_i32, %c0_i32_0 : i32, i32
  }
  func.func @transform_6(%arg0: i32, %arg1: i32) -> (i32, i32) {
    %c0_i32 = arith.constant 0 : i32
    %c0_i32_0 = arith.constant 0 : i32
    %c0_i32_1 = arith.constant 0 : i32
    return %c0_i32, %c0_i32_0 : i32, i32
  }
  func.func @transform_7(%arg0: i32, %arg1: i32) -> (i32, i32) {
    %c0_i32 = arith.constant 0 : i32
    %c0_i32_0 = arith.constant 0 : i32
    %c0_i32_1 = arith.constant 0 : i32
    return %c0_i32, %c0_i32_0 : i32, i32
  }
  func.func @transform_8(%arg0: i32, %arg1: i32) -> (i32, i32) {
    %c0_i32 = arith.constant 0 : i32
    %c0_i32_0 = arith.constant 0 : i32
    %c0_i32_1 = arith.constant 0 : i32
    return %c0_i32, %c0_i32_0 : i32, i32
  }
  func.func @transform_9(%arg0: i32, %arg1: i32) -> (i32, i32, i32) {
    %c0_i32 = arith.constant 0 : i32
    %c0_i32_0 = arith.constant 0 : i32
    return %arg0, %arg1, %c0_i32 : i32, i32, i32
  }
}

</mosaic_0001>

<llo_original>
// kernel: tpu_custom_call.1
$region0: #{tpu_custom_call.1}
  #allocation0 [shape = 'u32[]', space=smem, size = 0x4, offset = 0x4, fixed_abs, tag = 'smem constant byte address 0x4 - core index']
  #allocation1 [shape = 'u32[144,128]{1,0:T(1,128)}', space=vmem, size = 0x12000, scoped, tag = 'internal scratch']
  #allocation2 [shape = 'f32[4,2,32]{2,1,0:T(2,128)}', space=vmem, size = 0x1000, scoped, tag = 'scratch operand']
  #allocation3 [shape = 'f32[16,128]{1,0:T(8,128)}', space=vmem, size = 0x2000, scoped, tag = 'scratch operand']
  #allocation4 [shape = 'f32[16,32]{1,0:T(8,128)}', space=vmem, size = 0x2000, scoped, tag = 'scratch operand']
  %s0 = inlined_call_operand.vmem [shape: f32[1,16,4], index: 0, kind: input, shape index: {}]
  %s1 = inlined_call_operand.hbm [shape: f32[4,128], index: 1, kind: input, shape index: {}]
  %s2 = inlined_call_operand.hbm [shape: f32[32,128], index: 2, kind: input, shape index: {}]
  %s3 = inlined_call_operand.hbm [shape: f32[1,128], index: 3, kind: input, shape index: {}]
  %s4 = inlined_call_operand.hbm [shape: f32[32,128], index: 4, kind: input, shape index: {}]
  %s5 = inlined_call_operand.hbm [shape: f32[32,128], index: 5, kind: input, shape index: {}]
  %s6 = inlined_call_operand.hbm [shape: f32[1,128], index: 6, kind: input, shape index: {}]
  %s7 = inlined_call_operand.vmem [shape: f32[32,128], index: 7, kind: input, shape index: {}]
  %s8 = inlined_call_operand.vmem [shape: f32[1,128], index: 8, kind: input, shape index: {}]
  %s9 = inlined_call_operand.hbm [shape: f32[1,16,128], index: 9, kind: output, shape index: {}]
  %s10 = sld [smem:[#allocation0]]
  $region74: #{tpu_custom_call.1} parent=0
    _
  %s12 = ssub.s32 1, %s10
  %s13 = scalar_select 0, %s12, %s10
  $region1: #{tpu_custom_call.1} parent=0
    #allocation5 [shape = 'u8[2048]{0}', space=vmem, size = 0x800, scoped, tag = 'input window, operand 1, single buffered']
    #allocation6 [shape = 's32[1]{0}', space=sflag, size = 0x4, scoped, tag = 'scoped memory for tpu_custom_call.1']
    #allocation7 [shape = 's32[1]{0}', space=sflag, size = 0x4, scoped, tag = 'scoped memory for tpu_custom_call.1']
    #allocation8 [shape = 'u8[16384]{0}', space=vmem, size = 0x4000, scoped, tag = 'input window, operand 2, single buffered']
    #allocation9 [shape = 's32[1]{0}', space=sflag, size = 0x4, scoped, tag = 'scoped memory for tpu_custom_call.1']
    #allocation10 [shape = 'u8[512]{0}', space=vmem, size = 0x400, scoped, tag = 'input window, operand 3, single buffered']
    #allocation11 [shape = 'u8[16384]{0}', space=vmem, size = 0x4000, scoped, tag = 'input window, operand 4, single buffered']
    #allocation12 [shape = 's32[1]{0}', space=sflag, size = 0x4, scoped, tag = 'scoped memory for tpu_custom_call.1']
    #allocation13 [shape = 'u8[16384]{0}', space=vmem, size = 0x4000, scoped, tag = 'input window, operand 5, single buffered']
    #allocation14 [shape = 'u8[512]{0}', space=vmem, size = 0x400, scoped, tag = 'input window, operand 6, single buffered']
    #allocation15 [shape = 's32[1]{0}', space=sflag, size = 0x4, scoped, tag = 'scoped memory for tpu_custom_call.1']
    #allocation16 [shape = 'u8[8192]{0}', space=vmem, size = 0x2000, scoped, tag = 'output window, operand 0, single buffered']
    %14 = vsyncpa [#allocation6], 0
    %15 = vsyncpa [#allocation9], 0
    %16 = vsyncpa [#allocation12], 0
    %17 = vsyncpa [#allocation15], 0
    %18 = vsyncpa [#allocation7], 0
    // Predicated region
    $region2: #{tpu_custom_call.1} parent=1 // pred_check
      _
    $region3: #{tpu_custom_call.1} parent=1 // pred_check_branch
      %20 = sbr.rel (0) target = $region5
    $region4: #{tpu_custom_call.1} parent=1 // pred_region
      _
    $region5: #{tpu_custom_call.1} parent=1 // pred_fallthru
      _
    // Predicated region
    $region6: #{tpu_custom_call.1} parent=1 // pred_check
      _
    $region7: #{tpu_custom_call.1} parent=1 // pred_check_branch
      %22 = sbr.rel (0) target = $region9
    $region8: #{tpu_custom_call.1} parent=1 // pred_region
      %s24 = ssub.s32 64, 64
      %25 = vsyncadd [#allocation6], %s24
      %s27 = sshll.u32 [#allocation5], 4
      %s28 = int_to_ptr.vmem [resolvable:$true] %s27
      %30 = dma.hbm_to_vmem [thread:$0]  %s1, 64, %s28, [#allocation6]
    $region9: #{tpu_custom_call.1} parent=1 // pred_fallthru
      _
    // Predicated region
    $region10: #{tpu_custom_call.1} parent=1 // pred_check
      _
    $region11: #{tpu_custom_call.1} parent=1 // pred_check_branch
      %32 = sbr.rel (0) target = $region13
    $region12: #{tpu_custom_call.1} parent=1 // pred_region
      %s34 = ssub.s32 512, 512
      %35 = vsyncadd [#allocation9], %s34
      %s36 = sshll.u32 [#allocation8], 4
      %s37 = int_to_ptr.vmem [resolvable:$true] %s36
      %42 = dma.hbm_to_vmem [thread:$0]  %s2, 512, %s37, [#allocation9], 128, 128, 8
    $region13: #{tpu_custom_call.1} parent=1 // pred_fallthru
      _
    // Predicated region
    $region14: #{tpu_custom_call.1} parent=1 // pred_check
      _
    $region15: #{tpu_custom_call.1} parent=1 // pred_check_branch
      %44 = sbr.rel (0) target = $region17
    $region16: #{tpu_custom_call.1} parent=1 // pred_region
      %s46 = ssub.s32 16, 16
      %47 = vsyncadd [#allocation9], %s46
      %s49 = sshll.u32 [#allocation10], 4
      %s50 = int_to_ptr.vmem [resolvable:$true] %s49
      %52 = dma.hbm_to_vmem [thread:$0]  %s3, 16, %s50, [#allocation9]
    $region17: #{tpu_custom_call.1} parent=1 // pred_fallthru
      _
    // Predicated region
    $region18: #{tpu_custom_call.1} parent=1 // pred_check
      _
    $region19: #{tpu_custom_call.1} parent=1 // pred_check_branch
      %54 = sbr.rel (0) target = $region21
    $region20: #{tpu_custom_call.1} parent=1 // pred_region
      %s56 = ssub.s32 512, 512
      %57 = vsyncadd [#allocation12], %s56
      %s58 = sshll.u32 [#allocation11], 4
      %s59 = int_to_ptr.vmem [resolvable:$true] %s58
      %64 = dma.hbm_to_vmem [thread:$0]  %s4, 512, %s59, [#allocation12], 128, 128, 8
    $region21: #{tpu_custom_call.1} parent=1 // pred_fallthru
      _
    // Predicated region
    $region22: #{tpu_custom_call.1} parent=1 // pred_check
      _
    $region23: #{tpu_custom_call.1} parent=1 // pred_check_branch
      %66 = sbr.rel (0) target = $region25
    $region24: #{tpu_custom_call.1} parent=1 // pred_region
      %s68 = ssub.s32 512, 512
      %69 = vsyncadd [#allocation12], %s68
      %s70 = sshll.u32 [#allocation13], 4
      %s71 = int_to_ptr.vmem [resolvable:$true] %s70
      %76 = dma.hbm_to_vmem [thread:$0]  %s5, 512, %s71, [#allocation12], 128, 128, 8
    $region25: #{tpu_custom_call.1} parent=1 // pred_fallthru
      _
    // Predicated region
    $region26: #{tpu_custom_call.1} parent=1 // pred_check
      _
    $region27: #{tpu_custom_call.1} parent=1 // pred_check_branch
      %78 = sbr.rel (0) target = $region29
    $region28: #{tpu_custom_call.1} parent=1 // pred_region
      %s80 = ssub.s32 16, 16
      %81 = vsyncadd [#allocation15], %s80
      %s83 = sshll.u32 [#allocation14], 4
      %s84 = int_to_ptr.vmem [resolvable:$true] %s83
      %86 = dma.hbm_to_vmem [thread:$0]  %s6, 16, %s84, [#allocation15]
    $region29: #{tpu_custom_call.1} parent=1 // pred_fallthru
      _
    // Predicated region
    $region30: #{tpu_custom_call.1} parent=1 // pred_check
      _
    $region31: #{tpu_custom_call.1} parent=1 // pred_check_branch
      %88 = sbr.rel (0) target = $region33
    $region32: #{tpu_custom_call.1} parent=1 // pred_region
      _
    $region33: #{tpu_custom_call.1} parent=1 // pred_fallthru
      _
    // Predicated region
    $region34: #{tpu_custom_call.1} parent=1 // pred_check
      _
    $region35: #{tpu_custom_call.1} parent=1 // pred_check_branch
      %90 = sbr.rel (0) target = $region37
    $region36: #{tpu_custom_call.1} parent=1 // pred_region
      _
    $region37: #{tpu_custom_call.1} parent=1 // pred_fallthru
      _
    // Predicated region
    $region38: #{tpu_custom_call.1} parent=1 // pred_check
      _
    $region39: #{tpu_custom_call.1} parent=1 // pred_check_branch
      %92 = sbr.rel (0) target = $region41
    $region40: #{tpu_custom_call.1} parent=1 // pred_region
      %93 = dma.done [#allocation6], 64
    $region41: #{tpu_custom_call.1} parent=1 // pred_fallthru
      _
    // Predicated region
    $region42: #{tpu_custom_call.1} parent=1 // pred_check
      _
    $region43: #{tpu_custom_call.1} parent=1 // pred_check_branch
      %95 = sbr.rel (0) target = $region45
    $region44: #{tpu_custom_call.1} parent=1 // pred_region
      %96 = dma.done [#allocation9], 512
    $region45: #{tpu_custom_call.1} parent=1 // pred_fallthru
      _
    // Predicated region
    $region46: #{tpu_custom_call.1} parent=1 // pred_check
      _
    $region47: #{tpu_custom_call.1} parent=1 // pred_check_branch
      %98 = sbr.rel (0) target = $region49
    $region48: #{tpu_custom_call.1} parent=1 // pred_region
      %99 = dma.done [#allocation9], 16
    $region49: #{tpu_custom_call.1} parent=1 // pred_fallthru
      _
    // Predicated region
    $region50: #{tpu_custom_call.1} parent=1 // pred_check
      _
    $region51: #{tpu_custom_call.1} parent=1 // pred_check_branch
      %101 = sbr.rel (0) target = $region53
    $region52: #{tpu_custom_call.1} parent=1 // pred_region
      %102 = dma.done [#allocation12], 512
    $region53: #{tpu_custom_call.1} parent=1 // pred_fallthru
      _
    // Predicated region
    $region54: #{tpu_custom_call.1} parent=1 // pred_check
      _
    $region55: #{tpu_custom_call.1} parent=1 // pred_check_branch
      %104 = sbr.rel (0) target = $region57
    $region56: #{tpu_custom_call.1} parent=1 // pred_region
      %105 = dma.done [#allocation12], 512
    $region57: #{tpu_custom_call.1} parent=1 // pred_fallthru
      _
    // Predicated region
    $region58: #{tpu_custom_call.1} parent=1 // pred_check
      _
    $region59: #{tpu_custom_call.1} parent=1 // pred_check_branch
      %107 = sbr.rel (0) target = $region61
    $region60: #{tpu_custom_call.1} parent=1 // pred_region
      %108 = dma.done [#allocation15], 16
    $region61: #{tpu_custom_call.1} parent=1 // pred_fallthru
      _
    %p109 = scmp.eq.s32.totalorder 0, 0
    // Predicated region
    $region62: #{tpu_custom_call.1} parent=1 // pred_check
      %p110 = pneg %p109
    $region63: #{tpu_custom_call.1} parent=1 // pred_check_branch
      %112 = sbr.rel (%p110) target = $region65
    $region64: #{tpu_custom_call.1} parent=1 // pred_region
      %vm113 = vcmask 254976
      %114 = vst.msk [vmem:[#allocation2] sm:$0x3] %vm113, 0.0
      %115 = vst.msk [vmem:[#allocation2 + $0x2] sm:$0x3] %vm113, 0.0
      %116 = vst.msk [vmem:[#allocation2 + $0x4] sm:$0x3] %vm113, 0.0
      %117 = vst.msk [vmem:[#allocation2 + $0x6] sm:$0x3] %vm113, 0.0
    $region65: #{tpu_custom_call.1} parent=1 // pred_fallthru
      _
    %v118 = vld [vmem:[#allocation8] sm:$0xff]
    %v119 = vld [vmem:[#allocation8 + $0x8] sm:$0xff]
    %v120 = vld [vmem:[#allocation8 + $0x10] sm:$0xff]
    %v121 = vld [vmem:[#allocation8 + $0x18] sm:$0xff]
    %v122 = vld [vmem:[#allocation11] sm:$0xff]
    %v123 = vld [vmem:[#allocation11 + $0x8] sm:$0xff]
    %v124 = vld [vmem:[#allocation11 + $0x10] sm:$0xff]
    %v125 = vld [vmem:[#allocation11 + $0x18] sm:$0xff]
    %v126 = vld [vmem:[#allocation13] sm:$0xff]
    %v127 = vld [vmem:[#allocation13 + $0x8] sm:$0xff]
    %v128 = vld [vmem:[#allocation13 + $0x10] sm:$0xff]
    %v129 = vld [vmem:[#allocation13 + $0x18] sm:$0xff]
    %v130 = vld [vmem:[#allocation14] sm:$0x1]
    %v131 = vld [vmem:[%s0] sm:$0xff]
    %v132 = vld [vmem:[%s0 + $0x8] sm:$0xff]
    %v133 = vld [vmem:[#allocation5] sm:$0xf]
    %v134 = vld [vmem:[#allocation10] sm:$0x1]
    %v136 = vlaneseq
    %v137 = vshrl.u32 %v136, 7
    %v138 = vsub.s32 0, %v137
    %v139 = vrot.slane %v134, %v138
    %vm141 = vcmask 31744
    %v143 = vsel %vm141, %v131, 0
    %v146 = vsel %vm141, %v132, 0
    %vm148 = vcmask 1043456
    %v150 = vsel %vm148, %v133, 0
    %152 = vmatprep.subr.mxu0 0.0
    %153 = vmatpush1.msra.mxu0 0.0
    %154 = vmatprep.subr.mxu0 0.0
    %155 = vmatpush1.msra.mxu0 0.0
    %156 = vmatprep.subr.mxu0 0.0
    %157 = vmatpush1.msra.mxu0 0.0
    %158 = vmatprep.subr.mxu0 0.0
    %159 = vmatpush1.msra.mxu0 0.0
    %160 = vmatprep.subr.mxu0 0.0
    %161 = vmatpush1.msra.mxu0 0.0
    %162 = vmatprep.subr.mxu0 0.0
    %163 = vmatpush1.msra.mxu0 0.0
    %164 = vmatprep.subr.mxu0 0.0
    %165 = vmatpush1.msra.mxu0 0.0
    %166 = vmatprep.subr.mxu0 0.0
    %167 = vmatpush1.msra.mxu0 0.0
    %168 = vmatprep.subr.mxu0 0.0
    %169 = vmatpush1.msra.mxu0 0.0
    %170 = vmatprep.subr.mxu0 0.0
    %171 = vmatpush1.msra.mxu0 0.0
    %172 = vmatprep.subr.mxu0 0.0
    %173 = vmatpush1.msra.mxu0 0.0
    %174 = vmatprep.subr.mxu0 0.0
    %175 = vmatpush1.msra.mxu0 0.0
    %176 = vmatprep.subr.mxu0 0.0
    %177 = vmatpush1.msra.mxu0 0.0
    %178 = vmatprep.subr.mxu0 0.0
    %179 = vmatpush1.msra.mxu0 0.0
    %180 = vmatprep.subr.mxu0 0.0
    %181 = vmatpush1.msra.mxu0 0.0
    %182 = vmatprep.subr.mxu0 0.0
    %183 = vmatpush1.msra.mxu0 %v150
    %184 = vmatprep.subr.mxu0 0.0
    %185 = vmatpush2.msra.mxu0 0.0
    %186 = vmatprep.subr.mxu0 0.0
    %187 = vmatpush2.msra.mxu0 0.0
    %188 = vmatprep.subr.mxu0 0.0
    %189 = vmatpush2.msra.mxu0 0.0
    %190 = vmatprep.subr.mxu0 0.0
    %191 = vmatpush2.msra.mxu0 0.0
    %192 = vmatprep.subr.mxu0 0.0
    %193 = vmatpush2.msra.mxu0 0.0
    %194 = vmatprep.subr.mxu0 0.0
    %195 = vmatpush2.msra.mxu0 0.0
    %196 = vmatprep.subr.mxu0 0.0
    %197 = vmatpush2.msra.mxu0 0.0
    %198 = vmatprep.subr.mxu0 0.0
    %199 = vmatpush2.msra.mxu0 0.0
    %200 = vmatprep.subr.mxu0 0.0
    %201 = vmatpush2.msra.mxu0 0.0
    %202 = vmatprep.subr.mxu0 0.0
    %203 = vmatpush2.msra.mxu0 0.0
    %204 = vmatprep.subr.mxu0 0.0
    %205 = vmatpush2.msra.mxu0 0.0
    %206 = vmatprep.subr.mxu0 0.0
    %207 = vmatpush2.msra.mxu0 0.0
    %208 = vmatprep.subr.mxu0 0.0
    %209 = vmatpush2.msra.mxu0 0.0
    %210 = vmatprep.subr.mxu0 0.0
    %211 = vmatpush2.msra.mxu0 0.0
    %212 = vmatprep.subr.mxu0 0.0
    %213 = vmatpush2.msra.mxu0 0.0
    %214 = vmatprep.subr.mxu0 0.0
    %215 = vmatpush2.msra.mxu0 0.0
    %216 = vmatprep.mubr.f32.mxu0 0.0
    %217 = vmatmul.mubr.f32.gmra.mxu0 %v143
    %v218 = vpop.f32.mrf.mxu0
    %v219 = vadd.f32 %v139, %v218
    %v220 = vpop.f32.mrf.mxu0
    %221 = vmatprep.mubr.f32.mxu0 0.0
    %222 = vmatmul.mubr.f32.gmra.mxu0 %v146
    %v223 = vpop.f32.mrf.mxu0
    %v224 = vadd.f32 %v139, %v223
    %v225 = vpop.f32.mrf.mxu0
    %226 = vdwg.mxu0
    %227 = vst [vmem:[#allocation3] sm:$0xff] %v219
    %228 = vst [vmem:[#allocation3 + $0x8] sm:$0xff] %v224
    %v229 = vld [vmem:[#allocation2] sm:$0x3]
    %s230 = scalar_lea.vmem [#allocation2], 2
    %v231 = vld [vmem:[%s230] sm:$0x3]
    %s232 = scalar_lea.vmem [#allocation2], 4
    %v233 = vld [vmem:[%s232] sm:$0x3]
    %s234 = scalar_lea.vmem [#allocation2], 6
    %v235 = vld [vmem:[%s234] sm:$0x3]
    %vm236 = vcmask 261120
    %v238 = vsel %vm236, %v233, 0
    %240 = vmatprep.subr.mxu0 0.0
    %241 = vmatpush1.msra.mxu0 0.0
    %242 = vmatprep.subr.mxu0 0.0
    %243 = vmatpush1.msra.mxu0 0.0
    %244 = vmatprep.subr.mxu0 0.0
    %245 = vmatpush1.msra.mxu0 0.0
    %246 = vmatprep.subr.mxu0 0.0
    %247 = vmatpush1.msra.mxu0 0.0
    %248 = vmatprep.subr.mxu0 0.0
    %249 = vmatpush1.msra.mxu0 0.0
    %250 = vmatprep.subr.mxu0 0.0
    %251 = vmatpush1.msra.mxu0 0.0
    %252 = vmatprep.subr.mxu0 0.0
    %253 = vmatpush1.msra.mxu0 0.0
    %254 = vmatprep.subr.mxu0 0.0
    %255 = vmatpush1.msra.mxu0 0.0
    %256 = vmatprep.subr.mxu0 0.0
    %257 = vmatpush1.msra.mxu0 0.0
    %258 = vmatprep.subr.mxu0 0.0
    %259 = vmatpush1.msra.mxu0 0.0
    %260 = vmatprep.subr.mxu0 0.0
    %261 = vmatpush1.msra.mxu0 0.0
    %262 = vmatprep.subr.mxu0 0.0
    %263 = vmatpush1.msra.mxu0 0.0
    %264 = vmatprep.subr.mxu0 0.0
    %265 = vmatpush1.msra.mxu0 %v129
    %266 = vmatprep.subr.mxu0 0.0
    %267 = vmatpush1.msra.mxu0 %v128
    %268 = vmatprep.subr.mxu0 0.0
    %269 = vmatpush1.msra.mxu0 %v127
    %270 = vmatprep.subr.mxu0 0.0
    %271 = vmatpush1.msra.mxu0 %v126
    %272 = vmatprep.subr.mxu0 0.0
    %273 = vmatpush2.msra.mxu0 0.0
    %274 = vmatprep.subr.mxu0 0.0
    %275 = vmatpush2.msra.mxu0 0.0
    %276 = vmatprep.subr.mxu0 0.0
    %277 = vmatpush2.msra.mxu0 0.0
    %278 = vmatprep.subr.mxu0 0.0
    %279 = vmatpush2.msra.mxu0 0.0
    %280 = vmatprep.subr.mxu0 0.0
    %281 = vmatpush2.msra.mxu0 0.0
    %282 = vmatprep.subr.mxu0 0.0
    %283 = vmatpush2.msra.mxu0 0.0
    %284 = vmatprep.subr.mxu0 0.0
    %285 = vmatpush2.msra.mxu0 0.0
    %286 = vmatprep.subr.mxu0 0.0
    %287 = vmatpush2.msra.mxu0 0.0
    %288 = vmatprep.subr.mxu0 0.0
    %289 = vmatpush2.msra.mxu0 0.0
    %290 = vmatprep.subr.mxu0 0.0
    %291 = vmatpush2.msra.mxu0 0.0
    %292 = vmatprep.subr.mxu0 0.0
    %293 = vmatpush2.msra.mxu0 0.0
    %294 = vmatprep.subr.mxu0 0.0
    %295 = vmatpush2.msra.mxu0 0.0
    %296 = vmatprep.subr.mxu0 0.0
    %297 = vmatpush2.msra.mxu0 0.0
    %298 = vmatprep.subr.mxu0 0.0
    %299 = vmatpush2.msra.mxu0 0.0
    %300 = vmatprep.subr.mxu0 0.0
    %301 = vmatpush2.msra.mxu0 0.0
    %302 = vmatprep.subr.mxu0 0.0
    %303 = vmatpush2.msra.mxu0 0.0
    %304 = vmatprep.mubr.f32.mxu0 0.0
    %305 = vmatmul.mubr.f32.gmra.mxu0 %v238
    %v306 = vpop.f32.mrf.mxu0
    %v307 = vadd.f32 0.0, %v306
    %v308 = vpop.f32.mrf.mxu0
    %309 = vdwg.mxu0
    %v310 = vld [vmem:[#allocation3] sm:$0x3]
    %v312 = vsel %vm236, %v229, 0
    %314 = vmatprep.subr.mxu0 0.0
    %315 = vmatpush1.msra.mxu0 0.0
    %316 = vmatprep.subr.mxu0 0.0
    %317 = vmatpush1.msra.mxu0 0.0
    %318 = vmatprep.subr.mxu0 0.0
    %319 = vmatpush1.msra.mxu0 0.0
    %320 = vmatprep.subr.mxu0 0.0
    %321 = vmatpush1.msra.mxu0 0.0
    %322 = vmatprep.subr.mxu0 0.0
    %323 = vmatpush1.msra.mxu0 0.0
    %324 = vmatprep.subr.mxu0 0.0
    %325 = vmatpush1.msra.mxu0 0.0
    %326 = vmatprep.subr.mxu0 0.0
    %327 = vmatpush1.msra.mxu0 0.0
    %328 = vmatprep.subr.mxu0 0.0
    %329 = vmatpush1.msra.mxu0 0.0
    %330 = vmatprep.subr.mxu0 0.0
    %331 = vmatpush1.msra.mxu0 0.0
    %332 = vmatprep.subr.mxu0 0.0
    %333 = vmatpush1.msra.mxu0 0.0
    %334 = vmatprep.subr.mxu0 0.0
    %335 = vmatpush1.msra.mxu0 0.0
    %336 = vmatprep.subr.mxu0 0.0
    %337 = vmatpush1.msra.mxu0 0.0
    %338 = vmatprep.subr.mxu0 0.0
    %339 = vmatpush1.msra.mxu0 %v121
    %340 = vmatprep.subr.mxu0 0.0
    %341 = vmatpush1.msra.mxu0 %v120
    %342 = vmatprep.subr.mxu0 0.0
    %343 = vmatpush1.msra.mxu0 %v119
    %344 = vmatprep.subr.mxu0 0.0
    %345 = vmatpush1.msra.mxu0 %v118
    %346 = vmatprep.subr.mxu0 0.0
    %347 = vmatpush2.msra.mxu0 0.0
    %348 = vmatprep.subr.mxu0 0.0
    %349 = vmatpush2.msra.mxu0 0.0
    %350 = vmatprep.subr.mxu0 0.0
    %351 = vmatpush2.msra.mxu0 0.0
    %352 = vmatprep.subr.mxu0 0.0
    %353 = vmatpush2.msra.mxu0 0.0
    %354 = vmatprep.subr.mxu0 0.0
    %355 = vmatpush2.msra.mxu0 0.0
    %356 = vmatprep.subr.mxu0 0.0
    %357 = vmatpush2.msra.mxu0 0.0
    %358 = vmatprep.subr.mxu0 0.0
    %359 = vmatpush2.msra.mxu0 0.0
    %360 = vmatprep.subr.mxu0 0.0
    %361 = vmatpush2.msra.mxu0 0.0
    %362 = vmatprep.subr.mxu0 0.0
    %363 = vmatpush2.msra.mxu0 0.0
    %364 = vmatprep.subr.mxu0 0.0
    %365 = vmatpush2.msra.mxu0 0.0
    %366 = vmatprep.subr.mxu0 0.0
    %367 = vmatpush2.msra.mxu0 0.0
    %368 = vmatprep.subr.mxu0 0.0
    %369 = vmatpush2.msra.mxu0 0.0
    %370 = vmatprep.subr.mxu0 0.0
    %371 = vmatpush2.msra.mxu0 0.0
    %372 = vmatprep.subr.mxu0 0.0
    %373 = vmatpush2.msra.mxu0 0.0
    %374 = vmatprep.subr.mxu0 0.0
    %375 = vmatpush2.msra.mxu0 0.0
    %376 = vmatprep.subr.mxu0 0.0
    %377 = vmatpush2.msra.mxu0 0.0
    %378 = vmatprep.mubr.f32.mxu0 0.0
    %379 = vmatmul.mubr.f32.gmra.mxu0 %v312
    %v380 = vpop.f32.mrf.mxu0
    %v381 = vadd.f32 0.0, %v380
    %v382 = vpop.f32.mrf.mxu0
    %383 = vdwg.mxu0
    %v384 = vadd.f32 %v310, %v381
    %v385 = vxor.u32 %v384, 2147483648
    %v386 = vmul.f32 %v385, 1.442695
    %v387 = vpow.pop %v386
    %v388 = vadd.f32 %v387, 1.0
    %v389 = vrcp.pop %v388
    %v390 = vmul.f32 1.0, %v389
    %v391 = vtanh.pop %v384
    %393 = vrot.lane.b32.xlu0 %v231, 32
    %v394 = vpop.permute.xlu0 %393
    %v396 = vmul.f32 %v390, %v394
    %398 = vrot.lane.b32.xlu0 %v391, 64
    %v399 = vpop.permute.xlu0 %398
    %v401 = vmul.f32 %v390, %v399
    %403 = vrot.lane.b32.xlu0 %v401, 32
    %v404 = vpop.permute.xlu0 %403
    %v406 = vadd.f32 %v396, %v404
    %v407 = vtanh.pop %v406
    %409 = vrot.lane.b32.xlu0 %v407, 64
    %v410 = vpop.permute.xlu0 %409
    %v412 = vmul.f32 %v390, %v410
    %414 = vrot.lane.b32.xlu0 %v412, 32
    %v415 = vpop.permute.xlu0 %414
    %v416 = vsel %vm236, %v415, 0
    %418 = vmatprep.subr.mxu0 0.0
    %419 = vmatpush1.msra.mxu0 0.0
    %420 = vmatprep.subr.mxu0 0.0
    %421 = vmatpush1.msra.mxu0 0.0
    %422 = vmatprep.subr.mxu0 0.0
    %423 = vmatpush1.msra.mxu0 0.0
    %424 = vmatprep.subr.mxu0 0.0
    %425 = vmatpush1.msra.mxu0 0.0
    %426 = vmatprep.subr.mxu0 0.0
    %427 = vmatpush1.msra.mxu0 0.0
    %428 = vmatprep.subr.mxu0 0.0
    %429 = vmatpush1.msra.mxu0 0.0
    %430 = vmatprep.subr.mxu0 0.0
    %431 = vmatpush1.msra.mxu0 0.0
    %432 = vmatprep.subr.mxu0 0.0
    %433 = vmatpush1.msra.mxu0 0.0
    %434 = vmatprep.subr.mxu0 0.0
    %435 = vmatpush1.msra.mxu0 0.0
    %436 = vmatprep.subr.mxu0 0.0
    %437 = vmatpush1.msra.mxu0 0.0
    %438 = vmatprep.subr.mxu0 0.0
    %439 = vmatpush1.msra.mxu0 0.0
    %440 = vmatprep.subr.mxu0 0.0
    %441 = vmatpush1.msra.mxu0 0.0
    %442 = vmatprep.subr.mxu0 0.0
    %443 = vmatpush1.msra.mxu0 %v125
    %444 = vmatprep.subr.mxu0 0.0
    %445 = vmatpush1.msra.mxu0 %v124
    %446 = vmatprep.subr.mxu0 0.0
    %447 = vmatpush1.msra.mxu0 %v123
    %448 = vmatprep.subr.mxu0 0.0
    %449 = vmatpush1.msra.mxu0 %v122
    %450 = vmatprep.subr.mxu0 0.0
    %451 = vmatpush2.msra.mxu0 0.0
    %452 = vmatprep.subr.mxu0 0.0
    %453 = vmatpush2.msra.mxu0 0.0
    %454 = vmatprep.subr.mxu0 0.0
    %455 = vmatpush2.msra.mxu0 0.0
    %456 = vmatprep.subr.mxu0 0.0
    %457 = vmatpush2.msra.mxu0 0.0
    %458 = vmatprep.subr.mxu0 0.0
    %459 = vmatpush2.msra.mxu0 0.0
    %460 = vmatprep.subr.mxu0 0.0
    %461 = vmatpush2.msra.mxu0 0.0
    %462 = vmatprep.subr.mxu0 0.0
    %463 = vmatpush2.msra.mxu0 0.0
    %464 = vmatprep.subr.mxu0 0.0
    %465 = vmatpush2.msra.mxu0 0.0
    %466 = vmatprep.subr.mxu0 0.0
    %467 = vmatpush2.msra.mxu0 0.0
    %468 = vmatprep.subr.mxu0 0.0
    %469 = vmatpush2.msra.mxu0 0.0
    %470 = vmatprep.subr.mxu0 0.0
    %471 = vmatpush2.msra.mxu0 0.0
    %472 = vmatprep.subr.mxu0 0.0
    %473 = vmatpush2.msra.mxu0 0.0
    %474 = vmatprep.subr.mxu0 0.0
    %475 = vmatpush2.msra.mxu0 0.0
    %476 = vmatprep.subr.mxu0 0.0
    %477 = vmatpush2.msra.mxu0 0.0
    %478 = vmatprep.subr.mxu0 0.0
    %479 = vmatpush2.msra.mxu0 0.0
    %480 = vmatprep.subr.mxu0 0.0
    %481 = vmatpush2.msra.mxu0 0.0
    %482 = vmatprep.mubr.f32.mxu0 0.0
    %483 = vmatmul.mubr.f32.gmra.mxu0 %v416
    %v484 = vpop.f32.mrf.mxu0
    %v485 = vadd.f32 %v307, %v484
    %v486 = vpop.f32.mrf.mxu0
    %487 = vdwg.mxu0
    %v489 = vlaneseq
    %v490 = vshrl.u32 %v489, 7
    %v491 = vsub.s32 0, %v490
    %v492 = vrot.slane %v130, %v491
    %v494 = vadd.f32 %v485, %v492
    %v495 = vxor.u32 %v494, 2147483648
    %v496 = vmul.f32 %v495, 1.442695
    %v497 = vpow.pop %v496
    %v498 = vadd.f32 %v497, 1.0
    %v499 = vrcp.pop %v498
    %v500 = vmul.f32 1.0, %v499
    %v501 = vtanh.pop %v494
    %503 = vrot.lane.b32.xlu0 %v235, 32
    %v504 = vpop.permute.xlu0 %503
    %v506 = vmul.f32 %v500, %v504
    %508 = vrot.lane.b32.xlu0 %v501, 64
    %v509 = vpop.permute.xlu0 %508
    %v511 = vmul.f32 %v500, %v509
    %513 = vrot.lane.b32.xlu0 %v511, 32
    %v514 = vpop.permute.xlu0 %513
    %v516 = vadd.f32 %v506, %v514
    %v517 = vtanh.pop %v516
    %519 = vrot.lane.b32.xlu0 %v517, 64
    %v520 = vpop.permute.xlu0 %519
    %v522 = vmul.f32 %v500, %v520
    %524 = vrot.lane.b32.xlu0 %v522, 32
    %v525 = vpop.permute.xlu0 %524
    %vm527 = vcmask 254976
    %528 = vst.msk [vmem:[#allocation4] sm:$0x3] %vm527, %v525
    %v529 = vsel %vm236, %v525, 0
    %531 = vmatprep.subr.mxu0 0.0
    %532 = vmatpush1.msra.mxu0 0.0
    %533 = vmatprep.subr.mxu0 0.0
    %534 = vmatpush1.msra.mxu0 0.0
    %535 = vmatprep.subr.mxu0 0.0
    %536 = vmatpush1.msra.mxu0 0.0
    %537 = vmatprep.subr.mxu0 0.0
    %538 = vmatpush1.msra.mxu0 0.0
    %539 = vmatprep.subr.mxu0 0.0
    %540 = vmatpush1.msra.mxu0 0.0
    %541 = vmatprep.subr.mxu0 0.0
    %542 = vmatpush1.msra.mxu0 0.0
    %543 = vmatprep.subr.mxu0 0.0
    %544 = vmatpush1.msra.mxu0 0.0
    %545 = vmatprep.subr.mxu0 0.0
    %546 = vmatpush1.msra.mxu0 0.0
    %547 = vmatprep.subr.mxu0 0.0
    %548 = vmatpush1.msra.mxu0 0.0
    %549 = vmatprep.subr.mxu0 0.0
    %550 = vmatpush1.msra.mxu0 0.0
    %551 = vmatprep.subr.mxu0 0.0
    %552 = vmatpush1.msra.mxu0 0.0
    %553 = vmatprep.subr.mxu0 0.0
    %554 = vmatpush1.msra.mxu0 0.0
    %555 = vmatprep.subr.mxu0 0.0
    %556 = vmatpush1.msra.mxu0 %v129
    %557 = vmatprep.subr.mxu0 0.0
    %558 = vmatpush1.msra.mxu0 %v128
    %559 = vmatprep.subr.mxu0 0.0
    %560 = vmatpush1.msra.mxu0 %v127
    %561 = vmatprep.subr.mxu0 0.0
    %562 = vmatpush1.msra.mxu0 %v126
    %563 = vmatprep.subr.mxu0 0.0
    %564 = vmatpush2.msra.mxu0 0.0
    %565 = vmatprep.subr.mxu0 0.0
    %566 = vmatpush2.msra.mxu0 0.0
    %567 = vmatprep.subr.mxu0 0.0
    %568 = vmatpush2.msra.mxu0 0.0
    %569 = vmatprep.subr.mxu0 0.0
    %570 = vmatpush2.msra.mxu0 0.0
    %571 = vmatprep.subr.mxu0 0.0
    %572 = vmatpush2.msra.mxu0 0.0
    %573 = vmatprep.subr.mxu0 0.0
    %574 = vmatpush2.msra.mxu0 0.0
    %575 = vmatprep.subr.mxu0 0.0
    %576 = vmatpush2.msra.mxu0 0.0
    %577 = vmatprep.subr.mxu0 0.0
    %578 = vmatpush2.msra.mxu0 0.0
    %579 = vmatprep.subr.mxu0 0.0
    %580 = vmatpush2.msra.mxu0 0.0
    %581 = vmatprep.subr.mxu0 0.0
    %582 = vmatpush2.msra.mxu0 0.0
    %583 = vmatprep.subr.mxu0 0.0
    %584 = vmatpush2.msra.mxu0 0.0
    %585 = vmatprep.subr.mxu0 0.0
    %586 = vmatpush2.msra.mxu0 0.0
    %587 = vmatprep.subr.mxu0 0.0
    %588 = vmatpush2.msra.mxu0 0.0
    %589 = vmatprep.subr.mxu0 0.0
    %590 = vmatpush2.msra.mxu0 0.0
    %591 = vmatprep.subr.mxu0 0.0
    %592 = vmatpush2.msra.mxu0 0.0
    %593 = vmatprep.subr.mxu0 0.0
    %594 = vmatpush2.msra.mxu0 0.0
    %595 = vmatprep.mubr.f32.mxu0 0.0
    %596 = vmatmul.mubr.f32.gmra.mxu0 %v529
    %v597 = vpop.f32.mrf.mxu0
    %v598 = vadd.f32 0.0, %v597
    %v599 = vpop.f32.mrf.mxu0
    %600 = vdwg.mxu0
    %v601 = vld [vmem:[#allocation3 + $0x2] sm:$0x3]
    %602 = vmatprep.subr.mxu0 0.0
    %603 = vmatpush1.msra.mxu0 0.0
    %604 = vmatprep.subr.mxu0 0.0
    %605 = vmatpush1.msra.mxu0 0.0
    %606 = vmatprep.subr.mxu0 0.0
    %607 = vmatpush1.msra.mxu0 0.0
    %608 = vmatprep.subr.mxu0 0.0
    %609 = vmatpush1.msra.mxu0 0.0
    %610 = vmatprep.subr.mxu0 0.0
    %611 = vmatpush1.msra.mxu0 0.0
    %612 = vmatprep.subr.mxu0 0.0
    %613 = vmatpush1.msra.mxu0 0.0
    %614 = vmatprep.subr.mxu0 0.0
    %615 = vmatpush1.msra.mxu0 0.0
    %616 = vmatprep.subr.mxu0 0.0
    %617 = vmatpush1.msra.mxu0 0.0
    %618 = vmatprep.subr.mxu0 0.0
    %619 = vmatpush1.msra.mxu0 0.0
    %620 = vmatprep.subr.mxu0 0.0
    %621 = vmatpush1.msra.mxu0 0.0
    %622 = vmatprep.subr.mxu0 0.0
    %623 = vmatpush1.msra.mxu0 0.0
    %624 = vmatprep.subr.mxu0 0.0
    %625 = vmatpush1.msra.mxu0 0.0
    %626 = vmatprep.subr.mxu0 0.0
    %627 = vmatpush1.msra.mxu0 %v121
    %628 = vmatprep.subr.mxu0 0.0
    %629 = vmatpush1.msra.mxu0 %v120
    %630 = vmatprep.subr.mxu0 0.0
    %631 = vmatpush1.msra.mxu0 %v119
    %632 = vmatprep.subr.mxu0 0.0
    %633 = vmatpush1.msra.mxu0 %v118
    %634 = vmatprep.subr.mxu0 0.0
    %635 = vmatpush2.msra.mxu0 0.0
    %636 = vmatprep.subr.mxu0 0.0
    %637 = vmatpush2.msra.mxu0 0.0
    %638 = vmatprep.subr.mxu0 0.0
    %639 = vmatpush2.msra.mxu0 0.0
    %640 = vmatprep.subr.mxu0 0.0
    %641 = vmatpush2.msra.mxu0 0.0
    %642 = vmatprep.subr.mxu0 0.0
    %643 = vmatpush2.msra.mxu0 0.0
    %644 = vmatprep.subr.mxu0 0.0
    %645 = vmatpush2.msra.mxu0 0.0
    %646 = vmatprep.subr.mxu0 0.0
    %647 = vmatpush2.msra.mxu0 0.0
    %648 = vmatprep.subr.mxu0 0.0
    %649 = vmatpush2.msra.mxu0 0.0
    %650 = vmatprep.subr.mxu0 0.0
    %651 = vmatpush2.msra.mxu0 0.0
    %652 = vmatprep.subr.mxu0 0.0
    %653 = vmatpush2.msra.mxu0 0.0
    %654 = vmatprep.subr.mxu0 0.0
    %655 = vmatpush2.msra.mxu0 0.0
    %656 = vmatprep.subr.mxu0 0.0
    %657 = vmatpush2.msra.mxu0 0.0
    %658 = vmatprep.subr.mxu0 0.0
    %659 = vmatpush2.msra.mxu0 0.0
    %660 = vmatprep.subr.mxu0 0.0
    %661 = vmatpush2.msra.mxu0 0.0
    %662 = vmatprep.subr.mxu0 0.0
    %663 = vmatpush2.msra.mxu0 0.0
    %664 = vmatprep.subr.mxu0 0.0
    %665 = vmatpush2.msra.mxu0 0.0
    %666 = vmatprep.mubr.f32.mxu0 0.0
    %667 = vmatmul.mubr.f32.gmra.mxu0 %v416
    %v668 = vpop.f32.mrf.mxu0
    %v669 = vadd.f32 0.0, %v668
    %v670 = vpop.f32.mrf.mxu0
    %671 = vdwg.mxu0
    %v672 = vadd.f32 %v601, %v669
    %v673 = vxor.u32 %v672, 2147483648
    %v674 = vmul.f32 %v673, 1.442695
    %v675 = vpow.pop %v674
    %v676 = vadd.f32 %v675, 1.0
    %v677 = vrcp.pop %v676
    %v678 = vmul.f32 1.0, %v677
    %v679 = vtanh.pop %v672
    %v680 = vmul.f32 %v678, %v406
    %682 = vrot.lane.b32.xlu0 %v679, 64
    %v683 = vpop.permute.xlu0 %682
    %v685 = vmul.f32 %v678, %v683
    %687 = vrot.lane.b32.xlu0 %v685, 32
    %v688 = vpop.permute.xlu0 %687
    %v690 = vadd.f32 %v680, %v688
    %v691 = vtanh.pop %v690
    %693 = vrot.lane.b32.xlu0 %v691, 64
    %v694 = vpop.permute.xlu0 %693
    %v696 = vmul.f32 %v678, %v694
    %698 = vrot.lane.b32.xlu0 %v696, 32
    %v699 = vpop.permute.xlu0 %698
    %v700 = vsel %vm236, %v699, 0
    %702 = vmatprep.subr.mxu0 0.0
    %703 = vmatpush1.msra.mxu0 0.0
    %704 = vmatprep.subr.mxu0 0.0
    %705 = vmatpush1.msra.mxu0 0.0
    %706 = vmatprep.subr.mxu0 0.0
    %707 = vmatpush1.msra.mxu0 0.0
    %708 = vmatprep.subr.mxu0 0.0
    %709 = vmatpush1.msra.mxu0 0.0
    %710 = vmatprep.subr.mxu0 0.0
    %711 = vmatpush1.msra.mxu0 0.0
    %712 = vmatprep.subr.mxu0 0.0
    %713 = vmatpush1.msra.mxu0 0.0
    %714 = vmatprep.subr.mxu0 0.0
    %715 = vmatpush1.msra.mxu0 0.0
    %716 = vmatprep.subr.mxu0 0.0
    %717 = vmatpush1.msra.mxu0 0.0
    %718 = vmatprep.subr.mxu0 0.0
    %719 = vmatpush1.msra.mxu0 0.0
    %720 = vmatprep.subr.mxu0 0.0
    %721 = vmatpush1.msra.mxu0 0.0
    %722 = vmatprep.subr.mxu0 0.0
    %723 = vmatpush1.msra.mxu0 0.0
    %724 = vmatprep.subr.mxu0 0.0
    %725 = vmatpush1.msra.mxu0 0.0
    %726 = vmatprep.subr.mxu0 0.0
    %727 = vmatpush1.msra.mxu0 %v125
    %728 = vmatprep.subr.mxu0 0.0
    %729 = vmatpush1.msra.mxu0 %v124
    %730 = vmatprep.subr.mxu0 0.0
    %731 = vmatpush1.msra.mxu0 %v123
    %732 = vmatprep.subr.mxu0 0.0
    %733 = vmatpush1.msra.mxu0 %v122
    %734 = vmatprep.subr.mxu0 0.0
    %735 = vmatpush2.msra.mxu0 0.0
    %736 = vmatprep.subr.mxu0 0.0
    %737 = vmatpush2.msra.mxu0 0.0
    %738 = vmatprep.subr.mxu0 0.0
    %739 = vmatpush2.msra.mxu0 0.0
    %740 = vmatprep.subr.mxu0 0.0
    %741 = vmatpush2.msra.mxu0 0.0
    %742 = vmatprep.subr.mxu0 0.0
    %743 = vmatpush2.msra.mxu0 0.0
    %744 = vmatprep.subr.mxu0 0.0
    %745 = vmatpush2.msra.mxu0 0.0
    %746 = vmatprep.subr.mxu0 0.0
    %747 = vmatpush2.msra.mxu0 0.0
    %748 = vmatprep.subr.mxu0 0.0
    %749 = vmatpush2.msra.mxu0 0.0
    %750 = vmatprep.subr.mxu0 0.0
    %751 = vmatpush2.msra.mxu0 0.0
    %752 = vmatprep.subr.mxu0 0.0
    %753 = vmatpush2.msra.mxu0 0.0
    %754 = vmatprep.subr.mxu0 0.0
    %755 = vmatpush2.msra.mxu0 0.0
    %756 = vmatprep.subr.mxu0 0.0
    %757 = vmatpush2.msra.mxu0 0.0
    %758 = vmatprep.subr.mxu0 0.0
    %759 = vmatpush2.msra.mxu0 0.0
    %760 = vmatprep.subr.mxu0 0.0
    %761 = vmatpush2.msra.mxu0 0.0
    %762 = vmatprep.subr.mxu0 0.0
    %763 = vmatpush2.msra.mxu0 0.0
    %764 = vmatprep.subr.mxu0 0.0
    %765 = vmatpush2.msra.mxu0 0.0
    %766 = vmatprep.mubr.f32.mxu0 0.0
    %767 = vmatmul.mubr.f32.gmra.mxu0 %v700
    %v768 = vpop.f32.mrf.mxu0
    %v769 = vadd.f32 %v598, %v768
    %v770 = vpop.f32.mrf.mxu0
    %771 = vdwg.mxu0
    %v772 = vadd.f32 %v769, %v492
    %v773 = vxor.u32 %v772, 2147483648
    %v774 = vmul.f32 %v773, 1.442695
    %v775 = vpow.pop %v774
    %v776 = vadd.f32 %v775, 1.0
    %v777 = vrcp.pop %v776
    %v778 = vmul.f32 1.0, %v777
    %v779 = vtanh.pop %v772
    %v780 = vmul.f32 %v778, %v516
    %782 = vrot.lane.b32.xlu0 %v779, 64
    %v783 = vpop.permute.xlu0 %782
    %v785 = vmul.f32 %v778, %v783
    %787 = vrot.lane.b32.xlu0 %v785, 32
    %v788 = vpop.permute.xlu0 %787
    %v790 = vadd.f32 %v780, %v788
    %v791 = vtanh.pop %v790
    %793 = vrot.lane.b32.xlu0 %v791, 64
    %v794 = vpop.permute.xlu0 %793
    %v796 = vmul.f32 %v778, %v794
    %798 = vrot.lane.b32.xlu0 %v796, 32
    %v799 = vpop.permute.xlu0 %798
    %801 = vst.msk [vmem:[#allocation4 + $0x2] sm:$0x3] %vm527, %v799
    %v802 = vsel %vm236, %v799, 0
    %804 = vmatprep.subr.mxu0 0.0
    %805 = vmatpush1.msra.mxu0 0.0
    %806 = vmatprep.subr.mxu0 0.0
    %807 = vmatpush1.msra.mxu0 0.0
    %808 = vmatprep.subr.mxu0 0.0
    %809 = vmatpush1.msra.mxu0 0.0
    %810 = vmatprep.subr.mxu0 0.0
    %811 = vmatpush1.msra.mxu0 0.0
    %812 = vmatprep.subr.mxu0 0.0
    %813 = vmatpush1.msra.mxu0 0.0
    %814 = vmatprep.subr.mxu0 0.0
    %815 = vmatpush1.msra.mxu0 0.0
    %816 = vmatprep.subr.mxu0 0.0
    %817 = vmatpush1.msra.mxu0 0.0
    %818 = vmatprep.subr.mxu0 0.0
    %819 = vmatpush1.msra.mxu0 0.0
    %820 = vmatprep.subr.mxu0 0.0
    %821 = vmatpush1.msra.mxu0 0.0
    %822 = vmatprep.subr.mxu0 0.0
    %823 = vmatpush1.msra.mxu0 0.0
    %824 = vmatprep.subr.mxu0 0.0
    %825 = vmatpush1.msra.mxu0 0.0
    %826 = vmatprep.subr.mxu0 0.0
    %827 = vmatpush1.msra.mxu0 0.0
    %828 = vmatprep.subr.mxu0 0.0
    %829 = vmatpush1.msra.mxu0 %v129
    %830 = vmatprep.subr.mxu0 0.0
    %831 = vmatpush1.msra.mxu0 %v128
    %832 = vmatprep.subr.mxu0 0.0
    %833 = vmatpush1.msra.mxu0 %v127
    %834 = vmatprep.subr.mxu0 0.0
    %835 = vmatpush1.msra.mxu0 %v126
    %836 = vmatprep.subr.mxu0 0.0
    %837 = vmatpush2.msra.mxu0 0.0
    %838 = vmatprep.subr.mxu0 0.0
    %839 = vmatpush2.msra.mxu0 0.0
    %840 = vmatprep.subr.mxu0 0.0
    %841 = vmatpush2.msra.mxu0 0.0
    %842 = vmatprep.subr.mxu0 0.0
    %843 = vmatpush2.msra.mxu0 0.0
    %844 = vmatprep.subr.mxu0 0.0
    %845 = vmatpush2.msra.mxu0 0.0
    %846 = vmatprep.subr.mxu0 0.0
    %847 = vmatpush2.msra.mxu0 0.0
    %848 = vmatprep.subr.mxu0 0.0
    %849 = vmatpush2.msra.mxu0 0.0
    %850 = vmatprep.subr.mxu0 0.0
    %851 = vmatpush2.msra.mxu0 0.0
    %852 = vmatprep.subr.mxu0 0.0
    %853 = vmatpush2.msra.mxu0 0.0
    %854 = vmatprep.subr.mxu0 0.0
    %855 = vmatpush2.msra.mxu0 0.0
    %856 = vmatprep.subr.mxu0 0.0
    %857 = vmatpush2.msra.mxu0 0.0
    %858 = vmatprep.subr.mxu0 0.0
    %859 = vmatpush2.msra.mxu0 0.0
    %860 = vmatprep.subr.mxu0 0.0
    %861 = vmatpush2.msra.mxu0 0.0
    %862 = vmatprep.subr.mxu0 0.0
    %863 = vmatpush2.msra.mxu0 0.0
    %864 = vmatprep.subr.mxu0 0.0
    %865 = vmatpush2.msra.mxu0 0.0
    %866 = vmatprep.subr.mxu0 0.0
    %867 = vmatpush2.msra.mxu0 0.0
    %868 = vmatprep.mubr.f32.mxu0 0.0
    %869 = vmatmul.mubr.f32.gmra.mxu0 %v802
    %v870 = vpop.f32.mrf.mxu0
    %v871 = vadd.f32 0.0, %v870
    %v872 = vpop.f32.mrf.mxu0
    %873 = vdwg.mxu0
    %v874 = vld [vmem:[#allocation3 + $0x4] sm:$0x3]
    %875 = vmatprep.subr.mxu0 0.0
    %876 = vmatpush1.msra.mxu0 0.0
    %877 = vmatprep.subr.mxu0 0.0
    %878 = vmatpush1.msra.mxu0 0.0
    %879 = vmatprep.subr.mxu0 0.0
    %880 = vmatpush1.msra.mxu0 0.0
    %881 = vmatprep.subr.mxu0 0.0
    %882 = vmatpush1.msra.mxu0 0.0
    %883 = vmatprep.subr.mxu0 0.0
    %884 = vmatpush1.msra.mxu0 0.0
    %885 = vmatprep.subr.mxu0 0.0
    %886 = vmatpush1.msra.mxu0 0.0
    %887 = vmatprep.subr.mxu0 0.0
    %888 = vmatpush1.msra.mxu0 0.0
    %889 = vmatprep.subr.mxu0 0.0
    %890 = vmatpush1.msra.mxu0 0.0
    %891 = vmatprep.subr.mxu0 0.0
    %892 = vmatpush1.msra.mxu0 0.0
    %893 = vmatprep.subr.mxu0 0.0
    %894 = vmatpush1.msra.mxu0 0.0
    %895 = vmatprep.subr.mxu0 0.0
    %896 = vmatpush1.msra.mxu0 0.0
    %897 = vmatprep.subr.mxu0 0.0
    %898 = vmatpush1.msra.mxu0 0.0
    %899 = vmatprep.subr.mxu0 0.0
    %900 = vmatpush1.msra.mxu0 %v121
    %901 = vmatprep.subr.mxu0 0.0
    %902 = vmatpush1.msra.mxu0 %v120
    %903 = vmatprep.subr.mxu0 0.0
    %904 = vmatpush1.msra.mxu0 %v119
    %905 = vmatprep.subr.mxu0 0.0
    %906 = vmatpush1.msra.mxu0 %v118
    %907 = vmatprep.subr.mxu0 0.0
    %908 = vmatpush2.msra.mxu0 0.0
    %909 = vmatprep.subr.mxu0 0.0
    %910 = vmatpush2.msra.mxu0 0.0
    %911 = vmatprep.subr.mxu0 0.0
    %912 = vmatpush2.msra.mxu0 0.0
    %913 = vmatprep.subr.mxu0 0.0
    %914 = vmatpush2.msra.mxu0 0.0
    %915 = vmatprep.subr.mxu0 0.0
    %916 = vmatpush2.msra.mxu0 0.0
    %917 = vmatprep.subr.mxu0 0.0
    %918 = vmatpush2.msra.mxu0 0.0
    %919 = vmatprep.subr.mxu0 0.0
    %920 = vmatpush2.msra.mxu0 0.0
    %921 = vmatprep.subr.mxu0 0.0
    %922 = vmatpush2.msra.mxu0 0.0
    %923 = vmatprep.subr.mxu0 0.0
    %924 = vmatpush2.msra.mxu0 0.0
    %925 = vmatprep.subr.mxu0 0.0
    %926 = vmatpush2.msra.mxu0 0.0
    %927 = vmatprep.subr.mxu0 0.0
    %928 = vmatpush2.msra.mxu0 0.0
    %929 = vmatprep.subr.mxu0 0.0
    %930 = vmatpush2.msra.mxu0 0.0
    %931 = vmatprep.subr.mxu0 0.0
    %932 = vmatpush2.msra.mxu0 0.0
    %933 = vmatprep.subr.mxu0 0.0
    %934 = vmatpush2.msra.mxu0 0.0
    %935 = vmatprep.subr.mxu0 0.0
    %936 = vmatpush2.msra.mxu0 0.0
    %937 = vmatprep.subr.mxu0 0.0
    %938 = vmatpush2.msra.mxu0 0.0
    %939 = vmatprep.mubr.f32.mxu0 0.0
    %940 = vmatmul.mubr.f32.gmra.mxu0 %v700
    %v941 = vpop.f32.mrf.mxu0
    %v942 = vadd.f32 0.0, %v941
    %v943 = vpop.f32.mrf.mxu0
    %944 = vdwg.mxu0
    %v945 = vadd.f32 %v874, %v942
    %v946 = vxor.u32 %v945, 2147483648
    %v947 = vmul.f32 %v946, 1.442695
    %v948 = vpow.pop %v947
    %v949 = vadd.f32 %v948, 1.0
    %v950 = vrcp.pop %v949
    %v951 = vmul.f32 1.0, %v950
    %v952 = vtanh.pop %v945
    %v953 = vmul.f32 %v951, %v690
    %955 = vrot.lane.b32.xlu0 %v952, 64
    %v956 = vpop.permute.xlu0 %955
    %v958 = vmul.f32 %v951, %v956
    %960 = vrot.lane.b32.xlu0 %v958, 32
    %v961 = vpop.permute.xlu0 %960
    %v963 = vadd.f32 %v953, %v961
    %v964 = vtanh.pop %v963
    %966 = vrot.lane.b32.xlu0 %v964, 64
    %v967 = vpop.permute.xlu0 %966
    %v969 = vmul.f32 %v951, %v967
    %971 = vrot.lane.b32.xlu0 %v969, 32
    %v972 = vpop.permute.xlu0 %971
    %v973 = vsel %vm236, %v972, 0
    %975 = vmatprep.subr.mxu0 0.0
    %976 = vmatpush1.msra.mxu0 0.0
    %977 = vmatprep.subr.mxu0 0.0
    %978 = vmatpush1.msra.mxu0 0.0
    %979 = vmatprep.subr.mxu0 0.0
    %980 = vmatpush1.msra.mxu0 0.0
    %981 = vmatprep.subr.mxu0 0.0
    %982 = vmatpush1.msra.mxu0 0.0
    %983 = vmatprep.subr.mxu0 0.0
    %984 = vmatpush1.msra.mxu0 0.0
    %985 = vmatprep.subr.mxu0 0.0
    %986 = vmatpush1.msra.mxu0 0.0
    %987 = vmatprep.subr.mxu0 0.0
    %988 = vmatpush1.msra.mxu0 0.0
    %989 = vmatprep.subr.mxu0 0.0
    %990 = vmatpush1.msra.mxu0 0.0
    %991 = vmatprep.subr.mxu0 0.0
    %992 = vmatpush1.msra.mxu0 0.0
    %993 = vmatprep.subr.mxu0 0.0
    %994 = vmatpush1.msra.mxu0 0.0
    %995 = vmatprep.subr.mxu0 0.0
    %996 = vmatpush1.msra.mxu0 0.0
    %997 = vmatprep.subr.mxu0 0.0
    %998 = vmatpush1.msra.mxu0 0.0
    %999 = vmatprep.subr.mxu0 0.0
    %1000 = vmatpush1.msra.mxu0 %v125
    %1001 = vmatprep.subr.mxu0 0.0
    %1002 = vmatpush1.msra.mxu0 %v124
    %1003 = vmatprep.subr.mxu0 0.0
    %1004 = vmatpush1.msra.mxu0 %v123
    %1005 = vmatprep.subr.mxu0 0.0
    %1006 = vmatpush1.msra.mxu0 %v122
    %1007 = vmatprep.subr.mxu0 0.0
    %1008 = vmatpush2.msra.mxu0 0.0
    %1009 = vmatprep.subr.mxu0 0.0
    %1010 = vmatpush2.msra.mxu0 0.0
    %1011 = vmatprep.subr.mxu0 0.0
    %1012 = vmatpush2.msra.mxu0 0.0
    %1013 = vmatprep.subr.mxu0 0.0
    %1014 = vmatpush2.msra.mxu0 0.0
    %1015 = vmatprep.subr.mxu0 0.0
    %1016 = vmatpush2.msra.mxu0 0.0
    %1017 = vmatprep.subr.mxu0 0.0
    %1018 = vmatpush2.msra.mxu0 0.0
    %1019 = vmatprep.subr.mxu0 0.0
    %1020 = vmatpush2.msra.mxu0 0.0
    %1021 = vmatprep.subr.mxu0 0.0
    %1022 = vmatpush2.msra.mxu0 0.0
    %1023 = vmatprep.subr.mxu0 0.0
    %1024 = vmatpush2.msra.mxu0 0.0
    %1025 = vmatprep.subr.mxu0 0.0
    %1026 = vmatpush2.msra.mxu0 0.0
    %1027 = vmatprep.subr.mxu0 0.0
    %1028 = vmatpush2.msra.mxu0 0.0
    %1029 = vmatprep.subr.mxu0 0.0
    %1030 = vmatpush2.msra.mxu0 0.0
    %1031 = vmatprep.subr.mxu0 0.0
    %1032 = vmatpush2.msra.mxu0 0.0
    %1033 = vmatprep.subr.mxu0 0.0
    %1034 = vmatpush2.msra.mxu0 0.0
    %1035 = vmatprep.subr.mxu0 0.0
    %1036 = vmatpush2.msra.mxu0 0.0
    %1037 = vmatprep.subr.mxu0 0.0
    %1038 = vmatpush2.msra.mxu0 0.0
    %1039 = vmatprep.mubr.f32.mxu0 0.0
    %1040 = vmatmul.mubr.f32.gmra.mxu0 %v973
    %v1041 = vpop.f32.mrf.mxu0
    %v1042 = vadd.f32 %v871, %v1041
    %v1043 = vpop.f32.mrf.mxu0
    %1044 = vdwg.mxu0
    %v1045 = vadd.f32 %v1042, %v492
    %v1046 = vxor.u32 %v1045, 2147483648
    %v1047 = vmul.f32 %v1046, 1.442695
    %v1048 = vpow.pop %v1047
    %v1049 = vadd.f32 %v1048, 1.0
    %v1050 = vrcp.pop %v1049
    %v1051 = vmul.f32 1.0, %v1050
    %v1052 = vtanh.pop %v1045
    %v1053 = vmul.f32 %v1051, %v790
    %1055 = vrot.lane.b32.xlu0 %v1052, 64
    %v1056 = vpop.permute.xlu0 %1055
    %v1058 = vmul.f32 %v1051, %v1056
    %1060 = vrot.lane.b32.xlu0 %v1058, 32
    %v1061 = vpop.permute.xlu0 %1060
    %v1063 = vadd.f32 %v1053, %v1061
    %v1064 = vtanh.pop %v1063
    %1066 = vrot.lane.b32.xlu0 %v1064, 64
    %v1067 = vpop.permute.xlu0 %1066
    %v1069 = vmul.f32 %v1051, %v1067
    %1071 = vrot.lane.b32.xlu0 %v1069, 32
    %v1072 = vpop.permute.xlu0 %1071
    %1074 = vst.msk [vmem:[#allocation4 + $0x4] sm:$0x3] %vm527, %v1072
    %v1075 = vsel %vm236, %v1072, 0
    %1077 = vmatprep.subr.mxu0 0.0
    %1078 = vmatpush1.msra.mxu0 0.0
    %1079 = vmatprep.subr.mxu0 0.0
    %1080 = vmatpush1.msra.mxu0 0.0
    %1081 = vmatprep.subr.mxu0 0.0
    %1082 = vmatpush1.msra.mxu0 0.0
    %1083 = vmatprep.subr.mxu0 0.0
    %1084 = vmatpush1.msra.mxu0 0.0
    %1085 = vmatprep.subr.mxu0 0.0
    %1086 = vmatpush1.msra.mxu0 0.0
    %1087 = vmatprep.subr.mxu0 0.0
    %1088 = vmatpush1.msra.mxu0 0.0
    %1089 = vmatprep.subr.mxu0 0.0
    %1090 = vmatpush1.msra.mxu0 0.0
    %1091 = vmatprep.subr.mxu0 0.0
    %1092 = vmatpush1.msra.mxu0 0.0
    %1093 = vmatprep.subr.mxu0 0.0
    %1094 = vmatpush1.msra.mxu0 0.0
    %1095 = vmatprep.subr.mxu0 0.0
    %1096 = vmatpush1.msra.mxu0 0.0
    %1097 = vmatprep.subr.mxu0 0.0
    %1098 = vmatpush1.msra.mxu0 0.0
    %1099 = vmatprep.subr.mxu0 0.0
    %1100 = vmatpush1.msra.mxu0 0.0
    %1101 = vmatprep.subr.mxu0 0.0
    %1102 = vmatpush1.msra.mxu0 %v129
    %1103 = vmatprep.subr.mxu0 0.0
    %1104 = vmatpush1.msra.mxu0 %v128
    %1105 = vmatprep.subr.mxu0 0.0
    %1106 = vmatpush1.msra.mxu0 %v127
    %1107 = vmatprep.subr.mxu0 0.0
    %1108 = vmatpush1.msra.mxu0 %v126
    %1109 = vmatprep.subr.mxu0 0.0
    %1110 = vmatpush2.msra.mxu0 0.0
    %1111 = vmatprep.subr.mxu0 0.0
    %1112 = vmatpush2.msra.mxu0 0.0
    %1113 = vmatprep.subr.mxu0 0.0
    %1114 = vmatpush2.msra.mxu0 0.0
    %1115 = vmatprep.subr.mxu0 0.0
    %1116 = vmatpush2.msra.mxu0 0.0
    %1117 = vmatprep.subr.mxu0 0.0
    %1118 = vmatpush2.msra.mxu0 0.0
    %1119 = vmatprep.subr.mxu0 0.0
    %1120 = vmatpush2.msra.mxu0 0.0
    %1121 = vmatprep.subr.mxu0 0.0
    %1122 = vmatpush2.msra.mxu0 0.0
    %1123 = vmatprep.subr.mxu0 0.0
    %1124 = vmatpush2.msra.mxu0 0.0
    %1125 = vmatprep.subr.mxu0 0.0
    %1126 = vmatpush2.msra.mxu0 0.0
    %1127 = vmatprep.subr.mxu0 0.0
    %1128 = vmatpush2.msra.mxu0 0.0
    %1129 = vmatprep.subr.mxu0 0.0
    %1130 = vmatpush2.msra.mxu0 0.0
    %1131 = vmatprep.subr.mxu0 0.0
    %1132 = vmatpush2.msra.mxu0 0.0
    %1133 = vmatprep.subr.mxu0 0.0
    %1134 = vmatpush2.msra.mxu0 0.0
    %1135 = vmatprep.subr.mxu0 0.0
    %1136 = vmatpush2.msra.mxu0 0.0
    %1137 = vmatprep.subr.mxu0 0.0
    %1138 = vmatpush2.msra.mxu0 0.0
    %1139 = vmatprep.subr.mxu0 0.0
    %1140 = vmatpush2.msra.mxu0 0.0
    %1141 = vmatprep.mubr.f32.mxu0 0.0
    %1142 = vmatmul.mubr.f32.gmra.mxu0 %v1075
    %v1143 = vpop.f32.mrf.mxu0
    %v1144 = vadd.f32 0.0, %v1143
    %v1145 = vpop.f32.mrf.mxu0
    %1146 = vdwg.mxu0
    %v1147 = vld [vmem:[#allocation3 + $0x6] sm:$0x3]
    %1148 = vmatprep.subr.mxu0 0.0
    %1149 = vmatpush1.msra.mxu0 0.0
    %1150 = vmatprep.subr.mxu0 0.0
    %1151 = vmatpush1.msra.mxu0 0.0
    %1152 = vmatprep.subr.mxu0 0.0
    %1153 = vmatpush1.msra.mxu0 0.0
    %1154 = vmatprep.subr.mxu0 0.0
    %1155 = vmatpush1.msra.mxu0 0.0
    %1156 = vmatprep.subr.mxu0 0.0
    %1157 = vmatpush1.msra.mxu0 0.0
    %1158 = vmatprep.subr.mxu0 0.0
    %1159 = vmatpush1.msra.mxu0 0.0
    %1160 = vmatprep.subr.mxu0 0.0
    %1161 = vmatpush1.msra.mxu0 0.0
    %1162 = vmatprep.subr.mxu0 0.0
    %1163 = vmatpush1.msra.mxu0 0.0
    %1164 = vmatprep.subr.mxu0 0.0
    %1165 = vmatpush1.msra.mxu0 0.0
    %1166 = vmatprep.subr.mxu0 0.0
    %1167 = vmatpush1.msra.mxu0 0.0
    %1168 = vmatprep.subr.mxu0 0.0
    %1169 = vmatpush1.msra.mxu0 0.0
    %1170 = vmatprep.subr.mxu0 0.0
    %1171 = vmatpush1.msra.mxu0 0.0
    %1172 = vmatprep.subr.mxu0 0.0
    %1173 = vmatpush1.msra.mxu0 %v121
    %1174 = vmatprep.subr.mxu0 0.0
    %1175 = vmatpush1.msra.mxu0 %v120
    %1176 = vmatprep.subr.mxu0 0.0
    %1177 = vmatpush1.msra.mxu0 %v119
    %1178 = vmatprep.subr.mxu0 0.0
    %1179 = vmatpush1.msra.mxu0 %v118
    %1180 = vmatprep.subr.mxu0 0.0
    %1181 = vmatpush2.msra.mxu0 0.0
    %1182 = vmatprep.subr.mxu0 0.0
    %1183 = vmatpush2.msra.mxu0 0.0
    %1184 = vmatprep.subr.mxu0 0.0
    %1185 = vmatpush2.msra.mxu0 0.0
    %1186 = vmatprep.subr.mxu0 0.0
    %1187 = vmatpush2.msra.mxu0 0.0
    %1188 = vmatprep.subr.mxu0 0.0
    %1189 = vmatpush2.msra.mxu0 0.0
    %1190 = vmatprep.subr.mxu0 0.0
    %1191 = vmatpush2.msra.mxu0 0.0
    %1192 = vmatprep.subr.mxu0 0.0
    %1193 = vmatpush2.msra.mxu0 0.0
    %1194 = vmatprep.subr.mxu0 0.0
    %1195 = vmatpush2.msra.mxu0 0.0
    %1196 = vmatprep.subr.mxu0 0.0
    %1197 = vmatpush2.msra.mxu0 0.0
    %1198 = vmatprep.subr.mxu0 0.0
    %1199 = vmatpush2.msra.mxu0 0.0
    %1200 = vmatprep.subr.mxu0 0.0
    %1201 = vmatpush2.msra.mxu0 0.0
    %1202 = vmatprep.subr.mxu0 0.0
    %1203 = vmatpush2.msra.mxu0 0.0
    %1204 = vmatprep.subr.mxu0 0.0
    %1205 = vmatpush2.msra.mxu0 0.0
    %1206 = vmatprep.subr.mxu0 0.0
    %1207 = vmatpush2.msra.mxu0 0.0
    %1208 = vmatprep.subr.mxu0 0.0
    %1209 = vmatpush2.msra.mxu0 0.0
    %1210 = vmatprep.subr.mxu0 0.0
    %1211 = vmatpush2.msra.mxu0 0.0
    %1212 = vmatprep.mubr.f32.mxu0 0.0
    %1213 = vmatmul.mubr.f32.gmra.mxu0 %v973
    %v1214 = vpop.f32.mrf.mxu0
    %v1215 = vadd.f32 0.0, %v1214
    %v1216 = vpop.f32.mrf.mxu0
    %1217 = vdwg.mxu0
    %v1218 = vadd.f32 %v1147, %v1215
    %v1219 = vxor.u32 %v1218, 2147483648
    %v1220 = vmul.f32 %v1219, 1.442695
    %v1221 = vpow.pop %v1220
    %v1222 = vadd.f32 %v1221, 1.0
    %v1223 = vrcp.pop %v1222
    %v1224 = vmul.f32 1.0, %v1223
    %v1225 = vtanh.pop %v1218
    %v1226 = vmul.f32 %v1224, %v963
    %1228 = vrot.lane.b32.xlu0 %v1225, 64
    %v1229 = vpop.permute.xlu0 %1228
    %v1231 = vmul.f32 %v1224, %v1229
    %1233 = vrot.lane.b32.xlu0 %v1231, 32
    %v1234 = vpop.permute.xlu0 %1233
    %v1236 = vadd.f32 %v1226, %v1234
    %v1237 = vtanh.pop %v1236
    %1239 = vrot.lane.b32.xlu0 %v1237, 64
    %v1240 = vpop.permute.xlu0 %1239
    %v1242 = vmul.f32 %v1224, %v1240
    %1244 = vrot.lane.b32.xlu0 %v1242, 32
    %v1245 = vpop.permute.xlu0 %1244
    %v1246 = vsel %vm236, %v1245, 0
    %1248 = vmatprep.subr.mxu0 0.0
    %1249 = vmatpush1.msra.mxu0 0.0
    %1250 = vmatprep.subr.mxu0 0.0
    %1251 = vmatpush1.msra.mxu0 0.0
    %1252 = vmatprep.subr.mxu0 0.0
    %1253 = vmatpush1.msra.mxu0 0.0
    %1254 = vmatprep.subr.mxu0 0.0
    %1255 = vmatpush1.msra.mxu0 0.0
    %1256 = vmatprep.subr.mxu0 0.0
    %1257 = vmatpush1.msra.mxu0 0.0
    %1258 = vmatprep.subr.mxu0 0.0
    %1259 = vmatpush1.msra.mxu0 0.0
    %1260 = vmatprep.subr.mxu0 0.0
    %1261 = vmatpush1.msra.mxu0 0.0
    %1262 = vmatprep.subr.mxu0 0.0
    %1263 = vmatpush1.msra.mxu0 0.0
    %1264 = vmatprep.subr.mxu0 0.0
    %1265 = vmatpush1.msra.mxu0 0.0
    %1266 = vmatprep.subr.mxu0 0.0
    %1267 = vmatpush1.msra.mxu0 0.0
    %1268 = vmatprep.subr.mxu0 0.0
    %1269 = vmatpush1.msra.mxu0 0.0
    %1270 = vmatprep.subr.mxu0 0.0
    %1271 = vmatpush1.msra.mxu0 0.0
    %1272 = vmatprep.subr.mxu0 0.0
    %1273 = vmatpush1.msra.mxu0 %v125
    %1274 = vmatprep.subr.mxu0 0.0
    %1275 = vmatpush1.msra.mxu0 %v124
    %1276 = vmatprep.subr.mxu0 0.0
    %1277 = vmatpush1.msra.mxu0 %v123
    %1278 = vmatprep.subr.mxu0 0.0
    %1279 = vmatpush1.msra.mxu0 %v122
    %1280 = vmatprep.subr.mxu0 0.0
    %1281 = vmatpush2.msra.mxu0 0.0
    %1282 = vmatprep.subr.mxu0 0.0
    %1283 = vmatpush2.msra.mxu0 0.0
    %1284 = vmatprep.subr.mxu0 0.0
    %1285 = vmatpush2.msra.mxu0 0.0
    %1286 = vmatprep.subr.mxu0 0.0
    %1287 = vmatpush2.msra.mxu0 0.0
    %1288 = vmatprep.subr.mxu0 0.0
    %1289 = vmatpush2.msra.mxu0 0.0
    %1290 = vmatprep.subr.mxu0 0.0
    %1291 = vmatpush2.msra.mxu0 0.0
    %1292 = vmatprep.subr.mxu0 0.0
    %1293 = vmatpush2.msra.mxu0 0.0
    %1294 = vmatprep.subr.mxu0 0.0
    %1295 = vmatpush2.msra.mxu0 0.0
    %1296 = vmatprep.subr.mxu0 0.0
    %1297 = vmatpush2.msra.mxu0 0.0
    %1298 = vmatprep.subr.mxu0 0.0
    %1299 = vmatpush2.msra.mxu0 0.0
    %1300 = vmatprep.subr.mxu0 0.0
    %1301 = vmatpush2.msra.mxu0 0.0
    %1302 = vmatprep.subr.mxu0 0.0
    %1303 = vmatpush2.msra.mxu0 0.0
    %1304 = vmatprep.subr.mxu0 0.0
    %1305 = vmatpush2.msra.mxu0 0.0
    %1306 = vmatprep.subr.mxu0 0.0
    %1307 = vmatpush2.msra.mxu0 0.0
    %1308 = vmatprep.subr.mxu0 0.0
    %1309 = vmatpush2.msra.mxu0 0.0
    %1310 = vmatprep.subr.mxu0 0.0
    %1311 = vmatpush2.msra.mxu0 0.0
    %1312 = vmatprep.mubr.f32.mxu0 0.0
    %1313 = vmatmul.mubr.f32.gmra.mxu0 %v1246
    %v1314 = vpop.f32.mrf.mxu0
    %v1315 = vadd.f32 %v1144, %v1314
    %v1316 = vpop.f32.mrf.mxu0
    %1317 = vdwg.mxu0
    %v1318 = vadd.f32 %v1315, %v492
    %v1319 = vxor.u32 %v1318, 2147483648
    %v1320 = vmul.f32 %v1319, 1.442695
    %v1321 = vpow.pop %v1320
    %v1322 = vadd.f32 %v1321, 1.0
    %v1323 = vrcp.pop %v1322
    %v1324 = vmul.f32 1.0, %v1323
    %v1325 = vtanh.pop %v1318
    %v1326 = vmul.f32 %v1324, %v1063
    %1328 = vrot.lane.b32.xlu0 %v1325, 64
    %v1329 = vpop.permute.xlu0 %1328
    %v1331 = vmul.f32 %v1324, %v1329
    %1333 = vrot.lane.b32.xlu0 %v1331, 32
    %v1334 = vpop.permute.xlu0 %1333
    %v1336 = vadd.f32 %v1326, %v1334
    %v1337 = vtanh.pop %v1336
    %1339 = vrot.lane.b32.xlu0 %v1337, 64
    %v1340 = vpop.permute.xlu0 %1339
    %v1342 = vmul.f32 %v1324, %v1340
    %1344 = vrot.lane.b32.xlu0 %v1342, 32
    %v1345 = vpop.permute.xlu0 %1344
    %1347 = vst.msk [vmem:[#allocation4 + $0x6] sm:$0x3] %vm527, %v1345
    %v1348 = vsel %vm236, %v1345, 0
    %1350 = vmatprep.subr.mxu0 0.0
    %1351 = vmatpush1.msra.mxu0 0.0
    %1352 = vmatprep.subr.mxu0 0.0
    %1353 = vmatpush1.msra.mxu0 0.0
    %1354 = vmatprep.subr.mxu0 0.0
    %1355 = vmatpush1.msra.mxu0 0.0
    %1356 = vmatprep.subr.mxu0 0.0
    %1357 = vmatpush1.msra.mxu0 0.0
    %1358 = vmatprep.subr.mxu0 0.0
    %1359 = vmatpush1.msra.mxu0 0.0
    %1360 = vmatprep.subr.mxu0 0.0
    %1361 = vmatpush1.msra.mxu0 0.0
    %1362 = vmatprep.subr.mxu0 0.0
    %1363 = vmatpush1.msra.mxu0 0.0
    %1364 = vmatprep.subr.mxu0 0.0
    %1365 = vmatpush1.msra.mxu0 0.0
    %1366 = vmatprep.subr.mxu0 0.0
    %1367 = vmatpush1.msra.mxu0 0.0
    %1368 = vmatprep.subr.mxu0 0.0
    %1369 = vmatpush1.msra.mxu0 0.0
    %1370 = vmatprep.subr.mxu0 0.0
    %1371 = vmatpush1.msra.mxu0 0.0
    %1372 = vmatprep.subr.mxu0 0.0
    %1373 = vmatpush1.msra.mxu0 0.0
    %1374 = vmatprep.subr.mxu0 0.0
    %1375 = vmatpush1.msra.mxu0 %v129
    %1376 = vmatprep.subr.mxu0 0.0
    %1377 = vmatpush1.msra.mxu0 %v128
    %1378 = vmatprep.subr.mxu0 0.0
    %1379 = vmatpush1.msra.mxu0 %v127
    %1380 = vmatprep.subr.mxu0 0.0
    %1381 = vmatpush1.msra.mxu0 %v126
    %1382 = vmatprep.subr.mxu0 0.0
    %1383 = vmatpush2.msra.mxu0 0.0
    %1384 = vmatprep.subr.mxu0 0.0
    %1385 = vmatpush2.msra.mxu0 0.0
    %1386 = vmatprep.subr.mxu0 0.0
    %1387 = vmatpush2.msra.mxu0 0.0
    %1388 = vmatprep.subr.mxu0 0.0
    %1389 = vmatpush2.msra.mxu0 0.0
    %1390 = vmatprep.subr.mxu0 0.0
    %1391 = vmatpush2.msra.mxu0 0.0
    %1392 = vmatprep.subr.mxu0 0.0
    %1393 = vmatpush2.msra.mxu0 0.0
    %1394 = vmatprep.subr.mxu0 0.0
    %1395 = vmatpush2.msra.mxu0 0.0
    %1396 = vmatprep.subr.mxu0 0.0
    %1397 = vmatpush2.msra.mxu0 0.0
    %1398 = vmatprep.subr.mxu0 0.0
    %1399 = vmatpush2.msra.mxu0 0.0
    %1400 = vmatprep.subr.mxu0 0.0
    %1401 = vmatpush2.msra.mxu0 0.0
    %1402 = vmatprep.subr.mxu0 0.0
    %1403 = vmatpush2.msra.mxu0 0.0
    %1404 = vmatprep.subr.mxu0 0.0
    %1405 = vmatpush2.msra.mxu0 0.0
    %1406 = vmatprep.subr.mxu0 0.0
    %1407 = vmatpush2.msra.mxu0 0.0
    %1408 = vmatprep.subr.mxu0 0.0
    %1409 = vmatpush2.msra.mxu0 0.0
    %1410 = vmatprep.subr.mxu0 0.0
    %1411 = vmatpush2.msra.mxu0 0.0
    %1412 = vmatprep.subr.mxu0 0.0
    %1413 = vmatpush2.msra.mxu0 0.0
    %1414 = vmatprep.mubr.f32.mxu0 0.0
    %1415 = vmatmul.mubr.f32.gmra.mxu0 %v1348
    %v1416 = vpop.f32.mrf.mxu0
    %v1417 = vadd.f32 0.0, %v1416
    %v1418 = vpop.f32.mrf.mxu0
    %1419 = vdwg.mxu0
    %v1420 = vld [vmem:[#allocation3 + $0x8] sm:$0x3]
    %1421 = vmatprep.subr.mxu0 0.0
    %1422 = vmatpush1.msra.mxu0 0.0
    %1423 = vmatprep.subr.mxu0 0.0
    %1424 = vmatpush1.msra.mxu0 0.0
    %1425 = vmatprep.subr.mxu0 0.0
    %1426 = vmatpush1.msra.mxu0 0.0
    %1427 = vmatprep.subr.mxu0 0.0
    %1428 = vmatpush1.msra.mxu0 0.0
    %1429 = vmatprep.subr.mxu0 0.0
    %1430 = vmatpush1.msra.mxu0 0.0
    %1431 = vmatprep.subr.mxu0 0.0
    %1432 = vmatpush1.msra.mxu0 0.0
    %1433 = vmatprep.subr.mxu0 0.0
    %1434 = vmatpush1.msra.mxu0 0.0
    %1435 = vmatprep.subr.mxu0 0.0
    %1436 = vmatpush1.msra.mxu0 0.0
    %1437 = vmatprep.subr.mxu0 0.0
    %1438 = vmatpush1.msra.mxu0 0.0
    %1439 = vmatprep.subr.mxu0 0.0
    %1440 = vmatpush1.msra.mxu0 0.0
    %1441 = vmatprep.subr.mxu0 0.0
    %1442 = vmatpush1.msra.mxu0 0.0
    %1443 = vmatprep.subr.mxu0 0.0
    %1444 = vmatpush1.msra.mxu0 0.0
    %1445 = vmatprep.subr.mxu0 0.0
    %1446 = vmatpush1.msra.mxu0 %v121
    %1447 = vmatprep.subr.mxu0 0.0
    %1448 = vmatpush1.msra.mxu0 %v120
    %1449 = vmatprep.subr.mxu0 0.0
    %1450 = vmatpush1.msra.mxu0 %v119
    %1451 = vmatprep.subr.mxu0 0.0
    %1452 = vmatpush1.msra.mxu0 %v118
    %1453 = vmatprep.subr.mxu0 0.0
    %1454 = vmatpush2.msra.mxu0 0.0
    %1455 = vmatprep.subr.mxu0 0.0
    %1456 = vmatpush2.msra.mxu0 0.0
    %1457 = vmatprep.subr.mxu0 0.0
    %1458 = vmatpush2.msra.mxu0 0.0
    %1459 = vmatprep.subr.mxu0 0.0
    %1460 = vmatpush2.msra.mxu0 0.0
    %1461 = vmatprep.subr.mxu0 0.0
    %1462 = vmatpush2.msra.mxu0 0.0
    %1463 = vmatprep.subr.mxu0 0.0
    %1464 = vmatpush2.msra.mxu0 0.0
    %1465 = vmatprep.subr.mxu0 0.0
    %1466 = vmatpush2.msra.mxu0 0.0
    %1467 = vmatprep.subr.mxu0 0.0
    %1468 = vmatpush2.msra.mxu0 0.0
    %1469 = vmatprep.subr.mxu0 0.0
    %1470 = vmatpush2.msra.mxu0 0.0
    %1471 = vmatprep.subr.mxu0 0.0
    %1472 = vmatpush2.msra.mxu0 0.0
    %1473 = vmatprep.subr.mxu0 0.0
    %1474 = vmatpush2.msra.mxu0 0.0
    %1475 = vmatprep.subr.mxu0 0.0
    %1476 = vmatpush2.msra.mxu0 0.0
    %1477 = vmatprep.subr.mxu0 0.0
    %1478 = vmatpush2.msra.mxu0 0.0
    %1479 = vmatprep.subr.mxu0 0.0
    %1480 = vmatpush2.msra.mxu0 0.0
    %1481 = vmatprep.subr.mxu0 0.0
    %1482 = vmatpush2.msra.mxu0 0.0
    %1483 = vmatprep.subr.mxu0 0.0
    %1484 = vmatpush2.msra.mxu0 0.0
    %1485 = vmatprep.mubr.f32.mxu0 0.0
    %1486 = vmatmul.mubr.f32.gmra.mxu0 %v1246
    %v1487 = vpop.f32.mrf.mxu0
    %v1488 = vadd.f32 0.0, %v1487
    %v1489 = vpop.f32.mrf.mxu0
    %1490 = vdwg.mxu0
    %v1491 = vadd.f32 %v1420, %v1488
    %v1492 = vxor.u32 %v1491, 2147483648
    %v1493 = vmul.f32 %v1492, 1.442695
    %v1494 = vpow.pop %v1493
    %v1495 = vadd.f32 %v1494, 1.0
    %v1496 = vrcp.pop %v1495
    %v1497 = vmul.f32 1.0, %v1496
    %v1498 = vtanh.pop %v1491
    %v1499 = vmul.f32 %v1497, %v1236
    %1501 = vrot.lane.b32.xlu0 %v1498, 64
    %v1502 = vpop.permute.xlu0 %1501
    %v1504 = vmul.f32 %v1497, %v1502
    %1506 = vrot.lane.b32.xlu0 %v1504, 32
    %v1507 = vpop.permute.xlu0 %1506
    %v1509 = vadd.f32 %v1499, %v1507
    %v1510 = vtanh.pop %v1509
    %1512 = vrot.lane.b32.xlu0 %v1510, 64
    %v1513 = vpop.permute.xlu0 %1512
    %v1515 = vmul.f32 %v1497, %v1513
    %1517 = vrot.lane.b32.xlu0 %v1515, 32
    %v1518 = vpop.permute.xlu0 %1517
    %v1519 = vsel %vm236, %v1518, 0
    %1521 = vmatprep.subr.mxu0 0.0
    %1522 = vmatpush1.msra.mxu0 0.0
    %1523 = vmatprep.subr.mxu0 0.0
    %1524 = vmatpush1.msra.mxu0 0.0
    %1525 = vmatprep.subr.mxu0 0.0
    %1526 = vmatpush1.msra.mxu0 0.0
    %1527 = vmatprep.subr.mxu0 0.0
    %1528 = vmatpush1.msra.mxu0 0.0
    %1529 = vmatprep.subr.mxu0 0.0
    %1530 = vmatpush1.msra.mxu0 0.0
    %1531 = vmatprep.subr.mxu0 0.0
    %1532 = vmatpush1.msra.mxu0 0.0
    %1533 = vmatprep.subr.mxu0 0.0
    %1534 = vmatpush1.msra.mxu0 0.0
    %1535 = vmatprep.subr.mxu0 0.0
    %1536 = vmatpush1.msra.mxu0 0.0
    %1537 = vmatprep.subr.mxu0 0.0
    %1538 = vmatpush1.msra.mxu0 0.0
    %1539 = vmatprep.subr.mxu0 0.0
    %1540 = vmatpush1.msra.mxu0 0.0
    %1541 = vmatprep.subr.mxu0 0.0
    %1542 = vmatpush1.msra.mxu0 0.0
    %1543 = vmatprep.subr.mxu0 0.0
    %1544 = vmatpush1.msra.mxu0 0.0
    %1545 = vmatprep.subr.mxu0 0.0
    %1546 = vmatpush1.msra.mxu0 %v125
    %1547 = vmatprep.subr.mxu0 0.0
    %1548 = vmatpush1.msra.mxu0 %v124
    %1549 = vmatprep.subr.mxu0 0.0
    %1550 = vmatpush1.msra.mxu0 %v123
    %1551 = vmatprep.subr.mxu0 0.0
    %1552 = vmatpush1.msra.mxu0 %v122
    %1553 = vmatprep.subr.mxu0 0.0
    %1554 = vmatpush2.msra.mxu0 0.0
    %1555 = vmatprep.subr.mxu0 0.0
    %1556 = vmatpush2.msra.mxu0 0.0
    %1557 = vmatprep.subr.mxu0 0.0
    %1558 = vmatpush2.msra.mxu0 0.0
    %1559 = vmatprep.subr.mxu0 0.0
    %1560 = vmatpush2.msra.mxu0 0.0
    %1561 = vmatprep.subr.mxu0 0.0
    %1562 = vmatpush2.msra.mxu0 0.0
    %1563 = vmatprep.subr.mxu0 0.0
    %1564 = vmatpush2.msra.mxu0 0.0
    %1565 = vmatprep.subr.mxu0 0.0
    %1566 = vmatpush2.msra.mxu0 0.0
    %1567 = vmatprep.subr.mxu0 0.0
    %1568 = vmatpush2.msra.mxu0 0.0
    %1569 = vmatprep.subr.mxu0 0.0
    %1570 = vmatpush2.msra.mxu0 0.0
    %1571 = vmatprep.subr.mxu0 0.0
    %1572 = vmatpush2.msra.mxu0 0.0
    %1573 = vmatprep.subr.mxu0 0.0
    %1574 = vmatpush2.msra.mxu0 0.0
    %1575 = vmatprep.subr.mxu0 0.0
    %1576 = vmatpush2.msra.mxu0 0.0
    %1577 = vmatprep.subr.mxu0 0.0
    %1578 = vmatpush2.msra.mxu0 0.0
    %1579 = vmatprep.subr.mxu0 0.0
    %1580 = vmatpush2.msra.mxu0 0.0
    %1581 = vmatprep.subr.mxu0 0.0
    %1582 = vmatpush2.msra.mxu0 0.0
    %1583 = vmatprep.subr.mxu0 0.0
    %1584 = vmatpush2.msra.mxu0 0.0
    %1585 = vmatprep.mubr.f32.mxu0 0.0
    %1586 = vmatmul.mubr.f32.gmra.mxu0 %v1519
    %v1587 = vpop.f32.mrf.mxu0
    %v1588 = vadd.f32 %v1417, %v1587
    %v1589 = vpop.f32.mrf.mxu0
    %1590 = vdwg.mxu0
    %v1591 = vadd.f32 %v1588, %v492
    %v1592 = vxor.u32 %v1591, 2147483648
    %v1593 = vmul.f32 %v1592, 1.442695
    %v1594 = vpow.pop %v1593
    %v1595 = vadd.f32 %v1594, 1.0
    %v1596 = vrcp.pop %v1595
    %v1597 = vmul.f32 1.0, %v1596
    %v1598 = vtanh.pop %v1591
    %v1599 = vmul.f32 %v1597, %v1336
    %1601 = vrot.lane.b32.xlu0 %v1598, 64
    %v1602 = vpop.permute.xlu0 %1601
    %v1604 = vmul.f32 %v1597, %v1602
    %1606 = vrot.lane.b32.xlu0 %v1604, 32
    %v1607 = vpop.permute.xlu0 %1606
    %v1609 = vadd.f32 %v1599, %v1607
    %v1610 = vtanh.pop %v1609
    %1612 = vrot.lane.b32.xlu0 %v1610, 64
    %v1613 = vpop.permute.xlu0 %1612
    %v1615 = vmul.f32 %v1597, %v1613
    %1617 = vrot.lane.b32.xlu0 %v1615, 32
    %v1618 = vpop.permute.xlu0 %1617
    %1620 = vst.msk [vmem:[#allocation4 + $0x8] sm:$0x3] %vm527, %v1618
    %v1621 = vsel %vm236, %v1618, 0
    %1623 = vmatprep.subr.mxu0 0.0
    %1624 = vmatpush1.msra.mxu0 0.0
    %1625 = vmatprep.subr.mxu0 0.0
    %1626 = vmatpush1.msra.mxu0 0.0
    %1627 = vmatprep.subr.mxu0 0.0
    %1628 = vmatpush1.msra.mxu0 0.0
    %1629 = vmatprep.subr.mxu0 0.0
    %1630 = vmatpush1.msra.mxu0 0.0
    %1631 = vmatprep.subr.mxu0 0.0
    %1632 = vmatpush1.msra.mxu0 0.0
    %1633 = vmatprep.subr.mxu0 0.0
    %1634 = vmatpush1.msra.mxu0 0.0
    %1635 = vmatprep.subr.mxu0 0.0
    %1636 = vmatpush1.msra.mxu0 0.0
    %1637 = vmatprep.subr.mxu0 0.0
    %1638 = vmatpush1.msra.mxu0 0.0
    %1639 = vmatprep.subr.mxu0 0.0
    %1640 = vmatpush1.msra.mxu0 0.0
    %1641 = vmatprep.subr.mxu0 0.0
    %1642 = vmatpush1.msra.mxu0 0.0
    %1643 = vmatprep.subr.mxu0 0.0
    %1644 = vmatpush1.msra.mxu0 0.0
    %1645 = vmatprep.subr.mxu0 0.0
    %1646 = vmatpush1.msra.mxu0 0.0
    %1647 = vmatprep.subr.mxu0 0.0
    %1648 = vmatpush1.msra.mxu0 %v129
    %1649 = vmatprep.subr.mxu0 0.0
    %1650 = vmatpush1.msra.mxu0 %v128
    %1651 = vmatprep.subr.mxu0 0.0
    %1652 = vmatpush1.msra.mxu0 %v127
    %1653 = vmatprep.subr.mxu0 0.0
    %1654 = vmatpush1.msra.mxu0 %v126
    %1655 = vmatprep.subr.mxu0 0.0
    %1656 = vmatpush2.msra.mxu0 0.0
    %1657 = vmatprep.subr.mxu0 0.0
    %1658 = vmatpush2.msra.mxu0 0.0
    %1659 = vmatprep.subr.mxu0 0.0
    %1660 = vmatpush2.msra.mxu0 0.0
    %1661 = vmatprep.subr.mxu0 0.0
    %1662 = vmatpush2.msra.mxu0 0.0
    %1663 = vmatprep.subr.mxu0 0.0
    %1664 = vmatpush2.msra.mxu0 0.0
    %1665 = vmatprep.subr.mxu0 0.0
    %1666 = vmatpush2.msra.mxu0 0.0
    %1667 = vmatprep.subr.mxu0 0.0
    %1668 = vmatpush2.msra.mxu0 0.0
    %1669 = vmatprep.subr.mxu0 0.0
    %1670 = vmatpush2.msra.mxu0 0.0
    %1671 = vmatprep.subr.mxu0 0.0
    %1672 = vmatpush2.msra.mxu0 0.0
    %1673 = vmatprep.subr.mxu0 0.0
    %1674 = vmatpush2.msra.mxu0 0.0
    %1675 = vmatprep.subr.mxu0 0.0
    %1676 = vmatpush2.msra.mxu0 0.0
    %1677 = vmatprep.subr.mxu0 0.0
    %1678 = vmatpush2.msra.mxu0 0.0
    %1679 = vmatprep.subr.mxu0 0.0
    %1680 = vmatpush2.msra.mxu0 0.0
    %1681 = vmatprep.subr.mxu0 0.0
    %1682 = vmatpush2.msra.mxu0 0.0
    %1683 = vmatprep.subr.mxu0 0.0
    %1684 = vmatpush2.msra.mxu0 0.0
    %1685 = vmatprep.subr.mxu0 0.0
    %1686 = vmatpush2.msra.mxu0 0.0
    %1687 = vmatprep.mubr.f32.mxu0 0.0
    %1688 = vmatmul.mubr.f32.gmra.mxu0 %v1621
    %v1689 = vpop.f32.mrf.mxu0
    %v1690 = vadd.f32 0.0, %v1689
    %v1691 = vpop.f32.mrf.mxu0
    %1692 = vdwg.mxu0
    %v1693 = vld [vmem:[#allocation3 + $0xa] sm:$0x3]
    %1694 = vmatprep.subr.mxu0 0.0
    %1695 = vmatpush1.msra.mxu0 0.0
    %1696 = vmatprep.subr.mxu0 0.0
    %1697 = vmatpush1.msra.mxu0 0.0
    %1698 = vmatprep.subr.mxu0 0.0
    %1699 = vmatpush1.msra.mxu0 0.0
    %1700 = vmatprep.subr.mxu0 0.0
    %1701 = vmatpush1.msra.mxu0 0.0
    %1702 = vmatprep.subr.mxu0 0.0
    %1703 = vmatpush1.msra.mxu0 0.0
    %1704 = vmatprep.subr.mxu0 0.0
    %1705 = vmatpush1.msra.mxu0 0.0
    %1706 = vmatprep.subr.mxu0 0.0
    %1707 = vmatpush1.msra.mxu0 0.0
    %1708 = vmatprep.subr.mxu0 0.0
    %1709 = vmatpush1.msra.mxu0 0.0
    %1710 = vmatprep.subr.mxu0 0.0
    %1711 = vmatpush1.msra.mxu0 0.0
    %1712 = vmatprep.subr.mxu0 0.0
    %1713 = vmatpush1.msra.mxu0 0.0
    %1714 = vmatprep.subr.mxu0 0.0
    %1715 = vmatpush1.msra.mxu0 0.0
    %1716 = vmatprep.subr.mxu0 0.0
    %1717 = vmatpush1.msra.mxu0 0.0
    %1718 = vmatprep.subr.mxu0 0.0
    %1719 = vmatpush1.msra.mxu0 %v121
    %1720 = vmatprep.subr.mxu0 0.0
    %1721 = vmatpush1.msra.mxu0 %v120
    %1722 = vmatprep.subr.mxu0 0.0
    %1723 = vmatpush1.msra.mxu0 %v119
    %1724 = vmatprep.subr.mxu0 0.0
    %1725 = vmatpush1.msra.mxu0 %v118
    %1726 = vmatprep.subr.mxu0 0.0
    %1727 = vmatpush2.msra.mxu0 0.0
    %1728 = vmatprep.subr.mxu0 0.0
    %1729 = vmatpush2.msra.mxu0 0.0
    %1730 = vmatprep.subr.mxu0 0.0
    %1731 = vmatpush2.msra.mxu0 0.0
    %1732 = vmatprep.subr.mxu0 0.0
    %1733 = vmatpush2.msra.mxu0 0.0
    %1734 = vmatprep.subr.mxu0 0.0
    %1735 = vmatpush2.msra.mxu0 0.0
    %1736 = vmatprep.subr.mxu0 0.0
    %1737 = vmatpush2.msra.mxu0 0.0
    %1738 = vmatprep.subr.mxu0 0.0
    %1739 = vmatpush2.msra.mxu0 0.0
    %1740 = vmatprep.subr.mxu0 0.0
    %1741 = vmatpush2.msra.mxu0 0.0
    %1742 = vmatprep.subr.mxu0 0.0
    %1743 = vmatpush2.msra.mxu0 0.0
    %1744 = vmatprep.subr.mxu0 0.0
    %1745 = vmatpush2.msra.mxu0 0.0
    %1746 = vmatprep.subr.mxu0 0.0
    %1747 = vmatpush2.msra.mxu0 0.0
    %1748 = vmatprep.subr.mxu0 0.0
    %1749 = vmatpush2.msra.mxu0 0.0
    %1750 = vmatprep.subr.mxu0 0.0
    %1751 = vmatpush2.msra.mxu0 0.0
    %1752 = vmatprep.subr.mxu0 0.0
    %1753 = vmatpush2.msra.mxu0 0.0
    %1754 = vmatprep.subr.mxu0 0.0
    %1755 = vmatpush2.msra.mxu0 0.0
    %1756 = vmatprep.subr.mxu0 0.0
    %1757 = vmatpush2.msra.mxu0 0.0
    %1758 = vmatprep.mubr.f32.mxu0 0.0
    %1759 = vmatmul.mubr.f32.gmra.mxu0 %v1519
    %v1760 = vpop.f32.mrf.mxu0
    %v1761 = vadd.f32 0.0, %v1760
    %v1762 = vpop.f32.mrf.mxu0
    %1763 = vdwg.mxu0
    %v1764 = vadd.f32 %v1693, %v1761
    %v1765 = vxor.u32 %v1764, 2147483648
    %v1766 = vmul.f32 %v1765, 1.442695
    %v1767 = vpow.pop %v1766
    %v1768 = vadd.f32 %v1767, 1.0
    %v1769 = vrcp.pop %v1768
    %v1770 = vmul.f32 1.0, %v1769
    %v1771 = vtanh.pop %v1764
    %v1772 = vmul.f32 %v1770, %v1509
    %1774 = vrot.lane.b32.xlu0 %v1771, 64
    %v1775 = vpop.permute.xlu0 %1774
    %v1777 = vmul.f32 %v1770, %v1775
    %1779 = vrot.lane.b32.xlu0 %v1777, 32
    %v1780 = vpop.permute.xlu0 %1779
    %v1782 = vadd.f32 %v1772, %v1780
    %v1783 = vtanh.pop %v1782
    %1785 = vrot.lane.b32.xlu0 %v1783, 64
    %v1786 = vpop.permute.xlu0 %1785
    %v1788 = vmul.f32 %v1770, %v1786
    %1790 = vrot.lane.b32.xlu0 %v1788, 32
    %v1791 = vpop.permute.xlu0 %1790
    %v1792 = vsel %vm236, %v1791, 0
    %1794 = vmatprep.subr.mxu0 0.0
    %1795 = vmatpush1.msra.mxu0 0.0
    %1796 = vmatprep.subr.mxu0 0.0
    %1797 = vmatpush1.msra.mxu0 0.0
    %1798 = vmatprep.subr.mxu0 0.0
    %1799 = vmatpush1.msra.mxu0 0.0
    %1800 = vmatprep.subr.mxu0 0.0
    %1801 = vmatpush1.msra.mxu0 0.0
    %1802 = vmatprep.subr.mxu0 0.0
    %1803 = vmatpush1.msra.mxu0 0.0
    %1804 = vmatprep.subr.mxu0 0.0
    %1805 = vmatpush1.msra.mxu0 0.0
    %1806 = vmatprep.subr.mxu0 0.0
    %1807 = vmatpush1.msra.mxu0 0.0
    %1808 = vmatprep.subr.mxu0 0.0
    %1809 = vmatpush1.msra.mxu0 0.0
    %1810 = vmatprep.subr.mxu0 0.0
    %1811 = vmatpush1.msra.mxu0 0.0
    %1812 = vmatprep.subr.mxu0 0.0
    %1813 = vmatpush1.msra.mxu0 0.0
    %1814 = vmatprep.subr.mxu0 0.0
    %1815 = vmatpush1.msra.mxu0 0.0
    %1816 = vmatprep.subr.mxu0 0.0
    %1817 = vmatpush1.msra.mxu0 0.0
    %1818 = vmatprep.subr.mxu0 0.0
    %1819 = vmatpush1.msra.mxu0 %v125
    %1820 = vmatprep.subr.mxu0 0.0
    %1821 = vmatpush1.msra.mxu0 %v124
    %1822 = vmatprep.subr.mxu0 0.0
    %1823 = vmatpush1.msra.mxu0 %v123
    %1824 = vmatprep.subr.mxu0 0.0
    %1825 = vmatpush1.msra.mxu0 %v122
    %1826 = vmatprep.subr.mxu0 0.0
    %1827 = vmatpush2.msra.mxu0 0.0
    %1828 = vmatprep.subr.mxu0 0.0
    %1829 = vmatpush2.msra.mxu0 0.0
    %1830 = vmatprep.subr.mxu0 0.0
    %1831 = vmatpush2.msra.mxu0 0.0
    %1832 = vmatprep.subr.mxu0 0.0
    %1833 = vmatpush2.msra.mxu0 0.0
    %1834 = vmatprep.subr.mxu0 0.0
    %1835 = vmatpush2.msra.mxu0 0.0
    %1836 = vmatprep.subr.mxu0 0.0
    %1837 = vmatpush2.msra.mxu0 0.0
    %1838 = vmatprep.subr.mxu0 0.0
    %1839 = vmatpush2.msra.mxu0 0.0
    %1840 = vmatprep.subr.mxu0 0.0
    %1841 = vmatpush2.msra.mxu0 0.0
    %1842 = vmatprep.subr.mxu0 0.0
    %1843 = vmatpush2.msra.mxu0 0.0
    %1844 = vmatprep.subr.mxu0 0.0
    %1845 = vmatpush2.msra.mxu0 0.0
    %1846 = vmatprep.subr.mxu0 0.0
    %1847 = vmatpush2.msra.mxu0 0.0
    %1848 = vmatprep.subr.mxu0 0.0
    %1849 = vmatpush2.msra.mxu0 0.0
    %1850 = vmatprep.subr.mxu0 0.0
    %1851 = vmatpush2.msra.mxu0 0.0
    %1852 = vmatprep.subr.mxu0 0.0
    %1853 = vmatpush2.msra.mxu0 0.0
    %1854 = vmatprep.subr.mxu0 0.0
    %1855 = vmatpush2.msra.mxu0 0.0
    %1856 = vmatprep.subr.mxu0 0.0
    %1857 = vmatpush2.msra.mxu0 0.0
    %1858 = vmatprep.mubr.f32.mxu0 0.0
    %1859 = vmatmul.mubr.f32.gmra.mxu0 %v1792
    %v1860 = vpop.f32.mrf.mxu0
    %v1861 = vadd.f32 %v1690, %v1860
    %v1862 = vpop.f32.mrf.mxu0
    %1863 = vdwg.mxu0
    %v1864 = vadd.f32 %v1861, %v492
    %v1865 = vxor.u32 %v1864, 2147483648
    %v1866 = vmul.f32 %v1865, 1.442695
    %v1867 = vpow.pop %v1866
    %v1868 = vadd.f32 %v1867, 1.0
    %v1869 = vrcp.pop %v1868
    %v1870 = vmul.f32 1.0, %v1869
    %v1871 = vtanh.pop %v1864
    %v1872 = vmul.f32 %v1870, %v1609
    %1874 = vrot.lane.b32.xlu0 %v1871, 64
    %v1875 = vpop.permute.xlu0 %1874
    %v1877 = vmul.f32 %v1870, %v1875
    %1879 = vrot.lane.b32.xlu0 %v1877, 32
    %v1880 = vpop.permute.xlu0 %1879
    %v1882 = vadd.f32 %v1872, %v1880
    %v1883 = vtanh.pop %v1882
    %1885 = vrot.lane.b32.xlu0 %v1883, 64
    %v1886 = vpop.permute.xlu0 %1885
    %v1888 = vmul.f32 %v1870, %v1886
    %1890 = vrot.lane.b32.xlu0 %v1888, 32
    %v1891 = vpop.permute.xlu0 %1890
    %1893 = vst.msk [vmem:[#allocation4 + $0xa] sm:$0x3] %vm527, %v1891
    %v1894 = vsel %vm236, %v1891, 0
    %1896 = vmatprep.subr.mxu0 0.0
    %1897 = vmatpush1.msra.mxu0 0.0
    %1898 = vmatprep.subr.mxu0 0.0
    %1899 = vmatpush1.msra.mxu0 0.0
    %1900 = vmatprep.subr.mxu0 0.0
    %1901 = vmatpush1.msra.mxu0 0.0
    %1902 = vmatprep.subr.mxu0 0.0
    %1903 = vmatpush1.msra.mxu0 0.0
    %1904 = vmatprep.subr.mxu0 0.0
    %1905 = vmatpush1.msra.mxu0 0.0
    %1906 = vmatprep.subr.mxu0 0.0
    %1907 = vmatpush1.msra.mxu0 0.0
    %1908 = vmatprep.subr.mxu0 0.0
    %1909 = vmatpush1.msra.mxu0 0.0
    %1910 = vmatprep.subr.mxu0 0.0
    %1911 = vmatpush1.msra.mxu0 0.0
    %1912 = vmatprep.subr.mxu0 0.0
    %1913 = vmatpush1.msra.mxu0 0.0
    %1914 = vmatprep.subr.mxu0 0.0
    %1915 = vmatpush1.msra.mxu0 0.0
    %1916 = vmatprep.subr.mxu0 0.0
    %1917 = vmatpush1.msra.mxu0 0.0
    %1918 = vmatprep.subr.mxu0 0.0
    %1919 = vmatpush1.msra.mxu0 0.0
    %1920 = vmatprep.subr.mxu0 0.0
    %1921 = vmatpush1.msra.mxu0 %v129
    %1922 = vmatprep.subr.mxu0 0.0
    %1923 = vmatpush1.msra.mxu0 %v128
    %1924 = vmatprep.subr.mxu0 0.0
    %1925 = vmatpush1.msra.mxu0 %v127
    %1926 = vmatprep.subr.mxu0 0.0
    %1927 = vmatpush1.msra.mxu0 %v126
    %1928 = vmatprep.subr.mxu0 0.0
    %1929 = vmatpush2.msra.mxu0 0.0
    %1930 = vmatprep.subr.mxu0 0.0
    %1931 = vmatpush2.msra.mxu0 0.0
    %1932 = vmatprep.subr.mxu0 0.0
    %1933 = vmatpush2.msra.mxu0 0.0
    %1934 = vmatprep.subr.mxu0 0.0
    %1935 = vmatpush2.msra.mxu0 0.0
    %1936 = vmatprep.subr.mxu0 0.0
    %1937 = vmatpush2.msra.mxu0 0.0
    %1938 = vmatprep.subr.mxu0 0.0
    %1939 = vmatpush2.msra.mxu0 0.0
    %1940 = vmatprep.subr.mxu0 0.0
    %1941 = vmatpush2.msra.mxu0 0.0
    %1942 = vmatprep.subr.mxu0 0.0
    %1943 = vmatpush2.msra.mxu0 0.0
    %1944 = vmatprep.subr.mxu0 0.0
    %1945 = vmatpush2.msra.mxu0 0.0
    %1946 = vmatprep.subr.mxu0 0.0
    %1947 = vmatpush2.msra.mxu0 0.0
    %1948 = vmatprep.subr.mxu0 0.0
    %1949 = vmatpush2.msra.mxu0 0.0
    %1950 = vmatprep.subr.mxu0 0.0
    %1951 = vmatpush2.msra.mxu0 0.0
    %1952 = vmatprep.subr.mxu0 0.0
    %1953 = vmatpush2.msra.mxu0 0.0
    %1954 = vmatprep.subr.mxu0 0.0
    %1955 = vmatpush2.msra.mxu0 0.0
    %1956 = vmatprep.subr.mxu0 0.0
    %1957 = vmatpush2.msra.mxu0 0.0
    %1958 = vmatprep.subr.mxu0 0.0
    %1959 = vmatpush2.msra.mxu0 0.0
    %1960 = vmatprep.mubr.f32.mxu0 0.0
    %1961 = vmatmul.mubr.f32.gmra.mxu0 %v1894
    %v1962 = vpop.f32.mrf.mxu0
    %v1963 = vadd.f32 0.0, %v1962
    %v1964 = vpop.f32.mrf.mxu0
    %1965 = vdwg.mxu0
    %v1966 = vld [vmem:[#allocation3 + $0xc] sm:$0x3]
    %1967 = vmatprep.subr.mxu0 0.0
    %1968 = vmatpush1.msra.mxu0 0.0
    %1969 = vmatprep.subr.mxu0 0.0
    %1970 = vmatpush1.msra.mxu0 0.0
    %1971 = vmatprep.subr.mxu0 0.0
    %1972 = vmatpush1.msra.mxu0 0.0
    %1973 = vmatprep.subr.mxu0 0.0
    %1974 = vmatpush1.msra.mxu0 0.0
    %1975 = vmatprep.subr.mxu0 0.0
    %1976 = vmatpush1.msra.mxu0 0.0
    %1977 = vmatprep.subr.mxu0 0.0
    %1978 = vmatpush1.msra.mxu0 0.0
    %1979 = vmatprep.subr.mxu0 0.0
    %1980 = vmatpush1.msra.mxu0 0.0
    %1981 = vmatprep.subr.mxu0 0.0
    %1982 = vmatpush1.msra.mxu0 0.0
    %1983 = vmatprep.subr.mxu0 0.0
    %1984 = vmatpush1.msra.mxu0 0.0
    %1985 = vmatprep.subr.mxu0 0.0
    %1986 = vmatpush1.msra.mxu0 0.0
    %1987 = vmatprep.subr.mxu0 0.0
    %1988 = vmatpush1.msra.mxu0 0.0
    %1989 = vmatprep.subr.mxu0 0.0
    %1990 = vmatpush1.msra.mxu0 0.0
    %1991 = vmatprep.subr.mxu0 0.0
    %1992 = vmatpush1.msra.mxu0 %v121
    %1993 = vmatprep.subr.mxu0 0.0
    %1994 = vmatpush1.msra.mxu0 %v120
    %1995 = vmatprep.subr.mxu0 0.0
    %1996 = vmatpush1.msra.mxu0 %v119
    %1997 = vmatprep.subr.mxu0 0.0
    %1998 = vmatpush1.msra.mxu0 %v118
    %1999 = vmatprep.subr.mxu0 0.0
    %2000 = vmatpush2.msra.mxu0 0.0
    %2001 = vmatprep.subr.mxu0 0.0
    %2002 = vmatpush2.msra.mxu0 0.0
    %2003 = vmatprep.subr.mxu0 0.0
    %2004 = vmatpush2.msra.mxu0 0.0
    %2005 = vmatprep.subr.mxu0 0.0
    %2006 = vmatpush2.msra.mxu0 0.0
    %2007 = vmatprep.subr.mxu0 0.0
    %2008 = vmatpush2.msra.mxu0 0.0
    %2009 = vmatprep.subr.mxu0 0.0
    %2010 = vmatpush2.msra.mxu0 0.0
    %2011 = vmatprep.subr.mxu0 0.0
    %2012 = vmatpush2.msra.mxu0 0.0
    %2013 = vmatprep.subr.mxu0 0.0
    %2014 = vmatpush2.msra.mxu0 0.0
    %2015 = vmatprep.subr.mxu0 0.0
    %2016 = vmatpush2.msra.mxu0 0.0
    %2017 = vmatprep.subr.mxu0 0.0
    %2018 = vmatpush2.msra.mxu0 0.0
    %2019 = vmatprep.subr.mxu0 0.0
    %2020 = vmatpush2.msra.mxu0 0.0
    %2021 = vmatprep.subr.mxu0 0.0
    %2022 = vmatpush2.msra.mxu0 0.0
    %2023 = vmatprep.subr.mxu0 0.0
    %2024 = vmatpush2.msra.mxu0 0.0
    %2025 = vmatprep.subr.mxu0 0.0
    %2026 = vmatpush2.msra.mxu0 0.0
    %2027 = vmatprep.subr.mxu0 0.0
    %2028 = vmatpush2.msra.mxu0 0.0
    %2029 = vmatprep.subr.mxu0 0.0
    %2030 = vmatpush2.msra.mxu0 0.0
    %2031 = vmatprep.mubr.f32.mxu0 0.0
    %2032 = vmatmul.mubr.f32.gmra.mxu0 %v1792
    %v2033 = vpop.f32.mrf.mxu0
    %v2034 = vadd.f32 0.0, %v2033
    %v2035 = vpop.f32.mrf.mxu0
    %2036 = vdwg.mxu0
    %v2037 = vadd.f32 %v1966, %v2034
    %v2038 = vxor.u32 %v2037, 2147483648
    %v2039 = vmul.f32 %v2038, 1.442695
    %v2040 = vpow.pop %v2039
    %v2041 = vadd.f32 %v2040, 1.0
    %v2042 = vrcp.pop %v2041
    %v2043 = vmul.f32 1.0, %v2042
    %v2044 = vtanh.pop %v2037
    %v2045 = vmul.f32 %v2043, %v1782
    %2047 = vrot.lane.b32.xlu0 %v2044, 64
    %v2048 = vpop.permute.xlu0 %2047
    %v2050 = vmul.f32 %v2043, %v2048
    %2052 = vrot.lane.b32.xlu0 %v2050, 32
    %v2053 = vpop.permute.xlu0 %2052
    %v2055 = vadd.f32 %v2045, %v2053
    %v2056 = vtanh.pop %v2055
    %2058 = vrot.lane.b32.xlu0 %v2056, 64
    %v2059 = vpop.permute.xlu0 %2058
    %v2061 = vmul.f32 %v2043, %v2059
    %2063 = vrot.lane.b32.xlu0 %v2061, 32
    %v2064 = vpop.permute.xlu0 %2063
    %v2065 = vsel %vm236, %v2064, 0
    %2067 = vmatprep.subr.mxu0 0.0
    %2068 = vmatpush1.msra.mxu0 0.0
    %2069 = vmatprep.subr.mxu0 0.0
    %2070 = vmatpush1.msra.mxu0 0.0
    %2071 = vmatprep.subr.mxu0 0.0
    %2072 = vmatpush1.msra.mxu0 0.0
    %2073 = vmatprep.subr.mxu0 0.0
    %2074 = vmatpush1.msra.mxu0 0.0
    %2075 = vmatprep.subr.mxu0 0.0
    %2076 = vmatpush1.msra.mxu0 0.0
    %2077 = vmatprep.subr.mxu0 0.0
    %2078 = vmatpush1.msra.mxu0 0.0
    %2079 = vmatprep.subr.mxu0 0.0
    %2080 = vmatpush1.msra.mxu0 0.0
    %2081 = vmatprep.subr.mxu0 0.0
    %2082 = vmatpush1.msra.mxu0 0.0
    %2083 = vmatprep.subr.mxu0 0.0
    %2084 = vmatpush1.msra.mxu0 0.0
    %2085 = vmatprep.subr.mxu0 0.0
    %2086 = vmatpush1.msra.mxu0 0.0
    %2087 = vmatprep.subr.mxu0 0.0
    %2088 = vmatpush1.msra.mxu0 0.0
    %2089 = vmatprep.subr.mxu0 0.0
    %2090 = vmatpush1.msra.mxu0 0.0
    %2091 = vmatprep.subr.mxu0 0.0
    %2092 = vmatpush1.msra.mxu0 %v125
    %2093 = vmatprep.subr.mxu0 0.0
    %2094 = vmatpush1.msra.mxu0 %v124
    %2095 = vmatprep.subr.mxu0 0.0
    %2096 = vmatpush1.msra.mxu0 %v123
    %2097 = vmatprep.subr.mxu0 0.0
    %2098 = vmatpush1.msra.mxu0 %v122
    %2099 = vmatprep.subr.mxu0 0.0
    %2100 = vmatpush2.msra.mxu0 0.0
    %2101 = vmatprep.subr.mxu0 0.0
    %2102 = vmatpush2.msra.mxu0 0.0
    %2103 = vmatprep.subr.mxu0 0.0
    %2104 = vmatpush2.msra.mxu0 0.0
    %2105 = vmatprep.subr.mxu0 0.0
    %2106 = vmatpush2.msra.mxu0 0.0
    %2107 = vmatprep.subr.mxu0 0.0
    %2108 = vmatpush2.msra.mxu0 0.0
    %2109 = vmatprep.subr.mxu0 0.0
    %2110 = vmatpush2.msra.mxu0 0.0
    %2111 = vmatprep.subr.mxu0 0.0
    %2112 = vmatpush2.msra.mxu0 0.0
    %2113 = vmatprep.subr.mxu0 0.0
    %2114 = vmatpush2.msra.mxu0 0.0
    %2115 = vmatprep.subr.mxu0 0.0
    %2116 = vmatpush2.msra.mxu0 0.0
    %2117 = vmatprep.subr.mxu0 0.0
    %2118 = vmatpush2.msra.mxu0 0.0
    %2119 = vmatprep.subr.mxu0 0.0
    %2120 = vmatpush2.msra.mxu0 0.0
    %2121 = vmatprep.subr.mxu0 0.0
    %2122 = vmatpush2.msra.mxu0 0.0
    %2123 = vmatprep.subr.mxu0 0.0
    %2124 = vmatpush2.msra.mxu0 0.0
    %2125 = vmatprep.subr.mxu0 0.0
    %2126 = vmatpush2.msra.mxu0 0.0
    %2127 = vmatprep.subr.mxu0 0.0
    %2128 = vmatpush2.msra.mxu0 0.0
    %2129 = vmatprep.subr.mxu0 0.0
    %2130 = vmatpush2.msra.mxu0 0.0
    %2131 = vmatprep.mubr.f32.mxu0 0.0
    %2132 = vmatmul.mubr.f32.gmra.mxu0 %v2065
    %v2133 = vpop.f32.mrf.mxu0
    %v2134 = vadd.f32 %v1963, %v2133
    %v2135 = vpop.f32.mrf.mxu0
    %2136 = vdwg.mxu0
    %v2137 = vadd.f32 %v2134, %v492
    %v2138 = vxor.u32 %v2137, 2147483648
    %v2139 = vmul.f32 %v2138, 1.442695
    %v2140 = vpow.pop %v2139
    %v2141 = vadd.f32 %v2140, 1.0
    %v2142 = vrcp.pop %v2141
    %v2143 = vmul.f32 1.0, %v2142
    %v2144 = vtanh.pop %v2137
    %v2145 = vmul.f32 %v2143, %v1882
    %2147 = vrot.lane.b32.xlu0 %v2144, 64
    %v2148 = vpop.permute.xlu0 %2147
    %v2150 = vmul.f32 %v2143, %v2148
    %2152 = vrot.lane.b32.xlu0 %v2150, 32
    %v2153 = vpop.permute.xlu0 %2152
    %v2155 = vadd.f32 %v2145, %v2153
    %v2156 = vtanh.pop %v2155
    %2158 = vrot.lane.b32.xlu0 %v2156, 64
    %v2159 = vpop.permute.xlu0 %2158
    %v2161 = vmul.f32 %v2143, %v2159
    %2163 = vrot.lane.b32.xlu0 %v2161, 32
    %v2164 = vpop.permute.xlu0 %2163
    %2166 = vst.msk [vmem:[#allocation4 + $0xc] sm:$0x3] %vm527, %v2164
    %v2167 = vsel %vm236, %v2164, 0
    %2169 = vmatprep.subr.mxu0 0.0
    %2170 = vmatpush1.msra.mxu0 0.0
    %2171 = vmatprep.subr.mxu0 0.0
    %2172 = vmatpush1.msra.mxu0 0.0
    %2173 = vmatprep.subr.mxu0 0.0
    %2174 = vmatpush1.msra.mxu0 0.0
    %2175 = vmatprep.subr.mxu0 0.0
    %2176 = vmatpush1.msra.mxu0 0.0
    %2177 = vmatprep.subr.mxu0 0.0
    %2178 = vmatpush1.msra.mxu0 0.0
    %2179 = vmatprep.subr.mxu0 0.0
    %2180 = vmatpush1.msra.mxu0 0.0
    %2181 = vmatprep.subr.mxu0 0.0
    %2182 = vmatpush1.msra.mxu0 0.0
    %2183 = vmatprep.subr.mxu0 0.0
    %2184 = vmatpush1.msra.mxu0 0.0
    %2185 = vmatprep.subr.mxu0 0.0
    %2186 = vmatpush1.msra.mxu0 0.0
    %2187 = vmatprep.subr.mxu0 0.0
    %2188 = vmatpush1.msra.mxu0 0.0
    %2189 = vmatprep.subr.mxu0 0.0
    %2190 = vmatpush1.msra.mxu0 0.0
    %2191 = vmatprep.subr.mxu0 0.0
    %2192 = vmatpush1.msra.mxu0 0.0
    %2193 = vmatprep.subr.mxu0 0.0
    %2194 = vmatpush1.msra.mxu0 %v129
    %2195 = vmatprep.subr.mxu0 0.0
    %2196 = vmatpush1.msra.mxu0 %v128
    %2197 = vmatprep.subr.mxu0 0.0
    %2198 = vmatpush1.msra.mxu0 %v127
    %2199 = vmatprep.subr.mxu0 0.0
    %2200 = vmatpush1.msra.mxu0 %v126
    %2201 = vmatprep.subr.mxu0 0.0
    %2202 = vmatpush2.msra.mxu0 0.0
    %2203 = vmatprep.subr.mxu0 0.0
    %2204 = vmatpush2.msra.mxu0 0.0
    %2205 = vmatprep.subr.mxu0 0.0
    %2206 = vmatpush2.msra.mxu0 0.0
    %2207 = vmatprep.subr.mxu0 0.0
    %2208 = vmatpush2.msra.mxu0 0.0
    %2209 = vmatprep.subr.mxu0 0.0
    %2210 = vmatpush2.msra.mxu0 0.0
    %2211 = vmatprep.subr.mxu0 0.0
    %2212 = vmatpush2.msra.mxu0 0.0
    %2213 = vmatprep.subr.mxu0 0.0
    %2214 = vmatpush2.msra.mxu0 0.0
    %2215 = vmatprep.subr.mxu0 0.0
    %2216 = vmatpush2.msra.mxu0 0.0
    %2217 = vmatprep.subr.mxu0 0.0
    %2218 = vmatpush2.msra.mxu0 0.0
    %2219 = vmatprep.subr.mxu0 0.0
    %2220 = vmatpush2.msra.mxu0 0.0
    %2221 = vmatprep.subr.mxu0 0.0
    %2222 = vmatpush2.msra.mxu0 0.0
    %2223 = vmatprep.subr.mxu0 0.0
    %2224 = vmatpush2.msra.mxu0 0.0
    %2225 = vmatprep.subr.mxu0 0.0
    %2226 = vmatpush2.msra.mxu0 0.0
    %2227 = vmatprep.subr.mxu0 0.0
    %2228 = vmatpush2.msra.mxu0 0.0
    %2229 = vmatprep.subr.mxu0 0.0
    %2230 = vmatpush2.msra.mxu0 0.0
    %2231 = vmatprep.subr.mxu0 0.0
    %2232 = vmatpush2.msra.mxu0 0.0
    %2233 = vmatprep.mubr.f32.mxu0 0.0
    %2234 = vmatmul.mubr.f32.gmra.mxu0 %v2167
    %v2235 = vpop.f32.mrf.mxu0
    %v2236 = vadd.f32 0.0, %v2235
    %v2237 = vpop.f32.mrf.mxu0
    %2238 = vdwg.mxu0
    %v2239 = vld [vmem:[#allocation3 + $0xe] sm:$0x3]
    %2240 = vmatprep.subr.mxu0 0.0
    %2241 = vmatpush1.msra.mxu0 0.0
    %2242 = vmatprep.subr.mxu0 0.0
    %2243 = vmatpush1.msra.mxu0 0.0
    %2244 = vmatprep.subr.mxu0 0.0
    %2245 = vmatpush1.msra.mxu0 0.0
    %2246 = vmatprep.subr.mxu0 0.0
    %2247 = vmatpush1.msra.mxu0 0.0
    %2248 = vmatprep.subr.mxu0 0.0
    %2249 = vmatpush1.msra.mxu0 0.0
    %2250 = vmatprep.subr.mxu0 0.0
    %2251 = vmatpush1.msra.mxu0 0.0
    %2252 = vmatprep.subr.mxu0 0.0
    %2253 = vmatpush1.msra.mxu0 0.0
    %2254 = vmatprep.subr.mxu0 0.0
    %2255 = vmatpush1.msra.mxu0 0.0
    %2256 = vmatprep.subr.mxu0 0.0
    %2257 = vmatpush1.msra.mxu0 0.0
    %2258 = vmatprep.subr.mxu0 0.0
    %2259 = vmatpush1.msra.mxu0 0.0
    %2260 = vmatprep.subr.mxu0 0.0
    %2261 = vmatpush1.msra.mxu0 0.0
    %2262 = vmatprep.subr.mxu0 0.0
    %2263 = vmatpush1.msra.mxu0 0.0
    %2264 = vmatprep.subr.mxu0 0.0
    %2265 = vmatpush1.msra.mxu0 %v121
    %2266 = vmatprep.subr.mxu0 0.0
    %2267 = vmatpush1.msra.mxu0 %v120
    %2268 = vmatprep.subr.mxu0 0.0
    %2269 = vmatpush1.msra.mxu0 %v119
    %2270 = vmatprep.subr.mxu0 0.0
    %2271 = vmatpush1.msra.mxu0 %v118
    %2272 = vmatprep.subr.mxu0 0.0
    %2273 = vmatpush2.msra.mxu0 0.0
    %2274 = vmatprep.subr.mxu0 0.0
    %2275 = vmatpush2.msra.mxu0 0.0
    %2276 = vmatprep.subr.mxu0 0.0
    %2277 = vmatpush2.msra.mxu0 0.0
    %2278 = vmatprep.subr.mxu0 0.0
    %2279 = vmatpush2.msra.mxu0 0.0
    %2280 = vmatprep.subr.mxu0 0.0
    %2281 = vmatpush2.msra.mxu0 0.0
    %2282 = vmatprep.subr.mxu0 0.0
    %2283 = vmatpush2.msra.mxu0 0.0
    %2284 = vmatprep.subr.mxu0 0.0
    %2285 = vmatpush2.msra.mxu0 0.0
    %2286 = vmatprep.subr.mxu0 0.0
    %2287 = vmatpush2.msra.mxu0 0.0
    %2288 = vmatprep.subr.mxu0 0.0
    %2289 = vmatpush2.msra.mxu0 0.0
    %2290 = vmatprep.subr.mxu0 0.0
    %2291 = vmatpush2.msra.mxu0 0.0
    %2292 = vmatprep.subr.mxu0 0.0
    %2293 = vmatpush2.msra.mxu0 0.0
    %2294 = vmatprep.subr.mxu0 0.0
    %2295 = vmatpush2.msra.mxu0 0.0
    %2296 = vmatprep.subr.mxu0 0.0
    %2297 = vmatpush2.msra.mxu0 0.0
    %2298 = vmatprep.subr.mxu0 0.0
    %2299 = vmatpush2.msra.mxu0 0.0
    %2300 = vmatprep.subr.mxu0 0.0
    %2301 = vmatpush2.msra.mxu0 0.0
    %2302 = vmatprep.subr.mxu0 0.0
    %2303 = vmatpush2.msra.mxu0 0.0
    %2304 = vmatprep.mubr.f32.mxu0 0.0
    %2305 = vmatmul.mubr.f32.gmra.mxu0 %v2065
    %v2306 = vpop.f32.mrf.mxu0
    %v2307 = vadd.f32 0.0, %v2306
    %v2308 = vpop.f32.mrf.mxu0
    %2309 = vdwg.mxu0
    %v2310 = vadd.f32 %v2239, %v2307
    %v2311 = vxor.u32 %v2310, 2147483648
    %v2312 = vmul.f32 %v2311, 1.442695
    %v2313 = vpow.pop %v2312
    %v2314 = vadd.f32 %v2313, 1.0
    %v2315 = vrcp.pop %v2314
    %v2316 = vmul.f32 1.0, %v2315
    %v2317 = vtanh.pop %v2310
    %v2318 = vmul.f32 %v2316, %v2055
    %2320 = vrot.lane.b32.xlu0 %v2317, 64
    %v2321 = vpop.permute.xlu0 %2320
    %v2323 = vmul.f32 %v2316, %v2321
    %2325 = vrot.lane.b32.xlu0 %v2323, 32
    %v2326 = vpop.permute.xlu0 %2325
    %v2328 = vadd.f32 %v2318, %v2326
    %v2329 = vtanh.pop %v2328
    %2331 = vrot.lane.b32.xlu0 %v2329, 64
    %v2332 = vpop.permute.xlu0 %2331
    %v2334 = vmul.f32 %v2316, %v2332
    %2336 = vrot.lane.b32.xlu0 %v2334, 32
    %v2337 = vpop.permute.xlu0 %2336
    %v2338 = vsel %vm236, %v2337, 0
    %2340 = vmatprep.subr.mxu0 0.0
    %2341 = vmatpush1.msra.mxu0 0.0
    %2342 = vmatprep.subr.mxu0 0.0
    %2343 = vmatpush1.msra.mxu0 0.0
    %2344 = vmatprep.subr.mxu0 0.0
    %2345 = vmatpush1.msra.mxu0 0.0
    %2346 = vmatprep.subr.mxu0 0.0
    %2347 = vmatpush1.msra.mxu0 0.0
    %2348 = vmatprep.subr.mxu0 0.0
    %2349 = vmatpush1.msra.mxu0 0.0
    %2350 = vmatprep.subr.mxu0 0.0
    %2351 = vmatpush1.msra.mxu0 0.0
    %2352 = vmatprep.subr.mxu0 0.0
    %2353 = vmatpush1.msra.mxu0 0.0
    %2354 = vmatprep.subr.mxu0 0.0
    %2355 = vmatpush1.msra.mxu0 0.0
    %2356 = vmatprep.subr.mxu0 0.0
    %2357 = vmatpush1.msra.mxu0 0.0
    %2358 = vmatprep.subr.mxu0 0.0
    %2359 = vmatpush1.msra.mxu0 0.0
    %2360 = vmatprep.subr.mxu0 0.0
    %2361 = vmatpush1.msra.mxu0 0.0
    %2362 = vmatprep.subr.mxu0 0.0
    %2363 = vmatpush1.msra.mxu0 0.0
    %2364 = vmatprep.subr.mxu0 0.0
    %2365 = vmatpush1.msra.mxu0 %v125
    %2366 = vmatprep.subr.mxu0 0.0
    %2367 = vmatpush1.msra.mxu0 %v124
    %2368 = vmatprep.subr.mxu0 0.0
    %2369 = vmatpush1.msra.mxu0 %v123
    %2370 = vmatprep.subr.mxu0 0.0
    %2371 = vmatpush1.msra.mxu0 %v122
    %2372 = vmatprep.subr.mxu0 0.0
    %2373 = vmatpush2.msra.mxu0 0.0
    %2374 = vmatprep.subr.mxu0 0.0
    %2375 = vmatpush2.msra.mxu0 0.0
    %2376 = vmatprep.subr.mxu0 0.0
    %2377 = vmatpush2.msra.mxu0 0.0
    %2378 = vmatprep.subr.mxu0 0.0
    %2379 = vmatpush2.msra.mxu0 0.0
    %2380 = vmatprep.subr.mxu0 0.0
    %2381 = vmatpush2.msra.mxu0 0.0
    %2382 = vmatprep.subr.mxu0 0.0
    %2383 = vmatpush2.msra.mxu0 0.0
    %2384 = vmatprep.subr.mxu0 0.0
    %2385 = vmatpush2.msra.mxu0 0.0
    %2386 = vmatprep.subr.mxu0 0.0
    %2387 = vmatpush2.msra.mxu0 0.0
    %2388 = vmatprep.subr.mxu0 0.0
    %2389 = vmatpush2.msra.mxu0 0.0
    %2390 = vmatprep.subr.mxu0 0.0
    %2391 = vmatpush2.msra.mxu0 0.0
    %2392 = vmatprep.subr.mxu0 0.0
    %2393 = vmatpush2.msra.mxu0 0.0
    %2394 = vmatprep.subr.mxu0 0.0
    %2395 = vmatpush2.msra.mxu0 0.0
    %2396 = vmatprep.subr.mxu0 0.0
    %2397 = vmatpush2.msra.mxu0 0.0
    %2398 = vmatprep.subr.mxu0 0.0
    %2399 = vmatpush2.msra.mxu0 0.0
    %2400 = vmatprep.subr.mxu0 0.0
    %2401 = vmatpush2.msra.mxu0 0.0
    %2402 = vmatprep.subr.mxu0 0.0
    %2403 = vmatpush2.msra.mxu0 0.0
    %2404 = vmatprep.mubr.f32.mxu0 0.0
    %2405 = vmatmul.mubr.f32.gmra.mxu0 %v2338
    %v2406 = vpop.f32.mrf.mxu0
    %v2407 = vadd.f32 %v2236, %v2406
    %v2408 = vpop.f32.mrf.mxu0
    %2409 = vdwg.mxu0
    %v2410 = vadd.f32 %v2407, %v492
    %v2411 = vxor.u32 %v2410, 2147483648
    %v2412 = vmul.f32 %v2411, 1.442695
    %v2413 = vpow.pop %v2412
    %v2414 = vadd.f32 %v2413, 1.0
    %v2415 = vrcp.pop %v2414
    %v2416 = vmul.f32 1.0, %v2415
    %v2417 = vtanh.pop %v2410
    %v2418 = vmul.f32 %v2416, %v2155
    %2420 = vrot.lane.b32.xlu0 %v2417, 64
    %v2421 = vpop.permute.xlu0 %2420
    %v2423 = vmul.f32 %v2416, %v2421
    %2425 = vrot.lane.b32.xlu0 %v2423, 32
    %v2426 = vpop.permute.xlu0 %2425
    %v2428 = vadd.f32 %v2418, %v2426
    %v2429 = vtanh.pop %v2428
    %2431 = vrot.lane.b32.xlu0 %v2429, 64
    %v2432 = vpop.permute.xlu0 %2431
    %v2434 = vmul.f32 %v2416, %v2432
    %2436 = vrot.lane.b32.xlu0 %v2434, 32
    %v2437 = vpop.permute.xlu0 %2436
    %2439 = vst.msk [vmem:[#allocation4 + $0xe] sm:$0x3] %vm527, %v2437
    %2441 = vst.msk [vmem:[#allocation2] sm:$0x3] %vm527, %v2337
    %2443 = vrot.lane.b32.xlu0 %v2328, 96
    %v2444 = vpop.permute.xlu0 %2443
    %2446 = vst.msk [vmem:[%s230] sm:$0x3] %vm527, %v2444
    %2447 = vst.msk [vmem:[%s232] sm:$0x3] %vm527, %v2437
    %2449 = vrot.lane.b32.xlu0 %v2428, 96
    %v2450 = vpop.permute.xlu0 %2449
    %2452 = vst.msk [vmem:[%s234] sm:$0x3] %vm527, %v2450
    %v2453 = vld [vmem:[#allocation4] sm:$0xff]
    %v2454 = vld [vmem:[#allocation4 + $0x8] sm:$0xff]
    %v2455 = vld [vmem:[%s7] sm:$0xff]
    %v2456 = vld [vmem:[%s7 + $0x8] sm:$0xff]
    %v2457 = vld [vmem:[%s7 + $0x10] sm:$0xff]
    %v2458 = vld [vmem:[%s7 + $0x18] sm:$0xff]
    %v2459 = vld [vmem:[%s8] sm:$0x1]
    %v2461 = vlaneseq
    %v2462 = vshrl.u32 %v2461, 7
    %v2463 = vsub.s32 0, %v2462
    %v2464 = vrot.slane %v2459, %v2463
    %v2467 = vsel %vm236, %v2453, 0
    %v2470 = vsel %vm236, %v2454, 0
    %2472 = vmatprep.subr.mxu0 0.0
    %2473 = vmatpush1.msra.mxu0 0.0
    %2474 = vmatprep.subr.mxu0 0.0
    %2475 = vmatpush1.msra.mxu0 0.0
    %2476 = vmatprep.subr.mxu0 0.0
    %2477 = vmatpush1.msra.mxu0 0.0
    %2478 = vmatprep.subr.mxu0 0.0
    %2479 = vmatpush1.msra.mxu0 0.0
    %2480 = vmatprep.subr.mxu0 0.0
    %2481 = vmatpush1.msra.mxu0 0.0
    %2482 = vmatprep.subr.mxu0 0.0
    %2483 = vmatpush1.msra.mxu0 0.0
    %2484 = vmatprep.subr.mxu0 0.0
    %2485 = vmatpush1.msra.mxu0 0.0
    %2486 = vmatprep.subr.mxu0 0.0
    %2487 = vmatpush1.msra.mxu0 0.0
    %2488 = vmatprep.subr.mxu0 0.0
    %2489 = vmatpush1.msra.mxu0 0.0
    %2490 = vmatprep.subr.mxu0 0.0
    %2491 = vmatpush1.msra.mxu0 0.0
    %2492 = vmatprep.subr.mxu0 0.0
    %2493 = vmatpush1.msra.mxu0 0.0
    %2494 = vmatprep.subr.mxu0 0.0
    %2495 = vmatpush1.msra.mxu0 0.0
    %2496 = vmatprep.subr.mxu0 0.0
    %2497 = vmatpush1.msra.mxu0 %v2458
    %2498 = vmatprep.subr.mxu0 0.0
    %2499 = vmatpush1.msra.mxu0 %v2457
    %2500 = vmatprep.subr.mxu0 0.0
    %2501 = vmatpush1.msra.mxu0 %v2456
    %2502 = vmatprep.subr.mxu0 0.0
    %2503 = vmatpush1.msra.mxu0 %v2455
    %2504 = vmatprep.subr.mxu0 0.0
    %2505 = vmatpush2.msra.mxu0 0.0
    %2506 = vmatprep.subr.mxu0 0.0
    %2507 = vmatpush2.msra.mxu0 0.0
    %2508 = vmatprep.subr.mxu0 0.0
    %2509 = vmatpush2.msra.mxu0 0.0
    %2510 = vmatprep.subr.mxu0 0.0
    %2511 = vmatpush2.msra.mxu0 0.0
    %2512 = vmatprep.subr.mxu0 0.0
    %2513 = vmatpush2.msra.mxu0 0.0
    %2514 = vmatprep.subr.mxu0 0.0
    %2515 = vmatpush2.msra.mxu0 0.0
    %2516 = vmatprep.subr.mxu0 0.0
    %2517 = vmatpush2.msra.mxu0 0.0
    %2518 = vmatprep.subr.mxu0 0.0
    %2519 = vmatpush2.msra.mxu0 0.0
    %2520 = vmatprep.subr.mxu0 0.0
    %2521 = vmatpush2.msra.mxu0 0.0
    %2522 = vmatprep.subr.mxu0 0.0
    %2523 = vmatpush2.msra.mxu0 0.0
    %2524 = vmatprep.subr.mxu0 0.0
    %2525 = vmatpush2.msra.mxu0 0.0
    %2526 = vmatprep.subr.mxu0 0.0
    %2527 = vmatpush2.msra.mxu0 0.0
    %2528 = vmatprep.subr.mxu0 0.0
    %2529 = vmatpush2.msra.mxu0 0.0
    %2530 = vmatprep.subr.mxu0 0.0
    %2531 = vmatpush2.msra.mxu0 0.0
    %2532 = vmatprep.subr.mxu0 0.0
    %2533 = vmatpush2.msra.mxu0 0.0
    %2534 = vmatprep.subr.mxu0 0.0
    %2535 = vmatpush2.msra.mxu0 0.0
    %2536 = vmatprep.mubr.f32.mxu0 0.0
    %2537 = vmatmul.mubr.f32.gmra.mxu0 %v2467
    %v2538 = vpop.f32.mrf.mxu0
    %v2539 = vadd.f32 %v2464, %v2538
    %v2540 = vpop.f32.mrf.mxu0
    %2541 = vmatprep.mubr.f32.mxu0 0.0
    %2542 = vmatmul.mubr.f32.gmra.mxu0 %v2470
    %v2543 = vpop.f32.mrf.mxu0
    %v2544 = vadd.f32 %v2464, %v2543
    %v2545 = vpop.f32.mrf.mxu0
    %2546 = vdwg.mxu0
    %2547 = vst [vmem:[#allocation16] sm:$0xff] %v2539
    %2548 = vst [vmem:[#allocation16 + $0x8] sm:$0xff] %v2544
    // Predicated region
    $region66: #{tpu_custom_call.1} parent=1 // pred_check
      _
    $region67: #{tpu_custom_call.1} parent=1 // pred_check_branch
      %2550 = sbr.rel (0) target = $region69
    $region68: #{tpu_custom_call.1} parent=1 // pred_region
      %s2552 = ssub.s32 256, 256
      %2553 = vsyncadd [#allocation7], %s2552
      %s2554 = sshll.u32 [#allocation16], 4
      %s2555 = int_to_ptr.vmem [resolvable:$true] %s2554
      %2560 = dma.vmem_to_hbm [thread:$0]  %s2555, 256, %s9, [#allocation7], 128, 128, 8
    $region69: #{tpu_custom_call.1} parent=1 // pred_fallthru
      _
    // Predicated region
    $region70: #{tpu_custom_call.1} parent=1 // pred_check
      _
    $region71: #{tpu_custom_call.1} parent=1 // pred_check_branch
      %2562 = sbr.rel (0) target = $region73
    $region72: #{tpu_custom_call.1} parent=1 // pred_region
      %2563 = dma.done [#allocation7], 256
    $region73: #{tpu_custom_call.1} parent=1 // pred_fallthru
      _
    %2564 = vsyncpa [#allocation6], 1
    %2565 = vsyncpa [#allocation9], 1
    %2566 = vsyncpa [#allocation12], 1
    %2567 = vsyncpa [#allocation15], 1
    %2568 = vsyncpa [#allocation7], 1

</llo_original>
